<compile_context>
chip_gen: v7x
topology: tpu7x:2x2x1
jax: 0.10.0
libtpu: 0.0.40
codegen_flags: <defaults>
</compile_context>

<pallas_src>
import functools

import jax
import jax.numpy as jnp
from jax import lax
from jax.experimental import pallas as pl
from jax.experimental.pallas import tpu as pltpu

IN_CHANNELS = 7
CIN_PAD = 8                    # input channels padded to 8 for clean MXU contraction
N_CLASSES = 18
LATENT_DIM = 128
HIDDEN = LATENT_DIM // 2       # 64 per direction
C1 = 64                        # first conv output channels
K1, K2 = 5, 3                  # conv kernel sizes
PAD1, PAD2 = 2, 1              # conv paddings
BP = 8                         # padded rows (sublanes) per timestep -> aligned slices
LOGITS_PAD = 128               # lane-dense padded classifier width


# --------------------------------------------------------------------------
# Fused kernel: Conv1(k5,p2)+BN+ReLU -> Conv2(k3,p1)+BN+ReLU -> Bi-GRU -> Linear
# Single program; everything stays resident in VMEM.
# Row layout: r = t*BP + b (time-major, 8 rows per timestep, rows b>=B zero).
# --------------------------------------------------------------------------
def _fused_kernel(x_ref, w1_ref, b1_ref, w2_ref, b2_ref,
                  wih_ref, bi_ref, whh_ref, bhn_ref, wc_ref, bc_ref,
                  latent_ref, logits_ref, gi_ref):
    f32, bf16 = jnp.float32, jnp.bfloat16
    TBp = x_ref.shape[0]
    T = TBp // BP
    B = latent_ref.shape[0]
    H = HIDDEN

    def shift_t(a, d):
        """Value of `a` at timestep t+d per row group (zero outside the sequence).
        Shifts are whole 8-row sublane groups, so the concat is alignment-clean."""
        if d == 0:
            return a
        s = abs(d) * BP
        zeros = jnp.zeros((s, a.shape[1]), a.dtype)
        if d < 0:
            return jnp.concatenate([zeros, a[:TBp - s, :]], axis=0)
        return jnp.concatenate([a[s:, :], zeros], axis=0)

    # ---- conv1 (k=5, pad=2) + folded BN + ReLU: 5 accumulated bf16 taps ------
    x = x_ref[...]                                              # (TBp, 8) f32
    h1 = jnp.zeros((TBp, C1), f32)
    for k in range(K1):
        xk = shift_t(x, k - PAD1).astype(bf16)
        h1 = h1 + jnp.dot(xk, w1_ref[k], preferred_element_type=f32)
    h1 = jnp.maximum(h1 + b1_ref[...], 0.0)                     # (TBp, 64)

    # ---- conv2 (k=3, pad=1) + folded BN + ReLU: 3 accumulated taps (no lane
    #      concatenation at sub-128 boundaries) ---------------------------------
    h2 = jnp.zeros((TBp, LATENT_DIM), f32)
    for k in range(K2):
        hk = shift_t(h1, k - PAD2).astype(bf16)
        h2 = h2 + jnp.dot(hk, w2_ref[k], preferred_element_type=f32)
    h2 = jnp.maximum(h2 + b2_ref[...], 0.0)                     # (TBp, 128)

    # ---- GRU input-to-hidden projections, hoisted out of the recurrence ------
    # Gate-pair lane layout: [r_f r_b | z_f z_b | n_f n_b] (3 x 128 lane-dense).
    # r/z biases already include b_ih + b_hh; n bias is b_in only.
    gi_ref[...] = (jnp.dot(h2.astype(bf16), wih_ref[...], preferred_element_type=f32)
                   + bi_ref[...])                               # (TBp, 384)

    # ---- serial recurrence: one (8,128)@(128,384) bf16 matmul per step does
    #      BOTH directions (block-diagonal Whh); all gate math is 128-lane dense
    #      and the r/z sigmoids are fused into a single 256-lane sigmoid. -------
    whh = whh_ref[...]                                          # (128, 384) bf16
    bhn = bhn_ref[...]                                          # (1, 128) f32
    col = lax.broadcasted_iota(jnp.int32, (BP, 6 * H), 1)
    fwd_lane = (col % (2 * H)) < H        # fwd half of each 128-lane gate group

    h = jnp.zeros((BP, 2 * H), f32)       # [h_fwd | h_bwd]
    for t in range(T):                    # fully unrolled; static 8-aligned slices
        blk_f = gi_ref[t * BP:(t + 1) * BP, :]                  # fwd gi at time t
        blk_b = gi_ref[(T - 1 - t) * BP:(T - t) * BP, :]        # bwd gi at time T-1-t
        gi_t = jnp.where(fwd_lane, blk_f, blk_b)
        gh = jnp.dot(h.astype(bf16), whh, preferred_element_type=f32)
        rz = jax.nn.sigmoid(gi_t[:, :4 * H] + gh[:, :4 * H])    # fused r|z, 256 lanes
        r, z = rz[:, :2 * H], rz[:, 2 * H:]
        n = jnp.tanh(gi_t[:, 4 * H:] + r * (gh[:, 4 * H:] + bhn))
        h = (1.0 - z) * n + z * h

    latent = h[:B, :]                                           # [h_fwd | h_bwd] free concat
    latent_ref[...] = latent
    logits_ref[...] = (jnp.dot(latent.astype(bf16), wc_ref[...],
                               preferred_element_type=f32) + bc_ref[...])


# --------------------------------------------------------------------------
# Offline parameter preparation (call ONCE, outside the per-call path):
# fold eval-mode BN into conv weights, cast MXU operands to bf16, build the
# gate-paired / block-diagonal GRU weight layout, pad the classifier.
# --------------------------------------------------------------------------
def prepare_params(p):
    bf16 = jnp.bfloat16
    H = HIDDEN

    w1 = p["w1"] * p["s1"]                                       # (K1, Cin, 64)
    w1 = jnp.pad(w1, ((0, 0), (0, CIN_PAD - IN_CHANNELS), (0, 0))).astype(bf16)
    w2 = (p["w2"] * p["s2"]).astype(bf16)                        # (K2, 64, 128)

    # Input-to-hidden weights, columns = [r_f r_b | z_f z_b | n_f n_b]
    wih = jnp.concatenate([p["wih_f"][0], p["wih_b"][0],
                           p["wih_f"][1], p["wih_b"][1],
                           p["wih_f"][2], p["wih_b"][2]], axis=1).astype(bf16)  # (128, 384)
    bi = jnp.concatenate([p["bi_f"][0] + p["bh_f"][0], p["bi_b"][0] + p["bh_b"][0],
                          p["bi_f"][1] + p["bh_f"][1], p["bi_b"][1] + p["bh_b"][1],
                          p["bi_f"][2], p["bi_b"][2]], axis=1)                   # (1, 384)

    # Block-diagonal recurrent weights; state layout [h_fwd | h_bwd].
    zero = jnp.zeros((H, H), jnp.float32)
    whh = jnp.concatenate([
        jnp.concatenate([p["whh_f"][0], zero, p["whh_f"][1], zero, p["whh_f"][2], zero], axis=1),
        jnp.concatenate([zero, p["whh_b"][0], zero, p["whh_b"][1], zero, p["whh_b"][2]], axis=1),
    ], axis=0).astype(bf16)                                                      # (128, 384)
    bhn = jnp.concatenate([p["bh_f"][2], p["bh_b"][2]], axis=1)                  # (1, 128)

    wc = jnp.zeros((LATENT_DIM, LOGITS_PAD), jnp.float32).at[:, :N_CLASSES].set(p["wc"])
    bc = jnp.zeros((1, LOGITS_PAD), jnp.float32).at[:, :N_CLASSES].set(p["bc"])
    return dict(w1=w1, b1=p["b1"], w2=w2, b2=p["b2"], wih=wih, bi=bi,
                whh=whh, bhn=bhn, wc=wc.astype(bf16), bc=bc)


@functools.partial(jax.jit, static_argnames=("return_logits",))
def imu_encoder_forward(x, prepped, return_logits=False):
    if x.ndim == 2:                       # matches torch unsqueeze(0)
        x = x[None]
    B, T, Cin = x.shape
    assert B <= BP and Cin == IN_CHANNELS

    # Time-major, sublane-padded row layout: row r = t*BP + b, rows b >= B zero,
    # so every per-timestep slice inside the kernel starts on an 8-row boundary.
    x_tm = jnp.zeros((T, BP, CIN_PAD), jnp.float32)
    x_tm = x_tm.at[:, :B, :Cin].set(jnp.transpose(x, (1, 0, 2)))
    x_tm = x_tm.reshape(T * BP, CIN_PAD)

    q = prepped
    args = (x_tm, q["w1"], q["b1"], q["w2"], q["b2"],
            q["wih"], q["bi"], q["whh"], q["bhn"], q["wc"], q["bc"])

    def fs(a):
        return pl.BlockSpec(a.shape, lambda i, nd=a.ndim: (0,) * nd)

    TBp, H = T * BP, HIDDEN
    flops = 2 * TBp * (K1 * CIN_PAD * C1 + K2 * C1 * LATENT_DIM + LATENT_DIM * 6 * H)
    flops += 2 * T * BP * 2 * H * 6 * H + 2 * B * LATENT_DIM * LOGITS_PAD
    transcendentals = T * BP * 6 * H
    nbytes = sum(int(a.size) * a.dtype.itemsize for a in args)
    nbytes += 4 * (B * LATENT_DIM + B * LOGITS_PAD)

    latent, logits_pad = pl.pallas_call(
        _fused_kernel,
        out_shape=(jax.ShapeDtypeStruct((B, LATENT_DIM), jnp.float32),
                   jax.ShapeDtypeStruct((B, LOGITS_PAD), jnp.float32)),
        grid_spec=pltpu.PrefetchScalarGridSpec(
            num_scalar_prefetch=0,
            grid=(1,),
            in_specs=[fs(a) for a in args],
            out_specs=(pl.BlockSpec((B, LATENT_DIM), lambda i: (0, 0)),
                       pl.BlockSpec((B, LOGITS_PAD), lambda i: (0, 0))),
            scratch_shapes=[pltpu.VMEM((TBp, 6 * H), jnp.float32)]),
        compiler_params=pltpu.CompilerParams(dimension_semantics=("arbitrary",)),
        cost_estimate=pl.CostEstimate(flops=flops,
                                      transcendentals=transcendentals,
                                      bytes_accessed=nbytes),
    )(*args)

    logits = logits_pad[:, :N_CLASSES]
    return (latent, logits) if return_logits else latent


# --------------------------------------------------------------------------
# Deterministic parameter init (synthetic, shapes from the PyTorch __init__).
# --------------------------------------------------------------------------
def init_params(key):
    ks = jax.random.split(key, 24)

    def nrm(k, shape, scale=0.1):
        return (scale * jax.random.normal(k, shape)).astype(jnp.float32)

    p = {}
    # conv1 + BN1 (folded, eval mode)
    w1 = nrm(ks[0], (K1, IN_CHANNELS, C1))
    bconv1 = nrm(ks[1], (C1,))
    g1, beta1 = 1.0 + nrm(ks[2], (C1,)), nrm(ks[3], (C1,))
    rm1 = nrm(ks[4], (C1,))
    rv1 = 1.0 + 0.1 * jax.random.uniform(ks[5], (C1,))
    s1 = g1 / jnp.sqrt(rv1 + 1e-5)
    p["w1"], p["s1"], p["b1"] = w1, s1[None, :], ((bconv1 - rm1) * s1 + beta1)[None, :]

    # conv2 + BN2 (folded, eval mode)
    w2 = nrm(ks[6], (K2, C1, LATENT_DIM))
    bconv2 = nrm(ks[7], (LATENT_DIM,))
    g2, beta2 = 1.0 + nrm(ks[8], (LATENT_DIM,)), nrm(ks[9], (LATENT_DIM,))
    rm2 = nrm(ks[10], (LATENT_DIM,))
    rv2 = 1.0 + 0.1 * jax.random.uniform(ks[11], (LATENT_DIM,))
    s2 = g2 / jnp.sqrt(rv2 + 1e-5)
    p["w2"], p["s2"], p["b2"] = w2, s2[None, :], ((bconv2 - rm2) * s2 + beta2)[None, :]

    # Bi-GRU (gates stacked on axis 0 in PyTorch order: r, z, n)
    p["wih_f"] = nrm(ks[12], (3, LATENT_DIM, HIDDEN))
    p["whh_f"] = nrm(ks[13], (3, HIDDEN, HIDDEN))
    p["bi_f"] = nrm(ks[14], (3, 1, HIDDEN))
    p["bh_f"] = nrm(ks[15], (3, 1, HIDDEN))
    p["wih_b"] = nrm(ks[16], (3, LATENT_DIM, HIDDEN))
    p["whh_b"] = nrm(ks[17], (3, HIDDEN, HIDDEN))
    p["bi_b"] = nrm(ks[18], (3, 1, HIDDEN))
    p["bh_b"] = nrm(ks[19], (3, 1, HIDDEN))

    # classifier
    p["wc"] = nrm(ks[20], (LATENT_DIM, N_CLASSES))
    p["bc"] = nrm(ks[21], (1, N_CLASSES))
    return p


# --------------------------------------------------------------------------
# Pure-JAX f32 reference (same math) for a correctness sanity check.
# --------------------------------------------------------------------------
def reference_forward(x, p):
    if x.ndim == 2:
        x = x[None]
    B, T, _ = x.shape
    xp = jnp.pad(x, ((0, 0), (PAD1, PAD1), (0, 0)))
    h1 = jnp.zeros((B, T, C1), jnp.float32)
    for k in range(K1):
        h1 = h1 + jnp.einsum("btc,cd->btd", xp[:, k:k + T, :], p["w1"][k])
    h1 = jnp.maximum(h1 * p["s1"][None] + p["b1"][None], 0.0)
    hp = jnp.pad(h1, ((0, 0), (1, 1), (0, 0)))
    h2 = jnp.zeros((B, T, LATENT_DIM), jnp.float32)
    for k in range(K2):
        h2 = h2 + jnp.einsum("btc,cd->btd", hp[:, k:k + T, :], p["w2"][k])
    h2 = jnp.maximum(h2 * p["s2"][None] + p["b2"][None], 0.0)

    def cell(x_t, h_prev, wih, whh, bi, bh):
        r = jax.nn.sigmoid(x_t @ wih[0] + bi[0] + h_prev @ whh[0] + bh[0])
        z = jax.nn.sigmoid(x_t @ wih[1] + bi[1] + h_prev @ whh[1] + bh[1])
        n = jnp.tanh(x_t @ wih[2] + bi[2] + r * (h_prev @ whh[2] + bh[2]))
        return (1.0 - z) * n + z * h_prev

    hf = jnp.zeros((B, HIDDEN), jnp.float32)
    hb = jnp.zeros((B, HIDDEN), jnp.float32)
    for t in range(T):
        hf = cell(h2[:, t], hf, p["wih_f"], p["whh_f"], p["bi_f"], p["bh_f"])
        hb = cell(h2[:, T - 1 - t], hb, p["wih_b"], p["whh_b"], p["bi_b"], p["bh_b"])
    latent = jnp.concatenate([hf, hb], axis=1)
    logits = latent @ p["wc"] + p["bc"]
    return latent, logits


if __name__ == "__main__":
    key = jax.random.PRNGKey(0)
    k_param, k_x = jax.random.split(key)
    params = init_params(k_param)
    prepped = prepare_params(params)        # one-time weight preparation

    B, T = 2, 16
    x = jax.random.normal(k_x, (B, T, IN_CHANNELS), dtype=jnp.float32)

    latent, logits = imu_encoder_forward(x, prepped, return_logits=True)
    jax.block_until_ready((latent, logits))

    ref_latent, ref_logits = reference_forward(x, params)
    assert latent.shape == (B, LATENT_DIM) and logits.shape == (B, N_CLASSES)
    # Tolerance covers bf16 MXU operands accumulated over the 16-step recurrence.
    assert jnp.allclose(latent, ref_latent, rtol=2e-2, atol=2e-2)
    assert jnp.allclose(logits, ref_logits, rtol=2e-2, atol=2e-2)

    print("KERNEL_OK")
</pallas_src>

<mosaic_0001>
module attributes {stable_mosaic.version = 11 : i64} {
  func.func @_fused_kernel(%arg0: i32, %arg1: memref<128x8xf32, #tpu.memory_space<vmem>>, %arg2: memref<5x8x64xbf16, #tpu.memory_space<vmem>>, %arg3: memref<1x64xf32, #tpu.memory_space<vmem>>, %arg4: memref<3x64x128xbf16, #tpu.memory_space<vmem>>, %arg5: memref<1x128xf32, #tpu.memory_space<vmem>>, %arg6: memref<128x384xbf16, #tpu.memory_space<vmem>>, %arg7: memref<1x384xf32, #tpu.memory_space<vmem>>, %arg8: memref<128x384xbf16, #tpu.memory_space<vmem>>, %arg9: memref<1x128xf32, #tpu.memory_space<vmem>>, %arg10: memref<128x128xbf16, #tpu.memory_space<vmem>>, %arg11: memref<1x128xf32, #tpu.memory_space<vmem>>, %arg12: memref<2x128xf32, #tpu.memory_space<vmem>>, %arg13: memref<2x128xf32, #tpu.memory_space<vmem>>, %arg14: memref<128x384xf32, #tpu.memory_space<vmem>>) attributes {dimension_semantics = [#tpu.dimension_semantics<arbitrary>], iteration_bounds = array<i64: 1>, scalar_prefetch = 0 : i64, scratch_operands = 1 : i64, tpu.core_type = #tpu.core_type<tc>, window_params = [{pipeline_mode = #tpu.pipeline_mode<synchronous>, transform_indices = @transform_0, window_bounds = array<i64: 128, 8>}, {pipeline_mode = #tpu.pipeline_mode<synchronous>, transform_indices = @transform_1, window_bounds = array<i64: 5, 8, 64>}, {pipeline_mode = #tpu.pipeline_mode<synchronous>, transform_indices = @transform_2, window_bounds = array<i64: 1, 64>}, {pipeline_mode = #tpu.pipeline_mode<synchronous>, transform_indices = @transform_3, window_bounds = array<i64: 3, 64, 128>}, {pipeline_mode = #tpu.pipeline_mode<synchronous>, transform_indices = @transform_4, window_bounds = array<i64: 1, 128>}, {pipeline_mode = #tpu.pipeline_mode<synchronous>, transform_indices = @transform_5, window_bounds = array<i64: 128, 384>}, {pipeline_mode = #tpu.pipeline_mode<synchronous>, transform_indices = @transform_6, window_bounds = array<i64: 1, 384>}, {pipeline_mode = #tpu.pipeline_mode<synchronous>, transform_indices = @transform_7, window_bounds = array<i64: 128, 384>}, {pipeline_mode = #tpu.pipeline_mode<synchronous>, transform_indices = @transform_8, window_bounds = array<i64: 1, 128>}, {pipeline_mode = #tpu.pipeline_mode<synchronous>, transform_indices = @transform_9, window_bounds = array<i64: 128, 128>}, {pipeline_mode = #tpu.pipeline_mode<synchronous>, transform_indices = @transform_10, window_bounds = array<i64: 1, 128>}, {pipeline_mode = #tpu.pipeline_mode<synchronous>, transform_indices = @transform_11, window_bounds = array<i64: 2, 128>}, {pipeline_mode = #tpu.pipeline_mode<synchronous>, transform_indices = @transform_12, window_bounds = array<i64: 2, 128>}]} {
    %c0 = arith.constant 0 : index
    %c0_0 = arith.constant 0 : index
    %0 = vector.load %arg1[%c0, %c0_0] : memref<128x8xf32, #tpu.memory_space<vmem>>, vector<128x8xf32>
    %cst = arith.constant 0.000000e+00 : f32
    %1 = vector.broadcast %cst : f32 to vector<128x64xf32>
    %cst_1 = arith.constant 0.000000e+00 : f32
    %2 = vector.broadcast %cst_1 : f32 to vector<16x8xf32>
    %3 = vector.extract_strided_slice %0 {offsets = [0, 0], sizes = [112, 8], strides = [1, 1]} : vector<128x8xf32> to vector<112x8xf32>
    %4 = tpu.concatenate %2, %3 in 0 : vector<16x8xf32>, vector<112x8xf32> -> vector<128x8xf32>
    %5 = arith.truncf %4 : vector<128x8xf32> to vector<128x8xbf16>
    %c0_2 = arith.constant 0 : index
    %c0_3 = arith.constant 0 : index
    %c0_4 = arith.constant 0 : index
    %6 = vector.load %arg2[%c0_2, %c0_3, %c0_4] : memref<5x8x64xbf16, #tpu.memory_space<vmem>>, vector<1x8x64xbf16>
    %7 = vector.shape_cast %6 : vector<1x8x64xbf16> to vector<8x64xbf16>
    %cst_5 = arith.constant dense<0.000000e+00> : vector<128x64xf32>
    %8 = tpu.matmul %5, %7, %cst_5 {dimension_numbers = #tpu.dot_dimension_numbers<[1], [0], [0], [1], [0, 0, 1, 1], [], []>} : vector<128x8xbf16>, vector<8x64xbf16>, vector<128x64xf32> -> vector<128x64xf32>
    %9 = arith.addf %1, %8 : vector<128x64xf32>
    %cst_6 = arith.constant 0.000000e+00 : f32
    %10 = vector.broadcast %cst_6 : f32 to vector<8x8xf32>
    %11 = vector.extract_strided_slice %0 {offsets = [0, 0], sizes = [120, 8], strides = [1, 1]} : vector<128x8xf32> to vector<120x8xf32>
    %12 = tpu.concatenate %10, %11 in 0 : vector<8x8xf32>, vector<120x8xf32> -> vector<128x8xf32>
    %13 = arith.truncf %12 : vector<128x8xf32> to vector<128x8xbf16>
    %c1 = arith.constant 1 : index
    %c0_7 = arith.constant 0 : index
    %c0_8 = arith.constant 0 : index
    %14 = vector.load %arg2[%c1, %c0_7, %c0_8] : memref<5x8x64xbf16, #tpu.memory_space<vmem>>, vector<1x8x64xbf16>
    %15 = vector.shape_cast %14 : vector<1x8x64xbf16> to vector<8x64xbf16>
    %cst_9 = arith.constant dense<0.000000e+00> : vector<128x64xf32>
    %16 = tpu.matmul %13, %15, %cst_9 {dimension_numbers = #tpu.dot_dimension_numbers<[1], [0], [0], [1], [0, 0, 1, 1], [], []>} : vector<128x8xbf16>, vector<8x64xbf16>, vector<128x64xf32> -> vector<128x64xf32>
    %17 = arith.addf %9, %16 : vector<128x64xf32>
    %18 = arith.truncf %0 : vector<128x8xf32> to vector<128x8xbf16>
    %c2 = arith.constant 2 : index
    %c0_10 = arith.constant 0 : index
    %c0_11 = arith.constant 0 : index
    %19 = vector.load %arg2[%c2, %c0_10, %c0_11] : memref<5x8x64xbf16, #tpu.memory_space<vmem>>, vector<1x8x64xbf16>
    %20 = vector.shape_cast %19 : vector<1x8x64xbf16> to vector<8x64xbf16>
    %cst_12 = arith.constant dense<0.000000e+00> : vector<128x64xf32>
    %21 = tpu.matmul %18, %20, %cst_12 {dimension_numbers = #tpu.dot_dimension_numbers<[1], [0], [0], [1], [0, 0, 1, 1], [], []>} : vector<128x8xbf16>, vector<8x64xbf16>, vector<128x64xf32> -> vector<128x64xf32>
    %22 = arith.addf %17, %21 : vector<128x64xf32>
    %cst_13 = arith.constant 0.000000e+00 : f32
    %23 = vector.broadcast %cst_13 : f32 to vector<8x8xf32>
    %24 = vector.extract_strided_slice %0 {offsets = [8, 0], sizes = [120, 8], strides = [1, 1]} : vector<128x8xf32> to vector<120x8xf32>
    %25 = tpu.concatenate %24, %23 in 0 : vector<120x8xf32>, vector<8x8xf32> -> vector<128x8xf32>
    %26 = arith.truncf %25 : vector<128x8xf32> to vector<128x8xbf16>
    %c3 = arith.constant 3 : index
    %c0_14 = arith.constant 0 : index
    %c0_15 = arith.constant 0 : index
    %27 = vector.load %arg2[%c3, %c0_14, %c0_15] : memref<5x8x64xbf16, #tpu.memory_space<vmem>>, vector<1x8x64xbf16>
    %28 = vector.shape_cast %27 : vector<1x8x64xbf16> to vector<8x64xbf16>
    %cst_16 = arith.constant dense<0.000000e+00> : vector<128x64xf32>
    %29 = tpu.matmul %26, %28, %cst_16 {dimension_numbers = #tpu.dot_dimension_numbers<[1], [0], [0], [1], [0, 0, 1, 1], [], []>} : vector<128x8xbf16>, vector<8x64xbf16>, vector<128x64xf32> -> vector<128x64xf32>
    %30 = arith.addf %22, %29 : vector<128x64xf32>
    %cst_17 = arith.constant 0.000000e+00 : f32
    %31 = vector.broadcast %cst_17 : f32 to vector<16x8xf32>
    %32 = vector.extract_strided_slice %0 {offsets = [16, 0], sizes = [112, 8], strides = [1, 1]} : vector<128x8xf32> to vector<112x8xf32>
    %33 = tpu.concatenate %32, %31 in 0 : vector<112x8xf32>, vector<16x8xf32> -> vector<128x8xf32>
    %34 = arith.truncf %33 : vector<128x8xf32> to vector<128x8xbf16>
    %c4 = arith.constant 4 : index
    %c0_18 = arith.constant 0 : index
    %c0_19 = arith.constant 0 : index
    %35 = vector.load %arg2[%c4, %c0_18, %c0_19] : memref<5x8x64xbf16, #tpu.memory_space<vmem>>, vector<1x8x64xbf16>
    %36 = vector.shape_cast %35 : vector<1x8x64xbf16> to vector<8x64xbf16>
    %cst_20 = arith.constant dense<0.000000e+00> : vector<128x64xf32>
    %37 = tpu.matmul %34, %36, %cst_20 {dimension_numbers = #tpu.dot_dimension_numbers<[1], [0], [0], [1], [0, 0, 1, 1], [], []>} : vector<128x8xbf16>, vector<8x64xbf16>, vector<128x64xf32> -> vector<128x64xf32>
    %38 = arith.addf %30, %37 : vector<128x64xf32>
    %c0_21 = arith.constant 0 : index
    %c0_22 = arith.constant 0 : index
    %39 = vector.load %arg3[%c0_21, %c0_22] : memref<1x64xf32, #tpu.memory_space<vmem>>, vector<1x64xf32>
    %40 = vector.broadcast %39 : vector<1x64xf32> to vector<128x64xf32>
    %41 = arith.addf %38, %40 : vector<128x64xf32>
    %cst_23 = arith.constant 0.000000e+00 : f32
    %42 = vector.broadcast %cst_23 : f32 to vector<128x64xf32>
    %43 = arith.maximumf %41, %42 : vector<128x64xf32>
    %cst_24 = arith.constant 0.000000e+00 : f32
    %44 = vector.broadcast %cst_24 : f32 to vector<128x128xf32>
    %cst_25 = arith.constant 0.000000e+00 : f32
    %45 = vector.broadcast %cst_25 : f32 to vector<8x64xf32>
    %46 = vector.extract_strided_slice %43 {offsets = [0, 0], sizes = [120, 64], strides = [1, 1]} : vector<128x64xf32> to vector<120x64xf32>
    %47 = tpu.concatenate %45, %46 in 0 : vector<8x64xf32>, vector<120x64xf32> -> vector<128x64xf32>
    %48 = arith.truncf %47 : vector<128x64xf32> to vector<128x64xbf16>
    %c0_26 = arith.constant 0 : index
    %c0_27 = arith.constant 0 : index
    %c0_28 = arith.constant 0 : index
    %49 = vector.load %arg4[%c0_26, %c0_27, %c0_28] : memref<3x64x128xbf16, #tpu.memory_space<vmem>>, vector<1x64x128xbf16>
    %50 = vector.shape_cast %49 : vector<1x64x128xbf16> to vector<64x128xbf16>
    %cst_29 = arith.constant dense<0.000000e+00> : vector<128x128xf32>
    %51 = tpu.matmul %48, %50, %cst_29 {dimension_numbers = #tpu.dot_dimension_numbers<[1], [0], [0], [1], [0, 0, 1, 1], [], []>} : vector<128x64xbf16>, vector<64x128xbf16>, vector<128x128xf32> -> vector<128x128xf32>
    %52 = arith.addf %44, %51 : vector<128x128xf32>
    %53 = arith.truncf %43 : vector<128x64xf32> to vector<128x64xbf16>
    %c1_30 = arith.constant 1 : index
    %c0_31 = arith.constant 0 : index
    %c0_32 = arith.constant 0 : index
    %54 = vector.load %arg4[%c1_30, %c0_31, %c0_32] : memref<3x64x128xbf16, #tpu.memory_space<vmem>>, vector<1x64x128xbf16>
    %55 = vector.shape_cast %54 : vector<1x64x128xbf16> to vector<64x128xbf16>
    %cst_33 = arith.constant dense<0.000000e+00> : vector<128x128xf32>
    %56 = tpu.matmul %53, %55, %cst_33 {dimension_numbers = #tpu.dot_dimension_numbers<[1], [0], [0], [1], [0, 0, 1, 1], [], []>} : vector<128x64xbf16>, vector<64x128xbf16>, vector<128x128xf32> -> vector<128x128xf32>
    %57 = arith.addf %52, %56 : vector<128x128xf32>
    %cst_34 = arith.constant 0.000000e+00 : f32
    %58 = vector.broadcast %cst_34 : f32 to vector<8x64xf32>
    %59 = vector.extract_strided_slice %43 {offsets = [8, 0], sizes = [120, 64], strides = [1, 1]} : vector<128x64xf32> to vector<120x64xf32>
    %60 = tpu.concatenate %59, %58 in 0 : vector<120x64xf32>, vector<8x64xf32> -> vector<128x64xf32>
    %61 = arith.truncf %60 : vector<128x64xf32> to vector<128x64xbf16>
    %c2_35 = arith.constant 2 : index
    %c0_36 = arith.constant 0 : index
    %c0_37 = arith.constant 0 : index
    %62 = vector.load %arg4[%c2_35, %c0_36, %c0_37] : memref<3x64x128xbf16, #tpu.memory_space<vmem>>, vector<1x64x128xbf16>
    %63 = vector.shape_cast %62 : vector<1x64x128xbf16> to vector<64x128xbf16>
    %cst_38 = arith.constant dense<0.000000e+00> : vector<128x128xf32>
    %64 = tpu.matmul %61, %63, %cst_38 {dimension_numbers = #tpu.dot_dimension_numbers<[1], [0], [0], [1], [0, 0, 1, 1], [], []>} : vector<128x64xbf16>, vector<64x128xbf16>, vector<128x128xf32> -> vector<128x128xf32>
    %65 = arith.addf %57, %64 : vector<128x128xf32>
    %c0_39 = arith.constant 0 : index
    %c0_40 = arith.constant 0 : index
    %66 = vector.load %arg5[%c0_39, %c0_40] : memref<1x128xf32, #tpu.memory_space<vmem>>, vector<1x128xf32>
    %67 = vector.broadcast %66 : vector<1x128xf32> to vector<128x128xf32>
    %68 = arith.addf %65, %67 : vector<128x128xf32>
    %cst_41 = arith.constant 0.000000e+00 : f32
    %69 = vector.broadcast %cst_41 : f32 to vector<128x128xf32>
    %70 = arith.maximumf %68, %69 : vector<128x128xf32>
    %71 = arith.truncf %70 : vector<128x128xf32> to vector<128x128xbf16>
    %c0_42 = arith.constant 0 : index
    %c0_43 = arith.constant 0 : index
    %72 = vector.load %arg6[%c0_42, %c0_43] : memref<128x384xbf16, #tpu.memory_space<vmem>>, vector<128x384xbf16>
    %cst_44 = arith.constant dense<0.000000e+00> : vector<128x384xf32>
    %73 = tpu.matmul %71, %72, %cst_44 {dimension_numbers = #tpu.dot_dimension_numbers<[1], [0], [0], [1], [0, 0, 1, 1], [], []>} : vector<128x128xbf16>, vector<128x384xbf16>, vector<128x384xf32> -> vector<128x384xf32>
    %c0_45 = arith.constant 0 : index
    %c0_46 = arith.constant 0 : index
    %74 = vector.load %arg7[%c0_45, %c0_46] : memref<1x384xf32, #tpu.memory_space<vmem>>, vector<1x384xf32>
    %75 = vector.broadcast %74 : vector<1x384xf32> to vector<128x384xf32>
    %76 = arith.addf %73, %75 : vector<128x384xf32>
    %c0_47 = arith.constant 0 : index
    %c0_48 = arith.constant 0 : index
    %77 = vector.load %arg14[%c0_47, %c0_48] : memref<128x384xf32, #tpu.memory_space<vmem>>, vector<128x384xf32>
    tpu.vector_store %arg14[%c0_47, %c0_48], %76 {strides = array<i32>} : memref<128x384xf32, #tpu.memory_space<vmem>>, vector<128x384xf32>,
    %c0_49 = arith.constant 0 : index
    %c0_50 = arith.constant 0 : index
    %78 = vector.load %arg8[%c0_49, %c0_50] : memref<128x384xbf16, #tpu.memory_space<vmem>>, vector<128x384xbf16>
    %c0_51 = arith.constant 0 : index
    %c0_52 = arith.constant 0 : index
    %79 = vector.load %arg9[%c0_51, %c0_52] : memref<1x128xf32, #tpu.memory_space<vmem>>, vector<1x128xf32>
    %80 = tpu.iota {dimensions = array<i32: 1>} : vector<8x384xi32>
    %c128_i32 = arith.constant 128 : i32
    %c0_i32 = arith.constant 0 : i32
    %81 = arith.cmpi eq, %c128_i32, %c0_i32 : i32
    %c1_i32 = arith.constant 1 : i32
    %82 = arith.select %81, %c1_i32, %c128_i32 : i32
    %83 = vector.broadcast %82 : i32 to vector<8x384xi32>
    %84 = arith.remsi %80, %83 : vector<8x384xi32>
    %c0_i32_53 = arith.constant 0 : i32
    %85 = vector.broadcast %c0_i32_53 : i32 to vector<8x384xi32>
    %86 = arith.cmpi ne, %84, %85 : vector<8x384xi32>
    %c0_i32_54 = arith.constant 0 : i32
    %87 = vector.broadcast %c0_i32_54 : i32 to vector<8x384xi32>
    %88 = arith.cmpi slt, %84, %87 : vector<8x384xi32>
    %c0_i32_55 = arith.constant 0 : i32
    %89 = arith.cmpi slt, %82, %c0_i32_55 : i32
    %90 = vector.broadcast %89 : i1 to vector<8x384xi1>
    %91 = vector.broadcast %90 : vector<8x384xi1> to vector<8x384xi1>
    %92 = arith.xori %88, %91 : vector<8x384xi1>
    %93 = arith.andi %92, %86 : vector<8x384xi1>
    %94 = vector.broadcast %82 : i32 to vector<8x384xi32>
    %95 = arith.addi %84, %94 : vector<8x384xi32>
    %96 = arith.select %93, %95, %84 : vector<8x384xi1>, vector<8x384xi32>
    %c64_i32 = arith.constant 64 : i32
    %97 = vector.broadcast %c64_i32 : i32 to vector<8x384xi32>
    %98 = arith.cmpi slt, %96, %97 : vector<8x384xi32>
    %cst_56 = arith.constant 0.000000e+00 : f32
    %99 = vector.broadcast %cst_56 : f32 to vector<8x128xf32>
    %c0_57 = arith.constant 0 : index
    %c0_58 = arith.constant 0 : index
    %100 = vector.load %arg14[%c0_57, %c0_58] : memref<128x384xf32, #tpu.memory_space<vmem>>, vector<8x384xf32>
    %c120 = arith.constant 120 : index
    %c0_59 = arith.constant 0 : index
    %101 = vector.load %arg14[%c120, %c0_59] : memref<128x384xf32, #tpu.memory_space<vmem>>, vector<8x384xf32>
    %102 = arith.select %98, %100, %101 : vector<8x384xi1>, vector<8x384xf32>
    %103 = arith.truncf %99 : vector<8x128xf32> to vector<8x128xbf16>
    %cst_60 = arith.constant dense<0.000000e+00> : vector<8x384xf32>
    %104 = tpu.matmul %103, %78, %cst_60 {dimension_numbers = #tpu.dot_dimension_numbers<[1], [0], [0], [1], [0, 0, 1, 1], [], []>} : vector<8x128xbf16>, vector<128x384xbf16>, vector<8x384xf32> -> vector<8x384xf32>
    %105 = vector.extract_strided_slice %102 {offsets = [0, 0], sizes = [8, 256], strides = [1, 1]} : vector<8x384xf32> to vector<8x256xf32>
    %106 = vector.extract_strided_slice %104 {offsets = [0, 0], sizes = [8, 256], strides = [1, 1]} : vector<8x384xf32> to vector<8x256xf32>
    %107 = arith.addf %105, %106 : vector<8x256xf32>
    %108 = arith.negf %107 : vector<8x256xf32>
    %109 = math.exp %108 : vector<8x256xf32>
    %cst_61 = arith.constant 1.000000e+00 : f32
    %110 = vector.broadcast %cst_61 : f32 to vector<8x256xf32>
    %111 = arith.addf %110, %109 : vector<8x256xf32>
    %112 = arith.divf %110, %111 : vector<8x256xf32>
    %113 = vector.extract_strided_slice %112 {offsets = [0, 0], sizes = [8, 128], strides = [1, 1]} : vector<8x256xf32> to vector<8x128xf32>
    %114 = vector.extract_strided_slice %112 {offsets = [0, 128], sizes = [8, 128], strides = [1, 1]} : vector<8x256xf32> to vector<8x128xf32>
    %115 = vector.extract_strided_slice %102 {offsets = [0, 256], sizes = [8, 128], strides = [1, 1]} : vector<8x384xf32> to vector<8x128xf32>
    %116 = vector.extract_strided_slice %104 {offsets = [0, 256], sizes = [8, 128], strides = [1, 1]} : vector<8x384xf32> to vector<8x128xf32>
    %117 = vector.broadcast %79 : vector<1x128xf32> to vector<8x128xf32>
    %118 = arith.addf %116, %117 : vector<8x128xf32>
    %119 = arith.mulf %113, %118 : vector<8x128xf32>
    %120 = arith.addf %115, %119 : vector<8x128xf32>
    %121 = math.tanh %120 : vector<8x128xf32>
    %cst_62 = arith.constant 1.000000e+00 : f32
    %122 = vector.broadcast %cst_62 : f32 to vector<8x128xf32>
    %123 = arith.subf %122, %114 : vector<8x128xf32>
    %124 = arith.mulf %123, %121 : vector<8x128xf32>
    %125 = arith.mulf %114, %99 : vector<8x128xf32>
    %126 = arith.addf %124, %125 : vector<8x128xf32>
    %c8 = arith.constant 8 : index
    %c0_63 = arith.constant 0 : index
    %127 = vector.load %arg14[%c8, %c0_63] : memref<128x384xf32, #tpu.memory_space<vmem>>, vector<8x384xf32>
    %c112 = arith.constant 112 : index
    %c0_64 = arith.constant 0 : index
    %128 = vector.load %arg14[%c112, %c0_64] : memref<128x384xf32, #tpu.memory_space<vmem>>, vector<8x384xf32>
    %129 = arith.select %98, %127, %128 : vector<8x384xi1>, vector<8x384xf32>
    %130 = arith.truncf %126 : vector<8x128xf32> to vector<8x128xbf16>
    %cst_65 = arith.constant dense<0.000000e+00> : vector<8x384xf32>
    %131 = tpu.matmul %130, %78, %cst_65 {dimension_numbers = #tpu.dot_dimension_numbers<[1], [0], [0], [1], [0, 0, 1, 1], [], []>} : vector<8x128xbf16>, vector<128x384xbf16>, vector<8x384xf32> -> vector<8x384xf32>
    %132 = vector.extract_strided_slice %129 {offsets = [0, 0], sizes = [8, 256], strides = [1, 1]} : vector<8x384xf32> to vector<8x256xf32>
    %133 = vector.extract_strided_slice %131 {offsets = [0, 0], sizes = [8, 256], strides = [1, 1]} : vector<8x384xf32> to vector<8x256xf32>
    %134 = arith.addf %132, %133 : vector<8x256xf32>
    %135 = arith.negf %134 : vector<8x256xf32>
    %136 = math.exp %135 : vector<8x256xf32>
    %cst_66 = arith.constant 1.000000e+00 : f32
    %137 = vector.broadcast %cst_66 : f32 to vector<8x256xf32>
    %138 = arith.addf %137, %136 : vector<8x256xf32>
    %139 = arith.divf %137, %138 : vector<8x256xf32>
    %140 = vector.extract_strided_slice %139 {offsets = [0, 0], sizes = [8, 128], strides = [1, 1]} : vector<8x256xf32> to vector<8x128xf32>
    %141 = vector.extract_strided_slice %139 {offsets = [0, 128], sizes = [8, 128], strides = [1, 1]} : vector<8x256xf32> to vector<8x128xf32>
    %142 = vector.extract_strided_slice %129 {offsets = [0, 256], sizes = [8, 128], strides = [1, 1]} : vector<8x384xf32> to vector<8x128xf32>
    %143 = vector.extract_strided_slice %131 {offsets = [0, 256], sizes = [8, 128], strides = [1, 1]} : vector<8x384xf32> to vector<8x128xf32>
    %144 = vector.broadcast %79 : vector<1x128xf32> to vector<8x128xf32>
    %145 = arith.addf %143, %144 : vector<8x128xf32>
    %146 = arith.mulf %140, %145 : vector<8x128xf32>
    %147 = arith.addf %142, %146 : vector<8x128xf32>
    %148 = math.tanh %147 : vector<8x128xf32>
    %cst_67 = arith.constant 1.000000e+00 : f32
    %149 = vector.broadcast %cst_67 : f32 to vector<8x128xf32>
    %150 = arith.subf %149, %141 : vector<8x128xf32>
    %151 = arith.mulf %150, %148 : vector<8x128xf32>
    %152 = arith.mulf %141, %126 : vector<8x128xf32>
    %153 = arith.addf %151, %152 : vector<8x128xf32>
    %c16 = arith.constant 16 : index
    %c0_68 = arith.constant 0 : index
    %154 = vector.load %arg14[%c16, %c0_68] : memref<128x384xf32, #tpu.memory_space<vmem>>, vector<8x384xf32>
    %c104 = arith.constant 104 : index
    %c0_69 = arith.constant 0 : index
    %155 = vector.load %arg14[%c104, %c0_69] : memref<128x384xf32, #tpu.memory_space<vmem>>, vector<8x384xf32>
    %156 = arith.select %98, %154, %155 : vector<8x384xi1>, vector<8x384xf32>
    %157 = arith.truncf %153 : vector<8x128xf32> to vector<8x128xbf16>
    %cst_70 = arith.constant dense<0.000000e+00> : vector<8x384xf32>
    %158 = tpu.matmul %157, %78, %cst_70 {dimension_numbers = #tpu.dot_dimension_numbers<[1], [0], [0], [1], [0, 0, 1, 1], [], []>} : vector<8x128xbf16>, vector<128x384xbf16>, vector<8x384xf32> -> vector<8x384xf32>
    %159 = vector.extract_strided_slice %156 {offsets = [0, 0], sizes = [8, 256], strides = [1, 1]} : vector<8x384xf32> to vector<8x256xf32>
    %160 = vector.extract_strided_slice %158 {offsets = [0, 0], sizes = [8, 256], strides = [1, 1]} : vector<8x384xf32> to vector<8x256xf32>
    %161 = arith.addf %159, %160 : vector<8x256xf32>
    %162 = arith.negf %161 : vector<8x256xf32>
    %163 = math.exp %162 : vector<8x256xf32>
    %cst_71 = arith.constant 1.000000e+00 : f32
    %164 = vector.broadcast %cst_71 : f32 to vector<8x256xf32>
    %165 = arith.addf %164, %163 : vector<8x256xf32>
    %166 = arith.divf %164, %165 : vector<8x256xf32>
    %167 = vector.extract_strided_slice %166 {offsets = [0, 0], sizes = [8, 128], strides = [1, 1]} : vector<8x256xf32> to vector<8x128xf32>
    %168 = vector.extract_strided_slice %166 {offsets = [0, 128], sizes = [8, 128], strides = [1, 1]} : vector<8x256xf32> to vector<8x128xf32>
    %169 = vector.extract_strided_slice %156 {offsets = [0, 256], sizes = [8, 128], strides = [1, 1]} : vector<8x384xf32> to vector<8x128xf32>
    %170 = vector.extract_strided_slice %158 {offsets = [0, 256], sizes = [8, 128], strides = [1, 1]} : vector<8x384xf32> to vector<8x128xf32>
    %171 = vector.broadcast %79 : vector<1x128xf32> to vector<8x128xf32>
    %172 = arith.addf %170, %171 : vector<8x128xf32>
    %173 = arith.mulf %167, %172 : vector<8x128xf32>
    %174 = arith.addf %169, %173 : vector<8x128xf32>
    %175 = math.tanh %174 : vector<8x128xf32>
    %cst_72 = arith.constant 1.000000e+00 : f32
    %176 = vector.broadcast %cst_72 : f32 to vector<8x128xf32>
    %177 = arith.subf %176, %168 : vector<8x128xf32>
    %178 = arith.mulf %177, %175 : vector<8x128xf32>
    %179 = arith.mulf %168, %153 : vector<8x128xf32>
    %180 = arith.addf %178, %179 : vector<8x128xf32>
    %c24 = arith.constant 24 : index
    %c0_73 = arith.constant 0 : index
    %181 = vector.load %arg14[%c24, %c0_73] : memref<128x384xf32, #tpu.memory_space<vmem>>, vector<8x384xf32>
    %c96 = arith.constant 96 : index
    %c0_74 = arith.constant 0 : index
    %182 = vector.load %arg14[%c96, %c0_74] : memref<128x384xf32, #tpu.memory_space<vmem>>, vector<8x384xf32>
    %183 = arith.select %98, %181, %182 : vector<8x384xi1>, vector<8x384xf32>
    %184 = arith.truncf %180 : vector<8x128xf32> to vector<8x128xbf16>
    %cst_75 = arith.constant dense<0.000000e+00> : vector<8x384xf32>
    %185 = tpu.matmul %184, %78, %cst_75 {dimension_numbers = #tpu.dot_dimension_numbers<[1], [0], [0], [1], [0, 0, 1, 1], [], []>} : vector<8x128xbf16>, vector<128x384xbf16>, vector<8x384xf32> -> vector<8x384xf32>
    %186 = vector.extract_strided_slice %183 {offsets = [0, 0], sizes = [8, 256], strides = [1, 1]} : vector<8x384xf32> to vector<8x256xf32>
    %187 = vector.extract_strided_slice %185 {offsets = [0, 0], sizes = [8, 256], strides = [1, 1]} : vector<8x384xf32> to vector<8x256xf32>
    %188 = arith.addf %186, %187 : vector<8x256xf32>
    %189 = arith.negf %188 : vector<8x256xf32>
    %190 = math.exp %189 : vector<8x256xf32>
    %cst_76 = arith.constant 1.000000e+00 : f32
    %191 = vector.broadcast %cst_76 : f32 to vector<8x256xf32>
    %192 = arith.addf %191, %190 : vector<8x256xf32>
    %193 = arith.divf %191, %192 : vector<8x256xf32>
    %194 = vector.extract_strided_slice %193 {offsets = [0, 0], sizes = [8, 128], strides = [1, 1]} : vector<8x256xf32> to vector<8x128xf32>
    %195 = vector.extract_strided_slice %193 {offsets = [0, 128], sizes = [8, 128], strides = [1, 1]} : vector<8x256xf32> to vector<8x128xf32>
    %196 = vector.extract_strided_slice %183 {offsets = [0, 256], sizes = [8, 128], strides = [1, 1]} : vector<8x384xf32> to vector<8x128xf32>
    %197 = vector.extract_strided_slice %185 {offsets = [0, 256], sizes = [8, 128], strides = [1, 1]} : vector<8x384xf32> to vector<8x128xf32>
    %198 = vector.broadcast %79 : vector<1x128xf32> to vector<8x128xf32>
    %199 = arith.addf %197, %198 : vector<8x128xf32>
    %200 = arith.mulf %194, %199 : vector<8x128xf32>
    %201 = arith.addf %196, %200 : vector<8x128xf32>
    %202 = math.tanh %201 : vector<8x128xf32>
    %cst_77 = arith.constant 1.000000e+00 : f32
    %203 = vector.broadcast %cst_77 : f32 to vector<8x128xf32>
    %204 = arith.subf %203, %195 : vector<8x128xf32>
    %205 = arith.mulf %204, %202 : vector<8x128xf32>
    %206 = arith.mulf %195, %180 : vector<8x128xf32>
    %207 = arith.addf %205, %206 : vector<8x128xf32>
    %c32 = arith.constant 32 : index
    %c0_78 = arith.constant 0 : index
    %208 = vector.load %arg14[%c32, %c0_78] : memref<128x384xf32, #tpu.memory_space<vmem>>, vector<8x384xf32>
    %c88 = arith.constant 88 : index
    %c0_79 = arith.constant 0 : index
    %209 = vector.load %arg14[%c88, %c0_79] : memref<128x384xf32, #tpu.memory_space<vmem>>, vector<8x384xf32>
    %210 = arith.select %98, %208, %209 : vector<8x384xi1>, vector<8x384xf32>
    %211 = arith.truncf %207 : vector<8x128xf32> to vector<8x128xbf16>
    %cst_80 = arith.constant dense<0.000000e+00> : vector<8x384xf32>
    %212 = tpu.matmul %211, %78, %cst_80 {dimension_numbers = #tpu.dot_dimension_numbers<[1], [0], [0], [1], [0, 0, 1, 1], [], []>} : vector<8x128xbf16>, vector<128x384xbf16>, vector<8x384xf32> -> vector<8x384xf32>
    %213 = vector.extract_strided_slice %210 {offsets = [0, 0], sizes = [8, 256], strides = [1, 1]} : vector<8x384xf32> to vector<8x256xf32>
    %214 = vector.extract_strided_slice %212 {offsets = [0, 0], sizes = [8, 256], strides = [1, 1]} : vector<8x384xf32> to vector<8x256xf32>
    %215 = arith.addf %213, %214 : vector<8x256xf32>
    %216 = arith.negf %215 : vector<8x256xf32>
    %217 = math.exp %216 : vector<8x256xf32>
    %cst_81 = arith.constant 1.000000e+00 : f32
    %218 = vector.broadcast %cst_81 : f32 to vector<8x256xf32>
    %219 = arith.addf %218, %217 : vector<8x256xf32>
    %220 = arith.divf %218, %219 : vector<8x256xf32>
    %221 = vector.extract_strided_slice %220 {offsets = [0, 0], sizes = [8, 128], strides = [1, 1]} : vector<8x256xf32> to vector<8x128xf32>
    %222 = vector.extract_strided_slice %220 {offsets = [0, 128], sizes = [8, 128], strides = [1, 1]} : vector<8x256xf32> to vector<8x128xf32>
    %223 = vector.extract_strided_slice %210 {offsets = [0, 256], sizes = [8, 128], strides = [1, 1]} : vector<8x384xf32> to vector<8x128xf32>
    %224 = vector.extract_strided_slice %212 {offsets = [0, 256], sizes = [8, 128], strides = [1, 1]} : vector<8x384xf32> to vector<8x128xf32>
    %225 = vector.broadcast %79 : vector<1x128xf32> to vector<8x128xf32>
    %226 = arith.addf %224, %225 : vector<8x128xf32>
    %227 = arith.mulf %221, %226 : vector<8x128xf32>
    %228 = arith.addf %223, %227 : vector<8x128xf32>
    %229 = math.tanh %228 : vector<8x128xf32>
    %cst_82 = arith.constant 1.000000e+00 : f32
    %230 = vector.broadcast %cst_82 : f32 to vector<8x128xf32>
    %231 = arith.subf %230, %222 : vector<8x128xf32>
    %232 = arith.mulf %231, %229 : vector<8x128xf32>
    %233 = arith.mulf %222, %207 : vector<8x128xf32>
    %234 = arith.addf %232, %233 : vector<8x128xf32>
    %c40 = arith.constant 40 : index
    %c0_83 = arith.constant 0 : index
    %235 = vector.load %arg14[%c40, %c0_83] : memref<128x384xf32, #tpu.memory_space<vmem>>, vector<8x384xf32>
    %c80 = arith.constant 80 : index
    %c0_84 = arith.constant 0 : index
    %236 = vector.load %arg14[%c80, %c0_84] : memref<128x384xf32, #tpu.memory_space<vmem>>, vector<8x384xf32>
    %237 = arith.select %98, %235, %236 : vector<8x384xi1>, vector<8x384xf32>
    %238 = arith.truncf %234 : vector<8x128xf32> to vector<8x128xbf16>
    %cst_85 = arith.constant dense<0.000000e+00> : vector<8x384xf32>
    %239 = tpu.matmul %238, %78, %cst_85 {dimension_numbers = #tpu.dot_dimension_numbers<[1], [0], [0], [1], [0, 0, 1, 1], [], []>} : vector<8x128xbf16>, vector<128x384xbf16>, vector<8x384xf32> -> vector<8x384xf32>
    %240 = vector.extract_strided_slice %237 {offsets = [0, 0], sizes = [8, 256], strides = [1, 1]} : vector<8x384xf32> to vector<8x256xf32>
    %241 = vector.extract_strided_slice %239 {offsets = [0, 0], sizes = [8, 256], strides = [1, 1]} : vector<8x384xf32> to vector<8x256xf32>
    %242 = arith.addf %240, %241 : vector<8x256xf32>
    %243 = arith.negf %242 : vector<8x256xf32>
    %244 = math.exp %243 : vector<8x256xf32>
    %cst_86 = arith.constant 1.000000e+00 : f32
    %245 = vector.broadcast %cst_86 : f32 to vector<8x256xf32>
    %246 = arith.addf %245, %244 : vector<8x256xf32>
    %247 = arith.divf %245, %246 : vector<8x256xf32>
    %248 = vector.extract_strided_slice %247 {offsets = [0, 0], sizes = [8, 128], strides = [1, 1]} : vector<8x256xf32> to vector<8x128xf32>
    %249 = vector.extract_strided_slice %247 {offsets = [0, 128], sizes = [8, 128], strides = [1, 1]} : vector<8x256xf32> to vector<8x128xf32>
    %250 = vector.extract_strided_slice %237 {offsets = [0, 256], sizes = [8, 128], strides = [1, 1]} : vector<8x384xf32> to vector<8x128xf32>
    %251 = vector.extract_strided_slice %239 {offsets = [0, 256], sizes = [8, 128], strides = [1, 1]} : vector<8x384xf32> to vector<8x128xf32>
    %252 = vector.broadcast %79 : vector<1x128xf32> to vector<8x128xf32>
    %253 = arith.addf %251, %252 : vector<8x128xf32>
    %254 = arith.mulf %248, %253 : vector<8x128xf32>
    %255 = arith.addf %250, %254 : vector<8x128xf32>
    %256 = math.tanh %255 : vector<8x128xf32>
    %cst_87 = arith.constant 1.000000e+00 : f32
    %257 = vector.broadcast %cst_87 : f32 to vector<8x128xf32>
    %258 = arith.subf %257, %249 : vector<8x128xf32>
    %259 = arith.mulf %258, %256 : vector<8x128xf32>
    %260 = arith.mulf %249, %234 : vector<8x128xf32>
    %261 = arith.addf %259, %260 : vector<8x128xf32>
    %c48 = arith.constant 48 : index
    %c0_88 = arith.constant 0 : index
    %262 = vector.load %arg14[%c48, %c0_88] : memref<128x384xf32, #tpu.memory_space<vmem>>, vector<8x384xf32>
    %c72 = arith.constant 72 : index
    %c0_89 = arith.constant 0 : index
    %263 = vector.load %arg14[%c72, %c0_89] : memref<128x384xf32, #tpu.memory_space<vmem>>, vector<8x384xf32>
    %264 = arith.select %98, %262, %263 : vector<8x384xi1>, vector<8x384xf32>
    %265 = arith.truncf %261 : vector<8x128xf32> to vector<8x128xbf16>
    %cst_90 = arith.constant dense<0.000000e+00> : vector<8x384xf32>
    %266 = tpu.matmul %265, %78, %cst_90 {dimension_numbers = #tpu.dot_dimension_numbers<[1], [0], [0], [1], [0, 0, 1, 1], [], []>} : vector<8x128xbf16>, vector<128x384xbf16>, vector<8x384xf32> -> vector<8x384xf32>
    %267 = vector.extract_strided_slice %264 {offsets = [0, 0], sizes = [8, 256], strides = [1, 1]} : vector<8x384xf32> to vector<8x256xf32>
    %268 = vector.extract_strided_slice %266 {offsets = [0, 0], sizes = [8, 256], strides = [1, 1]} : vector<8x384xf32> to vector<8x256xf32>
    %269 = arith.addf %267, %268 : vector<8x256xf32>
    %270 = arith.negf %269 : vector<8x256xf32>
    %271 = math.exp %270 : vector<8x256xf32>
    %cst_91 = arith.constant 1.000000e+00 : f32
    %272 = vector.broadcast %cst_91 : f32 to vector<8x256xf32>
    %273 = arith.addf %272, %271 : vector<8x256xf32>
    %274 = arith.divf %272, %273 : vector<8x256xf32>
    %275 = vector.extract_strided_slice %274 {offsets = [0, 0], sizes = [8, 128], strides = [1, 1]} : vector<8x256xf32> to vector<8x128xf32>
    %276 = vector.extract_strided_slice %274 {offsets = [0, 128], sizes = [8, 128], strides = [1, 1]} : vector<8x256xf32> to vector<8x128xf32>
    %277 = vector.extract_strided_slice %264 {offsets = [0, 256], sizes = [8, 128], strides = [1, 1]} : vector<8x384xf32> to vector<8x128xf32>
    %278 = vector.extract_strided_slice %266 {offsets = [0, 256], sizes = [8, 128], strides = [1, 1]} : vector<8x384xf32> to vector<8x128xf32>
    %279 = vector.broadcast %79 : vector<1x128xf32> to vector<8x128xf32>
    %280 = arith.addf %278, %279 : vector<8x128xf32>
    %281 = arith.mulf %275, %280 : vector<8x128xf32>
    %282 = arith.addf %277, %281 : vector<8x128xf32>
    %283 = math.tanh %282 : vector<8x128xf32>
    %cst_92 = arith.constant 1.000000e+00 : f32
    %284 = vector.broadcast %cst_92 : f32 to vector<8x128xf32>
    %285 = arith.subf %284, %276 : vector<8x128xf32>
    %286 = arith.mulf %285, %283 : vector<8x128xf32>
    %287 = arith.mulf %276, %261 : vector<8x128xf32>
    %288 = arith.addf %286, %287 : vector<8x128xf32>
    %c56 = arith.constant 56 : index
    %c0_93 = arith.constant 0 : index
    %289 = vector.load %arg14[%c56, %c0_93] : memref<128x384xf32, #tpu.memory_space<vmem>>, vector<8x384xf32>
    %c64 = arith.constant 64 : index
    %c0_94 = arith.constant 0 : index
    %290 = vector.load %arg14[%c64, %c0_94] : memref<128x384xf32, #tpu.memory_space<vmem>>, vector<8x384xf32>
    %291 = arith.select %98, %289, %290 : vector<8x384xi1>, vector<8x384xf32>
    %292 = arith.truncf %288 : vector<8x128xf32> to vector<8x128xbf16>
    %cst_95 = arith.constant dense<0.000000e+00> : vector<8x384xf32>
    %293 = tpu.matmul %292, %78, %cst_95 {dimension_numbers = #tpu.dot_dimension_numbers<[1], [0], [0], [1], [0, 0, 1, 1], [], []>} : vector<8x128xbf16>, vector<128x384xbf16>, vector<8x384xf32> -> vector<8x384xf32>
    %294 = vector.extract_strided_slice %291 {offsets = [0, 0], sizes = [8, 256], strides = [1, 1]} : vector<8x384xf32> to vector<8x256xf32>
    %295 = vector.extract_strided_slice %293 {offsets = [0, 0], sizes = [8, 256], strides = [1, 1]} : vector<8x384xf32> to vector<8x256xf32>
    %296 = arith.addf %294, %295 : vector<8x256xf32>
    %297 = arith.negf %296 : vector<8x256xf32>
    %298 = math.exp %297 : vector<8x256xf32>
    %cst_96 = arith.constant 1.000000e+00 : f32
    %299 = vector.broadcast %cst_96 : f32 to vector<8x256xf32>
    %300 = arith.addf %299, %298 : vector<8x256xf32>
    %301 = arith.divf %299, %300 : vector<8x256xf32>
    %302 = vector.extract_strided_slice %301 {offsets = [0, 0], sizes = [8, 128], strides = [1, 1]} : vector<8x256xf32> to vector<8x128xf32>
    %303 = vector.extract_strided_slice %301 {offsets = [0, 128], sizes = [8, 128], strides = [1, 1]} : vector<8x256xf32> to vector<8x128xf32>
    %304 = vector.extract_strided_slice %291 {offsets = [0, 256], sizes = [8, 128], strides = [1, 1]} : vector<8x384xf32> to vector<8x128xf32>
    %305 = vector.extract_strided_slice %293 {offsets = [0, 256], sizes = [8, 128], strides = [1, 1]} : vector<8x384xf32> to vector<8x128xf32>
    %306 = vector.broadcast %79 : vector<1x128xf32> to vector<8x128xf32>
    %307 = arith.addf %305, %306 : vector<8x128xf32>
    %308 = arith.mulf %302, %307 : vector<8x128xf32>
    %309 = arith.addf %304, %308 : vector<8x128xf32>
    %310 = math.tanh %309 : vector<8x128xf32>
    %cst_97 = arith.constant 1.000000e+00 : f32
    %311 = vector.broadcast %cst_97 : f32 to vector<8x128xf32>
    %312 = arith.subf %311, %303 : vector<8x128xf32>
    %313 = arith.mulf %312, %310 : vector<8x128xf32>
    %314 = arith.mulf %303, %288 : vector<8x128xf32>
    %315 = arith.addf %313, %314 : vector<8x128xf32>
    %c64_98 = arith.constant 64 : index
    %c0_99 = arith.constant 0 : index
    %316 = vector.load %arg14[%c64_98, %c0_99] : memref<128x384xf32, #tpu.memory_space<vmem>>, vector<8x384xf32>
    %c56_100 = arith.constant 56 : index
    %c0_101 = arith.constant 0 : index
    %317 = vector.load %arg14[%c56_100, %c0_101] : memref<128x384xf32, #tpu.memory_space<vmem>>, vector<8x384xf32>
    %318 = arith.select %98, %316, %317 : vector<8x384xi1>, vector<8x384xf32>
    %319 = arith.truncf %315 : vector<8x128xf32> to vector<8x128xbf16>
    %cst_102 = arith.constant dense<0.000000e+00> : vector<8x384xf32>
    %320 = tpu.matmul %319, %78, %cst_102 {dimension_numbers = #tpu.dot_dimension_numbers<[1], [0], [0], [1], [0, 0, 1, 1], [], []>} : vector<8x128xbf16>, vector<128x384xbf16>, vector<8x384xf32> -> vector<8x384xf32>
    %321 = vector.extract_strided_slice %318 {offsets = [0, 0], sizes = [8, 256], strides = [1, 1]} : vector<8x384xf32> to vector<8x256xf32>
    %322 = vector.extract_strided_slice %320 {offsets = [0, 0], sizes = [8, 256], strides = [1, 1]} : vector<8x384xf32> to vector<8x256xf32>
    %323 = arith.addf %321, %322 : vector<8x256xf32>
    %324 = arith.negf %323 : vector<8x256xf32>
    %325 = math.exp %324 : vector<8x256xf32>
    %cst_103 = arith.constant 1.000000e+00 : f32
    %326 = vector.broadcast %cst_103 : f32 to vector<8x256xf32>
    %327 = arith.addf %326, %325 : vector<8x256xf32>
    %328 = arith.divf %326, %327 : vector<8x256xf32>
    %329 = vector.extract_strided_slice %328 {offsets = [0, 0], sizes = [8, 128], strides = [1, 1]} : vector<8x256xf32> to vector<8x128xf32>
    %330 = vector.extract_strided_slice %328 {offsets = [0, 128], sizes = [8, 128], strides = [1, 1]} : vector<8x256xf32> to vector<8x128xf32>
    %331 = vector.extract_strided_slice %318 {offsets = [0, 256], sizes = [8, 128], strides = [1, 1]} : vector<8x384xf32> to vector<8x128xf32>
    %332 = vector.extract_strided_slice %320 {offsets = [0, 256], sizes = [8, 128], strides = [1, 1]} : vector<8x384xf32> to vector<8x128xf32>
    %333 = vector.broadcast %79 : vector<1x128xf32> to vector<8x128xf32>
    %334 = arith.addf %332, %333 : vector<8x128xf32>
    %335 = arith.mulf %329, %334 : vector<8x128xf32>
    %336 = arith.addf %331, %335 : vector<8x128xf32>
    %337 = math.tanh %336 : vector<8x128xf32>
    %cst_104 = arith.constant 1.000000e+00 : f32
    %338 = vector.broadcast %cst_104 : f32 to vector<8x128xf32>
    %339 = arith.subf %338, %330 : vector<8x128xf32>
    %340 = arith.mulf %339, %337 : vector<8x128xf32>
    %341 = arith.mulf %330, %315 : vector<8x128xf32>
    %342 = arith.addf %340, %341 : vector<8x128xf32>
    %c72_105 = arith.constant 72 : index
    %c0_106 = arith.constant 0 : index
    %343 = vector.load %arg14[%c72_105, %c0_106] : memref<128x384xf32, #tpu.memory_space<vmem>>, vector<8x384xf32>
    %c48_107 = arith.constant 48 : index
    %c0_108 = arith.constant 0 : index
    %344 = vector.load %arg14[%c48_107, %c0_108] : memref<128x384xf32, #tpu.memory_space<vmem>>, vector<8x384xf32>
    %345 = arith.select %98, %343, %344 : vector<8x384xi1>, vector<8x384xf32>
    %346 = arith.truncf %342 : vector<8x128xf32> to vector<8x128xbf16>
    %cst_109 = arith.constant dense<0.000000e+00> : vector<8x384xf32>
    %347 = tpu.matmul %346, %78, %cst_109 {dimension_numbers = #tpu.dot_dimension_numbers<[1], [0], [0], [1], [0, 0, 1, 1], [], []>} : vector<8x128xbf16>, vector<128x384xbf16>, vector<8x384xf32> -> vector<8x384xf32>
    %348 = vector.extract_strided_slice %345 {offsets = [0, 0], sizes = [8, 256], strides = [1, 1]} : vector<8x384xf32> to vector<8x256xf32>
    %349 = vector.extract_strided_slice %347 {offsets = [0, 0], sizes = [8, 256], strides = [1, 1]} : vector<8x384xf32> to vector<8x256xf32>
    %350 = arith.addf %348, %349 : vector<8x256xf32>
    %351 = arith.negf %350 : vector<8x256xf32>
    %352 = math.exp %351 : vector<8x256xf32>
    %cst_110 = arith.constant 1.000000e+00 : f32
    %353 = vector.broadcast %cst_110 : f32 to vector<8x256xf32>
    %354 = arith.addf %353, %352 : vector<8x256xf32>
    %355 = arith.divf %353, %354 : vector<8x256xf32>
    %356 = vector.extract_strided_slice %355 {offsets = [0, 0], sizes = [8, 128], strides = [1, 1]} : vector<8x256xf32> to vector<8x128xf32>
    %357 = vector.extract_strided_slice %355 {offsets = [0, 128], sizes = [8, 128], strides = [1, 1]} : vector<8x256xf32> to vector<8x128xf32>
    %358 = vector.extract_strided_slice %345 {offsets = [0, 256], sizes = [8, 128], strides = [1, 1]} : vector<8x384xf32> to vector<8x128xf32>
    %359 = vector.extract_strided_slice %347 {offsets = [0, 256], sizes = [8, 128], strides = [1, 1]} : vector<8x384xf32> to vector<8x128xf32>
    %360 = vector.broadcast %79 : vector<1x128xf32> to vector<8x128xf32>
    %361 = arith.addf %359, %360 : vector<8x128xf32>
    %362 = arith.mulf %356, %361 : vector<8x128xf32>
    %363 = arith.addf %358, %362 : vector<8x128xf32>
    %364 = math.tanh %363 : vector<8x128xf32>
    %cst_111 = arith.constant 1.000000e+00 : f32
    %365 = vector.broadcast %cst_111 : f32 to vector<8x128xf32>
    %366 = arith.subf %365, %357 : vector<8x128xf32>
    %367 = arith.mulf %366, %364 : vector<8x128xf32>
    %368 = arith.mulf %357, %342 : vector<8x128xf32>
    %369 = arith.addf %367, %368 : vector<8x128xf32>
    %c80_112 = arith.constant 80 : index
    %c0_113 = arith.constant 0 : index
    %370 = vector.load %arg14[%c80_112, %c0_113] : memref<128x384xf32, #tpu.memory_space<vmem>>, vector<8x384xf32>
    %c40_114 = arith.constant 40 : index
    %c0_115 = arith.constant 0 : index
    %371 = vector.load %arg14[%c40_114, %c0_115] : memref<128x384xf32, #tpu.memory_space<vmem>>, vector<8x384xf32>
    %372 = arith.select %98, %370, %371 : vector<8x384xi1>, vector<8x384xf32>
    %373 = arith.truncf %369 : vector<8x128xf32> to vector<8x128xbf16>
    %cst_116 = arith.constant dense<0.000000e+00> : vector<8x384xf32>
    %374 = tpu.matmul %373, %78, %cst_116 {dimension_numbers = #tpu.dot_dimension_numbers<[1], [0], [0], [1], [0, 0, 1, 1], [], []>} : vector<8x128xbf16>, vector<128x384xbf16>, vector<8x384xf32> -> vector<8x384xf32>
    %375 = vector.extract_strided_slice %372 {offsets = [0, 0], sizes = [8, 256], strides = [1, 1]} : vector<8x384xf32> to vector<8x256xf32>
    %376 = vector.extract_strided_slice %374 {offsets = [0, 0], sizes = [8, 256], strides = [1, 1]} : vector<8x384xf32> to vector<8x256xf32>
    %377 = arith.addf %375, %376 : vector<8x256xf32>
    %378 = arith.negf %377 : vector<8x256xf32>
    %379 = math.exp %378 : vector<8x256xf32>
    %cst_117 = arith.constant 1.000000e+00 : f32
    %380 = vector.broadcast %cst_117 : f32 to vector<8x256xf32>
    %381 = arith.addf %380, %379 : vector<8x256xf32>
    %382 = arith.divf %380, %381 : vector<8x256xf32>
    %383 = vector.extract_strided_slice %382 {offsets = [0, 0], sizes = [8, 128], strides = [1, 1]} : vector<8x256xf32> to vector<8x128xf32>
    %384 = vector.extract_strided_slice %382 {offsets = [0, 128], sizes = [8, 128], strides = [1, 1]} : vector<8x256xf32> to vector<8x128xf32>
    %385 = vector.extract_strided_slice %372 {offsets = [0, 256], sizes = [8, 128], strides = [1, 1]} : vector<8x384xf32> to vector<8x128xf32>
    %386 = vector.extract_strided_slice %374 {offsets = [0, 256], sizes = [8, 128], strides = [1, 1]} : vector<8x384xf32> to vector<8x128xf32>
    %387 = vector.broadcast %79 : vector<1x128xf32> to vector<8x128xf32>
    %388 = arith.addf %386, %387 : vector<8x128xf32>
    %389 = arith.mulf %383, %388 : vector<8x128xf32>
    %390 = arith.addf %385, %389 : vector<8x128xf32>
    %391 = math.tanh %390 : vector<8x128xf32>
    %cst_118 = arith.constant 1.000000e+00 : f32
    %392 = vector.broadcast %cst_118 : f32 to vector<8x128xf32>
    %393 = arith.subf %392, %384 : vector<8x128xf32>
    %394 = arith.mulf %393, %391 : vector<8x128xf32>
    %395 = arith.mulf %384, %369 : vector<8x128xf32>
    %396 = arith.addf %394, %395 : vector<8x128xf32>
    %c88_119 = arith.constant 88 : index
    %c0_120 = arith.constant 0 : index
    %397 = vector.load %arg14[%c88_119, %c0_120] : memref<128x384xf32, #tpu.memory_space<vmem>>, vector<8x384xf32>
    %c32_121 = arith.constant 32 : index
    %c0_122 = arith.constant 0 : index
    %398 = vector.load %arg14[%c32_121, %c0_122] : memref<128x384xf32, #tpu.memory_space<vmem>>, vector<8x384xf32>
    %399 = arith.select %98, %397, %398 : vector<8x384xi1>, vector<8x384xf32>
    %400 = arith.truncf %396 : vector<8x128xf32> to vector<8x128xbf16>
    %cst_123 = arith.constant dense<0.000000e+00> : vector<8x384xf32>
    %401 = tpu.matmul %400, %78, %cst_123 {dimension_numbers = #tpu.dot_dimension_numbers<[1], [0], [0], [1], [0, 0, 1, 1], [], []>} : vector<8x128xbf16>, vector<128x384xbf16>, vector<8x384xf32> -> vector<8x384xf32>
    %402 = vector.extract_strided_slice %399 {offsets = [0, 0], sizes = [8, 256], strides = [1, 1]} : vector<8x384xf32> to vector<8x256xf32>
    %403 = vector.extract_strided_slice %401 {offsets = [0, 0], sizes = [8, 256], strides = [1, 1]} : vector<8x384xf32> to vector<8x256xf32>
    %404 = arith.addf %402, %403 : vector<8x256xf32>
    %405 = arith.negf %404 : vector<8x256xf32>
    %406 = math.exp %405 : vector<8x256xf32>
    %cst_124 = arith.constant 1.000000e+00 : f32
    %407 = vector.broadcast %cst_124 : f32 to vector<8x256xf32>
    %408 = arith.addf %407, %406 : vector<8x256xf32>
    %409 = arith.divf %407, %408 : vector<8x256xf32>
    %410 = vector.extract_strided_slice %409 {offsets = [0, 0], sizes = [8, 128], strides = [1, 1]} : vector<8x256xf32> to vector<8x128xf32>
    %411 = vector.extract_strided_slice %409 {offsets = [0, 128], sizes = [8, 128], strides = [1, 1]} : vector<8x256xf32> to vector<8x128xf32>
    %412 = vector.extract_strided_slice %399 {offsets = [0, 256], sizes = [8, 128], strides = [1, 1]} : vector<8x384xf32> to vector<8x128xf32>
    %413 = vector.extract_strided_slice %401 {offsets = [0, 256], sizes = [8, 128], strides = [1, 1]} : vector<8x384xf32> to vector<8x128xf32>
    %414 = vector.broadcast %79 : vector<1x128xf32> to vector<8x128xf32>
    %415 = arith.addf %413, %414 : vector<8x128xf32>
    %416 = arith.mulf %410, %415 : vector<8x128xf32>
    %417 = arith.addf %412, %416 : vector<8x128xf32>
    %418 = math.tanh %417 : vector<8x128xf32>
    %cst_125 = arith.constant 1.000000e+00 : f32
    %419 = vector.broadcast %cst_125 : f32 to vector<8x128xf32>
    %420 = arith.subf %419, %411 : vector<8x128xf32>
    %421 = arith.mulf %420, %418 : vector<8x128xf32>
    %422 = arith.mulf %411, %396 : vector<8x128xf32>
    %423 = arith.addf %421, %422 : vector<8x128xf32>
    %c96_126 = arith.constant 96 : index
    %c0_127 = arith.constant 0 : index
    %424 = vector.load %arg14[%c96_126, %c0_127] : memref<128x384xf32, #tpu.memory_space<vmem>>, vector<8x384xf32>
    %c24_128 = arith.constant 24 : index
    %c0_129 = arith.constant 0 : index
    %425 = vector.load %arg14[%c24_128, %c0_129] : memref<128x384xf32, #tpu.memory_space<vmem>>, vector<8x384xf32>
    %426 = arith.select %98, %424, %425 : vector<8x384xi1>, vector<8x384xf32>
    %427 = arith.truncf %423 : vector<8x128xf32> to vector<8x128xbf16>
    %cst_130 = arith.constant dense<0.000000e+00> : vector<8x384xf32>
    %428 = tpu.matmul %427, %78, %cst_130 {dimension_numbers = #tpu.dot_dimension_numbers<[1], [0], [0], [1], [0, 0, 1, 1], [], []>} : vector<8x128xbf16>, vector<128x384xbf16>, vector<8x384xf32> -> vector<8x384xf32>
    %429 = vector.extract_strided_slice %426 {offsets = [0, 0], sizes = [8, 256], strides = [1, 1]} : vector<8x384xf32> to vector<8x256xf32>
    %430 = vector.extract_strided_slice %428 {offsets = [0, 0], sizes = [8, 256], strides = [1, 1]} : vector<8x384xf32> to vector<8x256xf32>
    %431 = arith.addf %429, %430 : vector<8x256xf32>
    %432 = arith.negf %431 : vector<8x256xf32>
    %433 = math.exp %432 : vector<8x256xf32>
    %cst_131 = arith.constant 1.000000e+00 : f32
    %434 = vector.broadcast %cst_131 : f32 to vector<8x256xf32>
    %435 = arith.addf %434, %433 : vector<8x256xf32>
    %436 = arith.divf %434, %435 : vector<8x256xf32>
    %437 = vector.extract_strided_slice %436 {offsets = [0, 0], sizes = [8, 128], strides = [1, 1]} : vector<8x256xf32> to vector<8x128xf32>
    %438 = vector.extract_strided_slice %436 {offsets = [0, 128], sizes = [8, 128], strides = [1, 1]} : vector<8x256xf32> to vector<8x128xf32>
    %439 = vector.extract_strided_slice %426 {offsets = [0, 256], sizes = [8, 128], strides = [1, 1]} : vector<8x384xf32> to vector<8x128xf32>
    %440 = vector.extract_strided_slice %428 {offsets = [0, 256], sizes = [8, 128], strides = [1, 1]} : vector<8x384xf32> to vector<8x128xf32>
    %441 = vector.broadcast %79 : vector<1x128xf32> to vector<8x128xf32>
    %442 = arith.addf %440, %441 : vector<8x128xf32>
    %443 = arith.mulf %437, %442 : vector<8x128xf32>
    %444 = arith.addf %439, %443 : vector<8x128xf32>
    %445 = math.tanh %444 : vector<8x128xf32>
    %cst_132 = arith.constant 1.000000e+00 : f32
    %446 = vector.broadcast %cst_132 : f32 to vector<8x128xf32>
    %447 = arith.subf %446, %438 : vector<8x128xf32>
    %448 = arith.mulf %447, %445 : vector<8x128xf32>
    %449 = arith.mulf %438, %423 : vector<8x128xf32>
    %450 = arith.addf %448, %449 : vector<8x128xf32>
    %c104_133 = arith.constant 104 : index
    %c0_134 = arith.constant 0 : index
    %451 = vector.load %arg14[%c104_133, %c0_134] : memref<128x384xf32, #tpu.memory_space<vmem>>, vector<8x384xf32>
    %c16_135 = arith.constant 16 : index
    %c0_136 = arith.constant 0 : index
    %452 = vector.load %arg14[%c16_135, %c0_136] : memref<128x384xf32, #tpu.memory_space<vmem>>, vector<8x384xf32>
    %453 = arith.select %98, %451, %452 : vector<8x384xi1>, vector<8x384xf32>
    %454 = arith.truncf %450 : vector<8x128xf32> to vector<8x128xbf16>
    %cst_137 = arith.constant dense<0.000000e+00> : vector<8x384xf32>
    %455 = tpu.matmul %454, %78, %cst_137 {dimension_numbers = #tpu.dot_dimension_numbers<[1], [0], [0], [1], [0, 0, 1, 1], [], []>} : vector<8x128xbf16>, vector<128x384xbf16>, vector<8x384xf32> -> vector<8x384xf32>
    %456 = vector.extract_strided_slice %453 {offsets = [0, 0], sizes = [8, 256], strides = [1, 1]} : vector<8x384xf32> to vector<8x256xf32>
    %457 = vector.extract_strided_slice %455 {offsets = [0, 0], sizes = [8, 256], strides = [1, 1]} : vector<8x384xf32> to vector<8x256xf32>
    %458 = arith.addf %456, %457 : vector<8x256xf32>
    %459 = arith.negf %458 : vector<8x256xf32>
    %460 = math.exp %459 : vector<8x256xf32>
    %cst_138 = arith.constant 1.000000e+00 : f32
    %461 = vector.broadcast %cst_138 : f32 to vector<8x256xf32>
    %462 = arith.addf %461, %460 : vector<8x256xf32>
    %463 = arith.divf %461, %462 : vector<8x256xf32>
    %464 = vector.extract_strided_slice %463 {offsets = [0, 0], sizes = [8, 128], strides = [1, 1]} : vector<8x256xf32> to vector<8x128xf32>
    %465 = vector.extract_strided_slice %463 {offsets = [0, 128], sizes = [8, 128], strides = [1, 1]} : vector<8x256xf32> to vector<8x128xf32>
    %466 = vector.extract_strided_slice %453 {offsets = [0, 256], sizes = [8, 128], strides = [1, 1]} : vector<8x384xf32> to vector<8x128xf32>
    %467 = vector.extract_strided_slice %455 {offsets = [0, 256], sizes = [8, 128], strides = [1, 1]} : vector<8x384xf32> to vector<8x128xf32>
    %468 = vector.broadcast %79 : vector<1x128xf32> to vector<8x128xf32>
    %469 = arith.addf %467, %468 : vector<8x128xf32>
    %470 = arith.mulf %464, %469 : vector<8x128xf32>
    %471 = arith.addf %466, %470 : vector<8x128xf32>
    %472 = math.tanh %471 : vector<8x128xf32>
    %cst_139 = arith.constant 1.000000e+00 : f32
    %473 = vector.broadcast %cst_139 : f32 to vector<8x128xf32>
    %474 = arith.subf %473, %465 : vector<8x128xf32>
    %475 = arith.mulf %474, %472 : vector<8x128xf32>
    %476 = arith.mulf %465, %450 : vector<8x128xf32>
    %477 = arith.addf %475, %476 : vector<8x128xf32>
    %c112_140 = arith.constant 112 : index
    %c0_141 = arith.constant 0 : index
    %478 = vector.load %arg14[%c112_140, %c0_141] : memref<128x384xf32, #tpu.memory_space<vmem>>, vector<8x384xf32>
    %c8_142 = arith.constant 8 : index
    %c0_143 = arith.constant 0 : index
    %479 = vector.load %arg14[%c8_142, %c0_143] : memref<128x384xf32, #tpu.memory_space<vmem>>, vector<8x384xf32>
    %480 = arith.select %98, %478, %479 : vector<8x384xi1>, vector<8x384xf32>
    %481 = arith.truncf %477 : vector<8x128xf32> to vector<8x128xbf16>
    %cst_144 = arith.constant dense<0.000000e+00> : vector<8x384xf32>
    %482 = tpu.matmul %481, %78, %cst_144 {dimension_numbers = #tpu.dot_dimension_numbers<[1], [0], [0], [1], [0, 0, 1, 1], [], []>} : vector<8x128xbf16>, vector<128x384xbf16>, vector<8x384xf32> -> vector<8x384xf32>
    %483 = vector.extract_strided_slice %480 {offsets = [0, 0], sizes = [8, 256], strides = [1, 1]} : vector<8x384xf32> to vector<8x256xf32>
    %484 = vector.extract_strided_slice %482 {offsets = [0, 0], sizes = [8, 256], strides = [1, 1]} : vector<8x384xf32> to vector<8x256xf32>
    %485 = arith.addf %483, %484 : vector<8x256xf32>
    %486 = arith.negf %485 : vector<8x256xf32>
    %487 = math.exp %486 : vector<8x256xf32>
    %cst_145 = arith.constant 1.000000e+00 : f32
    %488 = vector.broadcast %cst_145 : f32 to vector<8x256xf32>
    %489 = arith.addf %488, %487 : vector<8x256xf32>
    %490 = arith.divf %488, %489 : vector<8x256xf32>
    %491 = vector.extract_strided_slice %490 {offsets = [0, 0], sizes = [8, 128], strides = [1, 1]} : vector<8x256xf32> to vector<8x128xf32>
    %492 = vector.extract_strided_slice %490 {offsets = [0, 128], sizes = [8, 128], strides = [1, 1]} : vector<8x256xf32> to vector<8x128xf32>
    %493 = vector.extract_strided_slice %480 {offsets = [0, 256], sizes = [8, 128], strides = [1, 1]} : vector<8x384xf32> to vector<8x128xf32>
    %494 = vector.extract_strided_slice %482 {offsets = [0, 256], sizes = [8, 128], strides = [1, 1]} : vector<8x384xf32> to vector<8x128xf32>
    %495 = vector.broadcast %79 : vector<1x128xf32> to vector<8x128xf32>
    %496 = arith.addf %494, %495 : vector<8x128xf32>
    %497 = arith.mulf %491, %496 : vector<8x128xf32>
    %498 = arith.addf %493, %497 : vector<8x128xf32>
    %499 = math.tanh %498 : vector<8x128xf32>
    %cst_146 = arith.constant 1.000000e+00 : f32
    %500 = vector.broadcast %cst_146 : f32 to vector<8x128xf32>
    %501 = arith.subf %500, %492 : vector<8x128xf32>
    %502 = arith.mulf %501, %499 : vector<8x128xf32>
    %503 = arith.mulf %492, %477 : vector<8x128xf32>
    %504 = arith.addf %502, %503 : vector<8x128xf32>
    %c120_147 = arith.constant 120 : index
    %c0_148 = arith.constant 0 : index
    %505 = vector.load %arg14[%c120_147, %c0_148] : memref<128x384xf32, #tpu.memory_space<vmem>>, vector<8x384xf32>
    %c0_149 = arith.constant 0 : index
    %c0_150 = arith.constant 0 : index
    %506 = vector.load %arg14[%c0_149, %c0_150] : memref<128x384xf32, #tpu.memory_space<vmem>>, vector<8x384xf32>
    %507 = arith.select %98, %505, %506 : vector<8x384xi1>, vector<8x384xf32>
    %508 = arith.truncf %504 : vector<8x128xf32> to vector<8x128xbf16>
    %cst_151 = arith.constant dense<0.000000e+00> : vector<8x384xf32>
    %509 = tpu.matmul %508, %78, %cst_151 {dimension_numbers = #tpu.dot_dimension_numbers<[1], [0], [0], [1], [0, 0, 1, 1], [], []>} : vector<8x128xbf16>, vector<128x384xbf16>, vector<8x384xf32> -> vector<8x384xf32>
    %510 = vector.extract_strided_slice %507 {offsets = [0, 0], sizes = [8, 256], strides = [1, 1]} : vector<8x384xf32> to vector<8x256xf32>
    %511 = vector.extract_strided_slice %509 {offsets = [0, 0], sizes = [8, 256], strides = [1, 1]} : vector<8x384xf32> to vector<8x256xf32>
    %512 = arith.addf %510, %511 : vector<8x256xf32>
    %513 = arith.negf %512 : vector<8x256xf32>
    %514 = math.exp %513 : vector<8x256xf32>
    %cst_152 = arith.constant 1.000000e+00 : f32
    %515 = vector.broadcast %cst_152 : f32 to vector<8x256xf32>
    %516 = arith.addf %515, %514 : vector<8x256xf32>
    %517 = arith.divf %515, %516 : vector<8x256xf32>
    %518 = vector.extract_strided_slice %517 {offsets = [0, 0], sizes = [8, 128], strides = [1, 1]} : vector<8x256xf32> to vector<8x128xf32>
    %519 = vector.extract_strided_slice %517 {offsets = [0, 128], sizes = [8, 128], strides = [1, 1]} : vector<8x256xf32> to vector<8x128xf32>
    %520 = vector.extract_strided_slice %507 {offsets = [0, 256], sizes = [8, 128], strides = [1, 1]} : vector<8x384xf32> to vector<8x128xf32>
    %521 = vector.extract_strided_slice %509 {offsets = [0, 256], sizes = [8, 128], strides = [1, 1]} : vector<8x384xf32> to vector<8x128xf32>
    %522 = vector.broadcast %79 : vector<1x128xf32> to vector<8x128xf32>
    %523 = arith.addf %521, %522 : vector<8x128xf32>
    %524 = arith.mulf %518, %523 : vector<8x128xf32>
    %525 = arith.addf %520, %524 : vector<8x128xf32>
    %526 = math.tanh %525 : vector<8x128xf32>
    %cst_153 = arith.constant 1.000000e+00 : f32
    %527 = vector.broadcast %cst_153 : f32 to vector<8x128xf32>
    %528 = arith.subf %527, %519 : vector<8x128xf32>
    %529 = arith.mulf %528, %526 : vector<8x128xf32>
    %530 = arith.mulf %519, %504 : vector<8x128xf32>
    %531 = arith.addf %529, %530 : vector<8x128xf32>
    %532 = vector.extract_strided_slice %531 {offsets = [0, 0], sizes = [2, 128], strides = [1, 1]} : vector<8x128xf32> to vector<2x128xf32>
    %c0_154 = arith.constant 0 : index
    %c0_155 = arith.constant 0 : index
    %533 = vector.load %arg12[%c0_154, %c0_155] : memref<2x128xf32, #tpu.memory_space<vmem>>, vector<2x128xf32>
    tpu.vector_store %arg12[%c0_154, %c0_155], %532 {strides = array<i32>} : memref<2x128xf32, #tpu.memory_space<vmem>>, vector<2x128xf32>,
    %534 = arith.truncf %532 : vector<2x128xf32> to vector<2x128xbf16>
    %c0_156 = arith.constant 0 : index
    %c0_157 = arith.constant 0 : index
    %535 = vector.load %arg10[%c0_156, %c0_157] : memref<128x128xbf16, #tpu.memory_space<vmem>>, vector<128x128xbf16>
    %cst_158 = arith.constant dense<0.000000e+00> : vector<2x128xf32>
    %536 = tpu.matmul %534, %535, %cst_158 {dimension_numbers = #tpu.dot_dimension_numbers<[1], [0], [0], [1], [0, 0, 1, 1], [], []>} : vector<2x128xbf16>, vector<128x128xbf16>, vector<2x128xf32> -> vector<2x128xf32>
    %c0_159 = arith.constant 0 : index
    %c0_160 = arith.constant 0 : index
    %537 = vector.load %arg11[%c0_159, %c0_160] : memref<1x128xf32, #tpu.memory_space<vmem>>, vector<1x128xf32>
    %538 = vector.broadcast %537 : vector<1x128xf32> to vector<2x128xf32>
    %539 = arith.addf %536, %538 : vector<2x128xf32>
    %c0_161 = arith.constant 0 : index
    %c0_162 = arith.constant 0 : index
    %540 = vector.load %arg13[%c0_161, %c0_162] : memref<2x128xf32, #tpu.memory_space<vmem>>, vector<2x128xf32>
    tpu.vector_store %arg13[%c0_161, %c0_162], %539 {strides = array<i32>} : memref<2x128xf32, #tpu.memory_space<vmem>>, vector<2x128xf32>,
    return
  }
  func.func @transform_0(%arg0: i32) -> (i32, i32) {
    %c0_i32 = arith.constant 0 : i32
    %c0_i32_0 = arith.constant 0 : i32
    %c0_i32_1 = arith.constant 0 : i32
    return %c0_i32, %c0_i32_0 : i32, i32
  }
  func.func @transform_1(%arg0: i32) -> (i32, i32, i32) {
    %c0_i32 = arith.constant 0 : i32
    %c0_i32_0 = arith.constant 0 : i32
    %c0_i32_1 = arith.constant 0 : i32
    %c0_i32_2 = arith.constant 0 : i32
    return %c0_i32, %c0_i32_0, %c0_i32_1 : i32, i32, i32
  }
  func.func @transform_2(%arg0: i32) -> (i32, i32) {
    %c0_i32 = arith.constant 0 : i32
    %c0_i32_0 = arith.constant 0 : i32
    %c0_i32_1 = arith.constant 0 : i32
    return %c0_i32, %c0_i32_0 : i32, i32
  }
  func.func @transform_3(%arg0: i32) -> (i32, i32, i32) {
    %c0_i32 = arith.constant 0 : i32
    %c0_i32_0 = arith.constant 0 : i32
    %c0_i32_1 = arith.constant 0 : i32
    %c0_i32_2 = arith.constant 0 : i32
    return %c0_i32, %c0_i32_0, %c0_i32_1 : i32, i32, i32
  }
  func.func @transform_4(%arg0: i32) -> (i32, i32) {
    %c0_i32 = arith.constant 0 : i32
    %c0_i32_0 = arith.constant 0 : i32
    %c0_i32_1 = arith.constant 0 : i32
    return %c0_i32, %c0_i32_0 : i32, i32
  }
  func.func @transform_5(%arg0: i32) -> (i32, i32) {
    %c0_i32 = arith.constant 0 : i32
    %c0_i32_0 = arith.constant 0 : i32
    %c0_i32_1 = arith.constant 0 : i32
    return %c0_i32, %c0_i32_0 : i32, i32
  }
  func.func @transform_6(%arg0: i32) -> (i32, i32) {
    %c0_i32 = arith.constant 0 : i32
    %c0_i32_0 = arith.constant 0 : i32
    %c0_i32_1 = arith.constant 0 : i32
    return %c0_i32, %c0_i32_0 : i32, i32
  }
  func.func @transform_7(%arg0: i32) -> (i32, i32) {
    %c0_i32 = arith.constant 0 : i32
    %c0_i32_0 = arith.constant 0 : i32
    %c0_i32_1 = arith.constant 0 : i32
    return %c0_i32, %c0_i32_0 : i32, i32
  }
  func.func @transform_8(%arg0: i32) -> (i32, i32) {
    %c0_i32 = arith.constant 0 : i32
    %c0_i32_0 = arith.constant 0 : i32
    %c0_i32_1 = arith.constant 0 : i32
    return %c0_i32, %c0_i32_0 : i32, i32
  }
  func.func @transform_9(%arg0: i32) -> (i32, i32) {
    %c0_i32 = arith.constant 0 : i32
    %c0_i32_0 = arith.constant 0 : i32
    %c0_i32_1 = arith.constant 0 : i32
    return %c0_i32, %c0_i32_0 : i32, i32
  }
  func.func @transform_10(%arg0: i32) -> (i32, i32) {
    %c0_i32 = arith.constant 0 : i32
    %c0_i32_0 = arith.constant 0 : i32
    %c0_i32_1 = arith.constant 0 : i32
    return %c0_i32, %c0_i32_0 : i32, i32
  }
  func.func @transform_11(%arg0: i32) -> (i32, i32) {
    %c0_i32 = arith.constant 0 : i32
    %c0_i32_0 = arith.constant 0 : i32
    %c0_i32_1 = arith.constant 0 : i32
    return %c0_i32, %c0_i32_0 : i32, i32
  }
  func.func @transform_12(%arg0: i32) -> (i32, i32) {
    %c0_i32 = arith.constant 0 : i32
    %c0_i32_0 = arith.constant 0 : i32
    %c0_i32_1 = arith.constant 0 : i32
    return %c0_i32, %c0_i32_0 : i32, i32
  }
}

</mosaic_0001>

<llo_original>
// kernel: imu_encoder_forward.1
$region0: #{imu_encoder_forward.1}
  #allocation0 [shape = 'u32[]', space=smem, size = 0x4, offset = 0x4, fixed_abs, tag = 'smem constant byte address 0x4 - core index']
  #allocation1 [shape = 'u32[144,128]{1,0:T(1,128)}', space=vmem, size = 0x12000, scoped, tag = 'internal scratch']
  #allocation2 [shape = 'f32[128,384]{1,0:T(8,128)}', space=vmem, size = 0x30000, scoped, tag = 'scratch operand']
  %s0 = inlined_call_operand.vmem [shape: f32[128,8], index: 0, kind: input, shape index: {}]
  %s1 = inlined_call_operand.vmem [shape: bf16[5,8,64], index: 1, kind: input, shape index: {}]
  %s2 = inlined_call_operand.vmem [shape: f32[1,64], index: 2, kind: input, shape index: {}]
  %s3 = inlined_call_operand.hbm [shape: bf16[3,64,128], index: 3, kind: input, shape index: {}]
  %s4 = inlined_call_operand.vmem [shape: f32[1,128], index: 4, kind: input, shape index: {}]
  %s5 = inlined_call_operand.vmem [shape: bf16[128,384], index: 5, kind: input, shape index: {}]
  %s6 = inlined_call_operand.vmem [shape: f32[1,384], index: 6, kind: input, shape index: {}]
  %s7 = inlined_call_operand.hbm [shape: bf16[128,384], index: 7, kind: input, shape index: {}]
  %s8 = inlined_call_operand.vmem [shape: f32[1,128], index: 8, kind: input, shape index: {}]
  %s9 = inlined_call_operand.hbm [shape: bf16[128,128], index: 9, kind: input, shape index: {}]
  %s10 = inlined_call_operand.vmem [shape: f32[1,128], index: 10, kind: input, shape index: {}]
  %s11 = inlined_call_operand.hbm [shape: f32[2,128], index: 11, kind: output, shape index: {0}]
  %s12 = inlined_call_operand.hbm [shape: f32[2,128], index: 12, kind: output, shape index: {1}]
  %13 = xla_tuple %s11, %s12
  %s14 = sld [smem:[#allocation0]]
  $region74: #{imu_encoder_forward.1} parent=0
    _
  %s16 = ssub.s32 1, %s14
  %s17 = scalar_select 0, %s16, %s14
  $region1: #{imu_encoder_forward.1} parent=0
    #allocation3 [shape = 'u8[49152]{0}', space=vmem, size = 0xc000, scoped, tag = 'input window, operand 3, single buffered']
    #allocation4 [shape = 's32[1]{0}', space=sflag, size = 0x4, scoped, tag = 'scoped memory for imu_encoder_forward.1']
    #allocation5 [shape = 's32[1]{0}', space=sflag, size = 0x4, scoped, tag = 'scoped memory for imu_encoder_forward.1']
    #allocation6 [shape = 'u8[98304]{0}', space=vmem, size = 0x18000, scoped, tag = 'input window, operand 7, single buffered']
    #allocation7 [shape = 's32[1]{0}', space=sflag, size = 0x4, scoped, tag = 'scoped memory for imu_encoder_forward.1']
    #allocation8 [shape = 'u8[32768]{0}', space=vmem, size = 0x8000, scoped, tag = 'input window, operand 9, single buffered']
    #allocation9 [shape = 'u8[1024]{0}', space=vmem, size = 0x400, scoped, tag = 'output window, operand 0, single buffered']
    #allocation10 [shape = 'u8[1024]{0}', space=vmem, size = 0x400, scoped, tag = 'output window, operand 1, single buffered']
    #allocation11 [shape = 's32[1]{0}', space=sflag, size = 0x4, scoped, tag = 'scoped memory for imu_encoder_forward.1']
    %18 = vsyncpa [#allocation4], 0
    %19 = vsyncpa [#allocation7], 0
    %20 = vsyncpa [#allocation5], 0
    %21 = vsyncpa [#allocation11], 0
    // Predicated region
    $region2: #{imu_encoder_forward.1} parent=1 // pred_check
      _
    $region3: #{imu_encoder_forward.1} parent=1 // pred_check_branch
      %23 = sbr.rel (0) target = $region5
    $region4: #{imu_encoder_forward.1} parent=1 // pred_region
      _
    $region5: #{imu_encoder_forward.1} parent=1 // pred_fallthru
      _
    // Predicated region
    $region6: #{imu_encoder_forward.1} parent=1 // pred_check
      _
    $region7: #{imu_encoder_forward.1} parent=1 // pred_check_branch
      %25 = sbr.rel (0) target = $region9
    $region8: #{imu_encoder_forward.1} parent=1 // pred_region
      _
    $region9: #{imu_encoder_forward.1} parent=1 // pred_fallthru
      _
    // Predicated region
    $region10: #{imu_encoder_forward.1} parent=1 // pred_check
      _
    $region11: #{imu_encoder_forward.1} parent=1 // pred_check_branch
      %27 = sbr.rel (0) target = $region13
    $region12: #{imu_encoder_forward.1} parent=1 // pred_region
      _
    $region13: #{imu_encoder_forward.1} parent=1 // pred_fallthru
      _
    // Predicated region
    $region14: #{imu_encoder_forward.1} parent=1 // pred_check
      _
    $region15: #{imu_encoder_forward.1} parent=1 // pred_check_branch
      %29 = sbr.rel (0) target = $region17
    $region16: #{imu_encoder_forward.1} parent=1 // pred_region
      %s31 = ssub.s32 1536, 1536
      %32 = vsyncadd [#allocation4], %s31
      %s33 = sshll.u32 [#allocation3], 4
      %s34 = int_to_ptr.vmem [resolvable:$true] %s33
      %39 = dma.hbm_to_vmem [thread:$0]  %s3, 1536, %s34, [#allocation4], 64, 64, 4
    $region17: #{imu_encoder_forward.1} parent=1 // pred_fallthru
      _
    // Predicated region
    $region18: #{imu_encoder_forward.1} parent=1 // pred_check
      _
    $region19: #{imu_encoder_forward.1} parent=1 // pred_check_branch
      %41 = sbr.rel (0) target = $region21
    $region20: #{imu_encoder_forward.1} parent=1 // pred_region
      _
    $region21: #{imu_encoder_forward.1} parent=1 // pred_fallthru
      _
    // Predicated region
    $region22: #{imu_encoder_forward.1} parent=1 // pred_check
      _
    $region23: #{imu_encoder_forward.1} parent=1 // pred_check_branch
      %43 = sbr.rel (0) target = $region25
    $region24: #{imu_encoder_forward.1} parent=1 // pred_region
      _
    $region25: #{imu_encoder_forward.1} parent=1 // pred_fallthru
      _
    // Predicated region
    $region26: #{imu_encoder_forward.1} parent=1 // pred_check
      _
    $region27: #{imu_encoder_forward.1} parent=1 // pred_check_branch
      %45 = sbr.rel (0) target = $region29
    $region28: #{imu_encoder_forward.1} parent=1 // pred_region
      _
    $region29: #{imu_encoder_forward.1} parent=1 // pred_fallthru
      _
    // Predicated region
    $region30: #{imu_encoder_forward.1} parent=1 // pred_check
      _
    $region31: #{imu_encoder_forward.1} parent=1 // pred_check_branch
      %47 = sbr.rel (0) target = $region33
    $region32: #{imu_encoder_forward.1} parent=1 // pred_region
      %s49 = ssub.s32 3072, 3072
      %50 = vsyncadd [#allocation7], %s49
      %s51 = sshll.u32 [#allocation6], 4
      %s52 = int_to_ptr.vmem [resolvable:$true] %s51
      %57 = dma.hbm_to_vmem [thread:$0]  %s7, 3072, %s52, [#allocation7], 192, 192, 12
    $region33: #{imu_encoder_forward.1} parent=1 // pred_fallthru
      _
    // Predicated region
    $region34: #{imu_encoder_forward.1} parent=1 // pred_check
      _
    $region35: #{imu_encoder_forward.1} parent=1 // pred_check_branch
      %59 = sbr.rel (0) target = $region37
    $region36: #{imu_encoder_forward.1} parent=1 // pred_region
      _
    $region37: #{imu_encoder_forward.1} parent=1 // pred_fallthru
      _
    // Predicated region
    $region38: #{imu_encoder_forward.1} parent=1 // pred_check
      _
    $region39: #{imu_encoder_forward.1} parent=1 // pred_check_branch
      %61 = sbr.rel (0) target = $region41
    $region40: #{imu_encoder_forward.1} parent=1 // pred_region
      %s63 = ssub.s32 1024, 1024
      %64 = vsyncadd [#allocation7], %s63
      %s65 = sshll.u32 [#allocation8], 4
      %s66 = int_to_ptr.vmem [resolvable:$true] %s65
      %71 = dma.hbm_to_vmem [thread:$0]  %s9, 1024, %s66, [#allocation7], 64, 64, 4
    $region41: #{imu_encoder_forward.1} parent=1 // pred_fallthru
      _
    // Predicated region
    $region42: #{imu_encoder_forward.1} parent=1 // pred_check
      _
    $region43: #{imu_encoder_forward.1} parent=1 // pred_check_branch
      %73 = sbr.rel (0) target = $region45
    $region44: #{imu_encoder_forward.1} parent=1 // pred_region
      _
    $region45: #{imu_encoder_forward.1} parent=1 // pred_fallthru
      _
    // Predicated region
    $region46: #{imu_encoder_forward.1} parent=1 // pred_check
      _
    $region47: #{imu_encoder_forward.1} parent=1 // pred_check_branch
      %75 = sbr.rel (0) target = $region49
    $region48: #{imu_encoder_forward.1} parent=1 // pred_region
      %76 = dma.done [#allocation4], 1536
    $region49: #{imu_encoder_forward.1} parent=1 // pred_fallthru
      _
    // Predicated region
    $region50: #{imu_encoder_forward.1} parent=1 // pred_check
      _
    $region51: #{imu_encoder_forward.1} parent=1 // pred_check_branch
      %78 = sbr.rel (0) target = $region53
    $region52: #{imu_encoder_forward.1} parent=1 // pred_region
      %79 = dma.done [#allocation7], 3072
    $region53: #{imu_encoder_forward.1} parent=1 // pred_fallthru
      _
    // Predicated region
    $region54: #{imu_encoder_forward.1} parent=1 // pred_check
      _
    $region55: #{imu_encoder_forward.1} parent=1 // pred_check_branch
      %81 = sbr.rel (0) target = $region57
    $region56: #{imu_encoder_forward.1} parent=1 // pred_region
      %82 = dma.done [#allocation7], 1024
    $region57: #{imu_encoder_forward.1} parent=1 // pred_fallthru
      _
    %v84 = vld [vmem:[%s0] sm:$0xff]
    %v85 = vld [vmem:[%s0 + $0x8] sm:$0xff]
    %v86 = vld [vmem:[%s0 + $0x10] sm:$0xff]
    %v87 = vld [vmem:[%s0 + $0x18] sm:$0xff]
    %v88 = vld [vmem:[%s0 + $0x20] sm:$0xff]
    %v89 = vld [vmem:[%s0 + $0x28] sm:$0xff]
    %v90 = vld [vmem:[%s0 + $0x30] sm:$0xff]
    %v91 = vld [vmem:[%s0 + $0x38] sm:$0xff]
    %v92 = vld [vmem:[%s0 + $0x40] sm:$0xff]
    %v93 = vld [vmem:[%s0 + $0x48] sm:$0xff]
    %v94 = vld [vmem:[%s0 + $0x50] sm:$0xff]
    %v95 = vld [vmem:[%s0 + $0x58] sm:$0xff]
    %v96 = vld [vmem:[%s0 + $0x60] sm:$0xff]
    %v97 = vld [vmem:[%s0 + $0x68] sm:$0xff]
    %v98 = vld [vmem:[%s0 + $0x70] sm:$0xff]
    %v99 = vld [vmem:[%s0 + $0x78] sm:$0xff]
    %v100 = vpack.c.bf16 0.0, 0.0
    %v101 = vpack.c.bf16 %v85, %v84
    %v102 = vpack.c.bf16 %v87, %v86
    %v103 = vpack.c.bf16 %v89, %v88
    %v104 = vpack.c.bf16 %v91, %v90
    %v105 = vpack.c.bf16 %v93, %v92
    %v106 = vpack.c.bf16 %v95, %v94
    %v107 = vpack.c.bf16 %v97, %v96
    %v108 = vld [vmem:[%s1] sm:$0xf]
    %v109 = vpack.c.bf16 %v84, 0.0
    %v110 = vpack.c.bf16 %v86, %v85
    %v111 = vpack.c.bf16 %v88, %v87
    %v112 = vpack.c.bf16 %v90, %v89
    %v113 = vpack.c.bf16 %v92, %v91
    %v114 = vpack.c.bf16 %v94, %v93
    %v115 = vpack.c.bf16 %v96, %v95
    %v116 = vpack.c.bf16 %v98, %v97
    %s117 = scalar_lea.vmem %s1, 4
    %v118 = vld [vmem:[%s117] sm:$0xf]
    %vm119 = vcmask 64512
    %v121 = vsel %vm119, %v109, 0
    %v124 = vsel %vm119, %v110, 0
    %v127 = vsel %vm119, %v111, 0
    %v130 = vsel %vm119, %v112, 0
    %v133 = vsel %vm119, %v113, 0
    %v136 = vsel %vm119, %v114, 0
    %v139 = vsel %vm119, %v115, 0
    %v142 = vsel %vm119, %v116, 0
    %vm144 = vcmask 1043456
    %v146 = vsel %vm144, %v118, 0
    %148 = vmatprep.subr.bf16.mxu0 0
    %149 = vmatpush1.bf16.msra.mxu0 %v146
    %150 = vmatprep.subr.bf16.mxu0 0
    %151 = vmatpush1.bf16.msra.mxu0 0
    %152 = vmatprep.subr.bf16.mxu0 0
    %153 = vmatpush1.bf16.msra.mxu0 0
    %154 = vmatprep.subr.bf16.mxu0 0
    %155 = vmatpush1.bf16.msra.mxu0 0
    %156 = vmatprep.subr.bf16.mxu0 0
    %157 = vmatpush1.bf16.msra.mxu0 0
    %158 = vmatprep.subr.bf16.mxu0 0
    %159 = vmatpush1.bf16.msra.mxu0 0
    %160 = vmatprep.subr.bf16.mxu0 0
    %161 = vmatpush1.bf16.msra.mxu0 0
    %162 = vmatprep.subr.bf16.mxu0 0
    %163 = vmatpush1.bf16.msra.mxu0 0
    %164 = vmatprep.subr.bf16.mxu0 0
    %165 = vmatpush1.bf16.msra.mxu0 0
    %166 = vmatprep.subr.bf16.mxu0 0
    %167 = vmatpush1.bf16.msra.mxu0 0
    %168 = vmatprep.subr.bf16.mxu0 0
    %169 = vmatpush1.bf16.msra.mxu0 0
    %170 = vmatprep.subr.bf16.mxu0 0
    %171 = vmatpush1.bf16.msra.mxu0 0
    %172 = vmatprep.subr.bf16.mxu0 0
    %173 = vmatpush1.bf16.msra.mxu0 0
    %174 = vmatprep.subr.bf16.mxu0 0
    %175 = vmatpush1.bf16.msra.mxu0 0
    %176 = vmatprep.subr.bf16.mxu0 0
    %177 = vmatpush1.bf16.msra.mxu0 0
    %178 = vmatprep.subr.bf16.mxu0 0
    %179 = vmatpush1.bf16.msra.mxu0 0
    %180 = vmatprep.mubr.bf16.mxu0 0
    %181 = vmatmul.mubr.bf16.gmra.mrb[0].mxu0 %v121
    %v182 = vpop.f32.mrb[0].mxu0
    %v183 = vadd.f32 0.0, %v182
    %v184 = vpop.f32.mrb[0].mxu0
    %v185 = vpop.f32.mrb[0].mxu0
    %v186 = vadd.f32 0.0, %v185
    %v187 = vpop.f32.mrb[0].mxu0
    %188 = vmatprep.mubr.bf16.mxu0 0
    %189 = vmatmul.mubr.bf16.gmra.mrb[0].mxu0 %v124
    %v190 = vpop.f32.mrb[0].mxu0
    %v191 = vadd.f32 0.0, %v190
    %v192 = vpop.f32.mrb[0].mxu0
    %v193 = vpop.f32.mrb[0].mxu0
    %v194 = vadd.f32 0.0, %v193
    %v195 = vpop.f32.mrb[0].mxu0
    %196 = vmatprep.mubr.bf16.mxu0 0
    %197 = vmatmul.mubr.bf16.gmra.mrb[0].mxu0 %v127
    %v198 = vpop.f32.mrb[0].mxu0
    %v199 = vadd.f32 0.0, %v198
    %v200 = vpop.f32.mrb[0].mxu0
    %v201 = vpop.f32.mrb[0].mxu0
    %v202 = vadd.f32 0.0, %v201
    %v203 = vpop.f32.mrb[0].mxu0
    %204 = vmatprep.mubr.bf16.mxu0 0
    %205 = vmatmul.mubr.bf16.gmra.mrb[0].mxu0 %v130
    %v206 = vpop.f32.mrb[0].mxu0
    %v207 = vadd.f32 0.0, %v206
    %v208 = vpop.f32.mrb[0].mxu0
    %v209 = vpop.f32.mrb[0].mxu0
    %v210 = vadd.f32 0.0, %v209
    %v211 = vpop.f32.mrb[0].mxu0
    %212 = vmatprep.mubr.bf16.mxu0 0
    %213 = vmatmul.mubr.bf16.gmra.mrb[0].mxu0 %v133
    %v214 = vpop.f32.mrb[0].mxu0
    %v215 = vadd.f32 0.0, %v214
    %v216 = vpop.f32.mrb[0].mxu0
    %v217 = vpop.f32.mrb[0].mxu0
    %v218 = vadd.f32 0.0, %v217
    %v219 = vpop.f32.mrb[0].mxu0
    %220 = vmatprep.mubr.bf16.mxu0 0
    %221 = vmatmul.mubr.bf16.gmra.mrb[0].mxu0 %v136
    %v222 = vpop.f32.mrb[0].mxu0
    %v223 = vadd.f32 0.0, %v222
    %v224 = vpop.f32.mrb[0].mxu0
    %v225 = vpop.f32.mrb[0].mxu0
    %v226 = vadd.f32 0.0, %v225
    %v227 = vpop.f32.mrb[0].mxu0
    %228 = vmatprep.mubr.bf16.mxu0 0
    %229 = vmatmul.mubr.bf16.gmra.mrb[0].mxu0 %v139
    %v230 = vpop.f32.mrb[0].mxu0
    %v231 = vadd.f32 0.0, %v230
    %v232 = vpop.f32.mrb[0].mxu0
    %v233 = vpop.f32.mrb[0].mxu0
    %v234 = vadd.f32 0.0, %v233
    %v235 = vpop.f32.mrb[0].mxu0
    %236 = vmatprep.mubr.bf16.mxu0 0
    %237 = vmatmul.mubr.bf16.gmra.mrb[0].mxu0 %v142
    %v238 = vpop.f32.mrb[0].mxu0
    %v239 = vadd.f32 0.0, %v238
    %v240 = vpop.f32.mrb[0].mxu0
    %v241 = vpop.f32.mrb[0].mxu0
    %v242 = vadd.f32 0.0, %v241
    %v243 = vpop.f32.mrb[0].mxu0
    %244 = vdwg.mxu0
    %v246 = vsel %vm119, %v100, 0
    %v249 = vsel %vm119, %v101, 0
    %v252 = vsel %vm119, %v102, 0
    %v255 = vsel %vm119, %v103, 0
    %v258 = vsel %vm119, %v104, 0
    %v261 = vsel %vm119, %v105, 0
    %v264 = vsel %vm119, %v106, 0
    %v267 = vsel %vm119, %v107, 0
    %v270 = vsel %vm144, %v108, 0
    %272 = vmatprep.subr.bf16.mxu0 0
    %273 = vmatpush1.bf16.msra.mxu0 %v270
    %274 = vmatprep.subr.bf16.mxu0 0
    %275 = vmatpush1.bf16.msra.mxu0 0
    %276 = vmatprep.subr.bf16.mxu0 0
    %277 = vmatpush1.bf16.msra.mxu0 0
    %278 = vmatprep.subr.bf16.mxu0 0
    %279 = vmatpush1.bf16.msra.mxu0 0
    %280 = vmatprep.subr.bf16.mxu0 0
    %281 = vmatpush1.bf16.msra.mxu0 0
    %282 = vmatprep.subr.bf16.mxu0 0
    %283 = vmatpush1.bf16.msra.mxu0 0
    %284 = vmatprep.subr.bf16.mxu0 0
    %285 = vmatpush1.bf16.msra.mxu0 0
    %286 = vmatprep.subr.bf16.mxu0 0
    %287 = vmatpush1.bf16.msra.mxu0 0
    %288 = vmatprep.subr.bf16.mxu0 0
    %289 = vmatpush1.bf16.msra.mxu0 0
    %290 = vmatprep.subr.bf16.mxu0 0
    %291 = vmatpush1.bf16.msra.mxu0 0
    %292 = vmatprep.subr.bf16.mxu0 0
    %293 = vmatpush1.bf16.msra.mxu0 0
    %294 = vmatprep.subr.bf16.mxu0 0
    %295 = vmatpush1.bf16.msra.mxu0 0
    %296 = vmatprep.subr.bf16.mxu0 0
    %297 = vmatpush1.bf16.msra.mxu0 0
    %298 = vmatprep.subr.bf16.mxu0 0
    %299 = vmatpush1.bf16.msra.mxu0 0
    %300 = vmatprep.subr.bf16.mxu0 0
    %301 = vmatpush1.bf16.msra.mxu0 0
    %302 = vmatprep.subr.bf16.mxu0 0
    %303 = vmatpush1.bf16.msra.mxu0 0
    %304 = vmatprep.mubr.bf16.mxu0 0
    %305 = vmatmul.mubr.bf16.gmra.mrb[0].mxu0 %v246
    %v306 = vpop.f32.mrb[0].mxu0
    %v307 = vadd.f32 %v183, %v306
    %v308 = vpop.f32.mrb[0].mxu0
    %v309 = vpop.f32.mrb[0].mxu0
    %v310 = vadd.f32 %v186, %v309
    %v311 = vpop.f32.mrb[0].mxu0
    %312 = vmatprep.mubr.bf16.mxu0 0
    %313 = vmatmul.mubr.bf16.gmra.mrb[0].mxu0 %v249
    %v314 = vpop.f32.mrb[0].mxu0
    %v315 = vadd.f32 %v191, %v314
    %v316 = vpop.f32.mrb[0].mxu0
    %v317 = vpop.f32.mrb[0].mxu0
    %v318 = vadd.f32 %v194, %v317
    %v319 = vpop.f32.mrb[0].mxu0
    %320 = vmatprep.mubr.bf16.mxu0 0
    %321 = vmatmul.mubr.bf16.gmra.mrb[0].mxu0 %v252
    %v322 = vpop.f32.mrb[0].mxu0
    %v323 = vadd.f32 %v199, %v322
    %v324 = vpop.f32.mrb[0].mxu0
    %v325 = vpop.f32.mrb[0].mxu0
    %v326 = vadd.f32 %v202, %v325
    %v327 = vpop.f32.mrb[0].mxu0
    %328 = vmatprep.mubr.bf16.mxu0 0
    %329 = vmatmul.mubr.bf16.gmra.mrb[0].mxu0 %v255
    %v330 = vpop.f32.mrb[0].mxu0
    %v331 = vadd.f32 %v207, %v330
    %v332 = vpop.f32.mrb[0].mxu0
    %v333 = vpop.f32.mrb[0].mxu0
    %v334 = vadd.f32 %v210, %v333
    %v335 = vpop.f32.mrb[0].mxu0
    %336 = vmatprep.mubr.bf16.mxu0 0
    %337 = vmatmul.mubr.bf16.gmra.mrb[0].mxu0 %v258
    %v338 = vpop.f32.mrb[0].mxu0
    %v339 = vadd.f32 %v215, %v338
    %v340 = vpop.f32.mrb[0].mxu0
    %v341 = vpop.f32.mrb[0].mxu0
    %v342 = vadd.f32 %v218, %v341
    %v343 = vpop.f32.mrb[0].mxu0
    %344 = vmatprep.mubr.bf16.mxu0 0
    %345 = vmatmul.mubr.bf16.gmra.mrb[0].mxu0 %v261
    %v346 = vpop.f32.mrb[0].mxu0
    %v347 = vadd.f32 %v223, %v346
    %v348 = vpop.f32.mrb[0].mxu0
    %v349 = vpop.f32.mrb[0].mxu0
    %v350 = vadd.f32 %v226, %v349
    %v351 = vpop.f32.mrb[0].mxu0
    %352 = vmatprep.mubr.bf16.mxu0 0
    %353 = vmatmul.mubr.bf16.gmra.mrb[0].mxu0 %v264
    %v354 = vpop.f32.mrb[0].mxu0
    %v355 = vadd.f32 %v231, %v354
    %v356 = vpop.f32.mrb[0].mxu0
    %v357 = vpop.f32.mrb[0].mxu0
    %v358 = vadd.f32 %v234, %v357
    %v359 = vpop.f32.mrb[0].mxu0
    %360 = vmatprep.mubr.bf16.mxu0 0
    %361 = vmatmul.mubr.bf16.gmra.mrb[0].mxu0 %v267
    %v362 = vpop.f32.mrb[0].mxu0
    %v363 = vadd.f32 %v239, %v362
    %v364 = vpop.f32.mrb[0].mxu0
    %v365 = vpop.f32.mrb[0].mxu0
    %v366 = vadd.f32 %v242, %v365
    %v367 = vpop.f32.mrb[0].mxu0
    %368 = vdwg.mxu0
    %v369 = vpack.c.bf16 %v99, %v98
    %s370 = scalar_lea.vmem %s1, 8
    %v371 = vld [vmem:[%s370] sm:$0xf]
    %v373 = vsel %vm119, %v369, 0
    %v376 = vsel %vm144, %v371, 0
    %378 = vmatprep.subr.bf16.mxu0 0
    %379 = vmatpush1.bf16.msra.mxu0 %v376
    %380 = vmatprep.subr.bf16.mxu0 0
    %381 = vmatpush1.bf16.msra.mxu0 0
    %382 = vmatprep.subr.bf16.mxu0 0
    %383 = vmatpush1.bf16.msra.mxu0 0
    %384 = vmatprep.subr.bf16.mxu0 0
    %385 = vmatpush1.bf16.msra.mxu0 0
    %386 = vmatprep.subr.bf16.mxu0 0
    %387 = vmatpush1.bf16.msra.mxu0 0
    %388 = vmatprep.subr.bf16.mxu0 0
    %389 = vmatpush1.bf16.msra.mxu0 0
    %390 = vmatprep.subr.bf16.mxu0 0
    %391 = vmatpush1.bf16.msra.mxu0 0
    %392 = vmatprep.subr.bf16.mxu0 0
    %393 = vmatpush1.bf16.msra.mxu0 0
    %394 = vmatprep.subr.bf16.mxu0 0
    %395 = vmatpush1.bf16.msra.mxu0 0
    %396 = vmatprep.subr.bf16.mxu0 0
    %397 = vmatpush1.bf16.msra.mxu0 0
    %398 = vmatprep.subr.bf16.mxu0 0
    %399 = vmatpush1.bf16.msra.mxu0 0
    %400 = vmatprep.subr.bf16.mxu0 0
    %401 = vmatpush1.bf16.msra.mxu0 0
    %402 = vmatprep.subr.bf16.mxu0 0
    %403 = vmatpush1.bf16.msra.mxu0 0
    %404 = vmatprep.subr.bf16.mxu0 0
    %405 = vmatpush1.bf16.msra.mxu0 0
    %406 = vmatprep.subr.bf16.mxu0 0
    %407 = vmatpush1.bf16.msra.mxu0 0
    %408 = vmatprep.subr.bf16.mxu0 0
    %409 = vmatpush1.bf16.msra.mxu0 0
    %410 = vmatprep.mubr.bf16.mxu0 0
    %411 = vmatmul.mubr.bf16.gmra.mrb[0].mxu0 %v249
    %v412 = vpop.f32.mrb[0].mxu0
    %v413 = vadd.f32 0.0, %v412
    %v414 = vpop.f32.mrb[0].mxu0
    %v415 = vpop.f32.mrb[0].mxu0
    %v416 = vadd.f32 0.0, %v415
    %v417 = vpop.f32.mrb[0].mxu0
    %418 = vmatprep.mubr.bf16.mxu0 0
    %419 = vmatmul.mubr.bf16.gmra.mrb[0].mxu0 %v252
    %v420 = vpop.f32.mrb[0].mxu0
    %v421 = vadd.f32 0.0, %v420
    %v422 = vpop.f32.mrb[0].mxu0
    %v423 = vpop.f32.mrb[0].mxu0
    %v424 = vadd.f32 0.0, %v423
    %v425 = vpop.f32.mrb[0].mxu0
    %426 = vmatprep.mubr.bf16.mxu0 0
    %427 = vmatmul.mubr.bf16.gmra.mrb[0].mxu0 %v255
    %v428 = vpop.f32.mrb[0].mxu0
    %v429 = vadd.f32 0.0, %v428
    %v430 = vpop.f32.mrb[0].mxu0
    %v431 = vpop.f32.mrb[0].mxu0
    %v432 = vadd.f32 0.0, %v431
    %v433 = vpop.f32.mrb[0].mxu0
    %434 = vmatprep.mubr.bf16.mxu0 0
    %435 = vmatmul.mubr.bf16.gmra.mrb[0].mxu0 %v258
    %v436 = vpop.f32.mrb[0].mxu0
    %v437 = vadd.f32 0.0, %v436
    %v438 = vpop.f32.mrb[0].mxu0
    %v439 = vpop.f32.mrb[0].mxu0
    %v440 = vadd.f32 0.0, %v439
    %v441 = vpop.f32.mrb[0].mxu0
    %442 = vmatprep.mubr.bf16.mxu0 0
    %443 = vmatmul.mubr.bf16.gmra.mrb[0].mxu0 %v261
    %v444 = vpop.f32.mrb[0].mxu0
    %v445 = vadd.f32 0.0, %v444
    %v446 = vpop.f32.mrb[0].mxu0
    %v447 = vpop.f32.mrb[0].mxu0
    %v448 = vadd.f32 0.0, %v447
    %v449 = vpop.f32.mrb[0].mxu0
    %450 = vmatprep.mubr.bf16.mxu0 0
    %451 = vmatmul.mubr.bf16.gmra.mrb[0].mxu0 %v264
    %v452 = vpop.f32.mrb[0].mxu0
    %v453 = vadd.f32 0.0, %v452
    %v454 = vpop.f32.mrb[0].mxu0
    %v455 = vpop.f32.mrb[0].mxu0
    %v456 = vadd.f32 0.0, %v455
    %v457 = vpop.f32.mrb[0].mxu0
    %458 = vmatprep.mubr.bf16.mxu0 0
    %459 = vmatmul.mubr.bf16.gmra.mrb[0].mxu0 %v267
    %v460 = vpop.f32.mrb[0].mxu0
    %v461 = vadd.f32 0.0, %v460
    %v462 = vpop.f32.mrb[0].mxu0
    %v463 = vpop.f32.mrb[0].mxu0
    %v464 = vadd.f32 0.0, %v463
    %v465 = vpop.f32.mrb[0].mxu0
    %466 = vmatprep.mubr.bf16.mxu0 0
    %467 = vmatmul.mubr.bf16.gmra.mrb[0].mxu0 %v373
    %v468 = vpop.f32.mrb[0].mxu0
    %v469 = vadd.f32 0.0, %v468
    %v470 = vpop.f32.mrb[0].mxu0
    %v471 = vpop.f32.mrb[0].mxu0
    %v472 = vadd.f32 0.0, %v471
    %v473 = vpop.f32.mrb[0].mxu0
    %474 = vdwg.mxu0
    %v475 = vadd.f32 %v307, %v413
    %v476 = vadd.f32 %v310, %v416
    %v477 = vadd.f32 %v315, %v421
    %v478 = vadd.f32 %v318, %v424
    %v479 = vadd.f32 %v323, %v429
    %v480 = vadd.f32 %v326, %v432
    %v481 = vadd.f32 %v331, %v437
    %v482 = vadd.f32 %v334, %v440
    %v483 = vadd.f32 %v339, %v445
    %v484 = vadd.f32 %v342, %v448
    %v485 = vadd.f32 %v347, %v453
    %v486 = vadd.f32 %v350, %v456
    %v487 = vadd.f32 %v355, %v461
    %v488 = vadd.f32 %v358, %v464
    %v489 = vadd.f32 %v363, %v469
    %v490 = vadd.f32 %v366, %v472
    %v491 = vpack.c.bf16 0.0, %v99
    %s492 = scalar_lea.vmem %s1, 12
    %v493 = vld [vmem:[%s492] sm:$0xf]
    %v495 = vsel %vm119, %v491, 0
    %v498 = vsel %vm144, %v493, 0
    %500 = vmatprep.subr.bf16.mxu0 0
    %501 = vmatpush1.bf16.msra.mxu0 %v498
    %502 = vmatprep.subr.bf16.mxu0 0
    %503 = vmatpush1.bf16.msra.mxu0 0
    %504 = vmatprep.subr.bf16.mxu0 0
    %505 = vmatpush1.bf16.msra.mxu0 0
    %506 = vmatprep.subr.bf16.mxu0 0
    %507 = vmatpush1.bf16.msra.mxu0 0
    %508 = vmatprep.subr.bf16.mxu0 0
    %509 = vmatpush1.bf16.msra.mxu0 0
    %510 = vmatprep.subr.bf16.mxu0 0
    %511 = vmatpush1.bf16.msra.mxu0 0
    %512 = vmatprep.subr.bf16.mxu0 0
    %513 = vmatpush1.bf16.msra.mxu0 0
    %514 = vmatprep.subr.bf16.mxu0 0
    %515 = vmatpush1.bf16.msra.mxu0 0
    %516 = vmatprep.subr.bf16.mxu0 0
    %517 = vmatpush1.bf16.msra.mxu0 0
    %518 = vmatprep.subr.bf16.mxu0 0
    %519 = vmatpush1.bf16.msra.mxu0 0
    %520 = vmatprep.subr.bf16.mxu0 0
    %521 = vmatpush1.bf16.msra.mxu0 0
    %522 = vmatprep.subr.bf16.mxu0 0
    %523 = vmatpush1.bf16.msra.mxu0 0
    %524 = vmatprep.subr.bf16.mxu0 0
    %525 = vmatpush1.bf16.msra.mxu0 0
    %526 = vmatprep.subr.bf16.mxu0 0
    %527 = vmatpush1.bf16.msra.mxu0 0
    %528 = vmatprep.subr.bf16.mxu0 0
    %529 = vmatpush1.bf16.msra.mxu0 0
    %530 = vmatprep.subr.bf16.mxu0 0
    %531 = vmatpush1.bf16.msra.mxu0 0
    %532 = vmatprep.mubr.bf16.mxu0 0
    %533 = vmatmul.mubr.bf16.gmra.mrb[0].mxu0 %v124
    %v534 = vpop.f32.mrb[0].mxu0
    %v535 = vadd.f32 0.0, %v534
    %v536 = vpop.f32.mrb[0].mxu0
    %v537 = vpop.f32.mrb[0].mxu0
    %v538 = vadd.f32 0.0, %v537
    %v539 = vpop.f32.mrb[0].mxu0
    %540 = vmatprep.mubr.bf16.mxu0 0
    %541 = vmatmul.mubr.bf16.gmra.mrb[0].mxu0 %v127
    %v542 = vpop.f32.mrb[0].mxu0
    %v543 = vadd.f32 0.0, %v542
    %v544 = vpop.f32.mrb[0].mxu0
    %v545 = vpop.f32.mrb[0].mxu0
    %v546 = vadd.f32 0.0, %v545
    %v547 = vpop.f32.mrb[0].mxu0
    %548 = vmatprep.mubr.bf16.mxu0 0
    %549 = vmatmul.mubr.bf16.gmra.mrb[0].mxu0 %v130
    %v550 = vpop.f32.mrb[0].mxu0
    %v551 = vadd.f32 0.0, %v550
    %v552 = vpop.f32.mrb[0].mxu0
    %v553 = vpop.f32.mrb[0].mxu0
    %v554 = vadd.f32 0.0, %v553
    %v555 = vpop.f32.mrb[0].mxu0
    %556 = vmatprep.mubr.bf16.mxu0 0
    %557 = vmatmul.mubr.bf16.gmra.mrb[0].mxu0 %v133
    %v558 = vpop.f32.mrb[0].mxu0
    %v559 = vadd.f32 0.0, %v558
    %v560 = vpop.f32.mrb[0].mxu0
    %v561 = vpop.f32.mrb[0].mxu0
    %v562 = vadd.f32 0.0, %v561
    %v563 = vpop.f32.mrb[0].mxu0
    %564 = vmatprep.mubr.bf16.mxu0 0
    %565 = vmatmul.mubr.bf16.gmra.mrb[0].mxu0 %v136
    %v566 = vpop.f32.mrb[0].mxu0
    %v567 = vadd.f32 0.0, %v566
    %v568 = vpop.f32.mrb[0].mxu0
    %v569 = vpop.f32.mrb[0].mxu0
    %v570 = vadd.f32 0.0, %v569
    %v571 = vpop.f32.mrb[0].mxu0
    %572 = vmatprep.mubr.bf16.mxu0 0
    %573 = vmatmul.mubr.bf16.gmra.mrb[0].mxu0 %v139
    %v574 = vpop.f32.mrb[0].mxu0
    %v575 = vadd.f32 0.0, %v574
    %v576 = vpop.f32.mrb[0].mxu0
    %v577 = vpop.f32.mrb[0].mxu0
    %v578 = vadd.f32 0.0, %v577
    %v579 = vpop.f32.mrb[0].mxu0
    %580 = vmatprep.mubr.bf16.mxu0 0
    %581 = vmatmul.mubr.bf16.gmra.mrb[0].mxu0 %v142
    %v582 = vpop.f32.mrb[0].mxu0
    %v583 = vadd.f32 0.0, %v582
    %v584 = vpop.f32.mrb[0].mxu0
    %v585 = vpop.f32.mrb[0].mxu0
    %v586 = vadd.f32 0.0, %v585
    %v587 = vpop.f32.mrb[0].mxu0
    %588 = vmatprep.mubr.bf16.mxu0 0
    %589 = vmatmul.mubr.bf16.gmra.mrb[0].mxu0 %v495
    %v590 = vpop.f32.mrb[0].mxu0
    %v591 = vadd.f32 0.0, %v590
    %v592 = vpop.f32.mrb[0].mxu0
    %v593 = vpop.f32.mrb[0].mxu0
    %v594 = vadd.f32 0.0, %v593
    %v595 = vpop.f32.mrb[0].mxu0
    %596 = vdwg.mxu0
    %v597 = vadd.f32 %v475, %v535
    %v598 = vadd.f32 %v476, %v538
    %v599 = vadd.f32 %v477, %v543
    %v600 = vadd.f32 %v478, %v546
    %v601 = vadd.f32 %v479, %v551
    %v602 = vadd.f32 %v480, %v554
    %v603 = vadd.f32 %v481, %v559
    %v604 = vadd.f32 %v482, %v562
    %v605 = vadd.f32 %v483, %v567
    %v606 = vadd.f32 %v484, %v570
    %v607 = vadd.f32 %v485, %v575
    %v608 = vadd.f32 %v486, %v578
    %v609 = vadd.f32 %v487, %v583
    %v610 = vadd.f32 %v488, %v586
    %v611 = vadd.f32 %v489, %v591
    %v612 = vadd.f32 %v490, %v594
    %s613 = scalar_lea.vmem %s1, 16
    %v614 = vld [vmem:[%s613] sm:$0xf]
    %v616 = vsel %vm144, %v614, 0
    %618 = vmatprep.subr.bf16.mxu0 0
    %619 = vmatpush1.bf16.msra.mxu0 %v616
    %620 = vmatprep.subr.bf16.mxu0 0
    %621 = vmatpush1.bf16.msra.mxu0 0
    %622 = vmatprep.subr.bf16.mxu0 0
    %623 = vmatpush1.bf16.msra.mxu0 0
    %624 = vmatprep.subr.bf16.mxu0 0
    %625 = vmatpush1.bf16.msra.mxu0 0
    %626 = vmatprep.subr.bf16.mxu0 0
    %627 = vmatpush1.bf16.msra.mxu0 0
    %628 = vmatprep.subr.bf16.mxu0 0
    %629 = vmatpush1.bf16.msra.mxu0 0
    %630 = vmatprep.subr.bf16.mxu0 0
    %631 = vmatpush1.bf16.msra.mxu0 0
    %632 = vmatprep.subr.bf16.mxu0 0
    %633 = vmatpush1.bf16.msra.mxu0 0
    %634 = vmatprep.subr.bf16.mxu0 0
    %635 = vmatpush1.bf16.msra.mxu0 0
    %636 = vmatprep.subr.bf16.mxu0 0
    %637 = vmatpush1.bf16.msra.mxu0 0
    %638 = vmatprep.subr.bf16.mxu0 0
    %639 = vmatpush1.bf16.msra.mxu0 0
    %640 = vmatprep.subr.bf16.mxu0 0
    %641 = vmatpush1.bf16.msra.mxu0 0
    %642 = vmatprep.subr.bf16.mxu0 0
    %643 = vmatpush1.bf16.msra.mxu0 0
    %644 = vmatprep.subr.bf16.mxu0 0
    %645 = vmatpush1.bf16.msra.mxu0 0
    %646 = vmatprep.subr.bf16.mxu0 0
    %647 = vmatpush1.bf16.msra.mxu0 0
    %648 = vmatprep.subr.bf16.mxu0 0
    %649 = vmatpush1.bf16.msra.mxu0 0
    %650 = vmatprep.mubr.bf16.mxu0 0
    %651 = vmatmul.mubr.bf16.gmra.mrb[0].mxu0 %v252
    %v652 = vpop.f32.mrb[0].mxu0
    %v653 = vadd.f32 0.0, %v652
    %v654 = vpop.f32.mrb[0].mxu0
    %v655 = vpop.f32.mrb[0].mxu0
    %v656 = vadd.f32 0.0, %v655
    %v657 = vpop.f32.mrb[0].mxu0
    %658 = vmatprep.mubr.bf16.mxu0 0
    %659 = vmatmul.mubr.bf16.gmra.mrb[0].mxu0 %v255
    %v660 = vpop.f32.mrb[0].mxu0
    %v661 = vadd.f32 0.0, %v660
    %v662 = vpop.f32.mrb[0].mxu0
    %v663 = vpop.f32.mrb[0].mxu0
    %v664 = vadd.f32 0.0, %v663
    %v665 = vpop.f32.mrb[0].mxu0
    %666 = vmatprep.mubr.bf16.mxu0 0
    %667 = vmatmul.mubr.bf16.gmra.mrb[0].mxu0 %v258
    %v668 = vpop.f32.mrb[0].mxu0
    %v669 = vadd.f32 0.0, %v668
    %v670 = vpop.f32.mrb[0].mxu0
    %v671 = vpop.f32.mrb[0].mxu0
    %v672 = vadd.f32 0.0, %v671
    %v673 = vpop.f32.mrb[0].mxu0
    %674 = vmatprep.mubr.bf16.mxu0 0
    %675 = vmatmul.mubr.bf16.gmra.mrb[0].mxu0 %v261
    %v676 = vpop.f32.mrb[0].mxu0
    %v677 = vadd.f32 0.0, %v676
    %v678 = vpop.f32.mrb[0].mxu0
    %v679 = vpop.f32.mrb[0].mxu0
    %v680 = vadd.f32 0.0, %v679
    %v681 = vpop.f32.mrb[0].mxu0
    %682 = vmatprep.mubr.bf16.mxu0 0
    %683 = vmatmul.mubr.bf16.gmra.mrb[0].mxu0 %v264
    %v684 = vpop.f32.mrb[0].mxu0
    %v685 = vadd.f32 0.0, %v684
    %v686 = vpop.f32.mrb[0].mxu0
    %v687 = vpop.f32.mrb[0].mxu0
    %v688 = vadd.f32 0.0, %v687
    %v689 = vpop.f32.mrb[0].mxu0
    %690 = vmatprep.mubr.bf16.mxu0 0
    %691 = vmatmul.mubr.bf16.gmra.mrb[0].mxu0 %v267
    %v692 = vpop.f32.mrb[0].mxu0
    %v693 = vadd.f32 0.0, %v692
    %v694 = vpop.f32.mrb[0].mxu0
    %v695 = vpop.f32.mrb[0].mxu0
    %v696 = vadd.f32 0.0, %v695
    %v697 = vpop.f32.mrb[0].mxu0
    %698 = vmatprep.mubr.bf16.mxu0 0
    %699 = vmatmul.mubr.bf16.gmra.mrb[0].mxu0 %v373
    %v700 = vpop.f32.mrb[0].mxu0
    %v701 = vadd.f32 0.0, %v700
    %v702 = vpop.f32.mrb[0].mxu0
    %v703 = vpop.f32.mrb[0].mxu0
    %v704 = vadd.f32 0.0, %v703
    %v705 = vpop.f32.mrb[0].mxu0
    %706 = vmatprep.mubr.bf16.mxu0 0
    %707 = vmatmul.mubr.bf16.gmra.mrb[0].mxu0 %v246
    %v708 = vpop.f32.mrb[0].mxu0
    %v709 = vadd.f32 0.0, %v708
    %v710 = vpop.f32.mrb[0].mxu0
    %v711 = vpop.f32.mrb[0].mxu0
    %v712 = vadd.f32 0.0, %v711
    %v713 = vpop.f32.mrb[0].mxu0
    %714 = vdwg.mxu0
    %v715 = vadd.f32 %v597, %v653
    %v716 = vadd.f32 %v598, %v656
    %v717 = vadd.f32 %v599, %v661
    %v718 = vadd.f32 %v600, %v664
    %v719 = vadd.f32 %v601, %v669
    %v720 = vadd.f32 %v602, %v672
    %v721 = vadd.f32 %v603, %v677
    %v722 = vadd.f32 %v604, %v680
    %v723 = vadd.f32 %v605, %v685
    %v724 = vadd.f32 %v606, %v688
    %v725 = vadd.f32 %v607, %v693
    %v726 = vadd.f32 %v608, %v696
    %v727 = vadd.f32 %v609, %v701
    %v728 = vadd.f32 %v610, %v704
    %v729 = vadd.f32 %v611, %v709
    %v730 = vadd.f32 %v612, %v712
    %v731 = vld [vmem:[%s2] sm:$0x1]
    %v733 = vlaneseq
    %v734 = vshrl.u32 %v733, 7
    %v735 = vsub.s32 0, %v734
    %v736 = vrot.slane %v731, %v735
    %v738 = vadd.f32 %v715, %v736
    %v739 = vadd.f32 %v716, %v736
    %v740 = vadd.f32 %v717, %v736
    %v741 = vadd.f32 %v718, %v736
    %v742 = vadd.f32 %v719, %v736
    %v743 = vadd.f32 %v720, %v736
    %v744 = vadd.f32 %v721, %v736
    %v745 = vadd.f32 %v722, %v736
    %v746 = vadd.f32 %v723, %v736
    %v747 = vadd.f32 %v724, %v736
    %v748 = vadd.f32 %v725, %v736
    %v749 = vadd.f32 %v726, %v736
    %v750 = vadd.f32 %v727, %v736
    %v751 = vadd.f32 %v728, %v736
    %v752 = vadd.f32 %v729, %v736
    %v753 = vadd.f32 %v730, %v736
    %v754 = vmax.f32 %v738, 0.0
    %v755 = vmax.f32 %v739, 0.0
    %v756 = vmax.f32 %v740, 0.0
    %v757 = vmax.f32 %v741, 0.0
    %v758 = vmax.f32 %v742, 0.0
    %v759 = vmax.f32 %v743, 0.0
    %v760 = vmax.f32 %v744, 0.0
    %v761 = vmax.f32 %v745, 0.0
    %v762 = vmax.f32 %v746, 0.0
    %v763 = vmax.f32 %v747, 0.0
    %v764 = vmax.f32 %v748, 0.0
    %v765 = vmax.f32 %v749, 0.0
    %v766 = vmax.f32 %v750, 0.0
    %v767 = vmax.f32 %v751, 0.0
    %v768 = vmax.f32 %v752, 0.0
    %v769 = vmax.f32 %v753, 0.0
    %v770 = vpack.c.bf16 %v754, 0.0
    %v771 = vpack.c.bf16 %v756, %v755
    %v772 = vpack.c.bf16 %v758, %v757
    %v773 = vpack.c.bf16 %v760, %v759
    %v774 = vpack.c.bf16 %v762, %v761
    %v775 = vpack.c.bf16 %v764, %v763
    %v776 = vpack.c.bf16 %v766, %v765
    %v777 = vpack.c.bf16 %v768, %v767
    %v778 = vld [vmem:[#allocation3] sm:$0xf]
    %v779 = vld [vmem:[#allocation3 + $0x4] sm:$0xf]
    %v780 = vld [vmem:[#allocation3 + $0x8] sm:$0xf]
    %v781 = vld [vmem:[#allocation3 + $0xc] sm:$0xf]
    %v782 = vld [vmem:[#allocation3 + $0x10] sm:$0xf]
    %v783 = vld [vmem:[#allocation3 + $0x14] sm:$0xf]
    %v784 = vld [vmem:[#allocation3 + $0x18] sm:$0xf]
    %v785 = vld [vmem:[#allocation3 + $0x1c] sm:$0xf]
    %v786 = vpack.c.bf16 %v755, %v754
    %v787 = vpack.c.bf16 %v757, %v756
    %v788 = vpack.c.bf16 %v759, %v758
    %v789 = vpack.c.bf16 %v761, %v760
    %v790 = vpack.c.bf16 %v763, %v762
    %v791 = vpack.c.bf16 %v765, %v764
    %v792 = vpack.c.bf16 %v767, %v766
    %v793 = vpack.c.bf16 %v769, %v768
    %s794 = scalar_lea.vmem [#allocation3], 32
    %v795 = vld [vmem:[%s794] sm:$0xf]
    %v796 = vld [vmem:[%s794 + $0x4] sm:$0xf]
    %v797 = vld [vmem:[%s794 + $0x8] sm:$0xf]
    %v798 = vld [vmem:[%s794 + $0xc] sm:$0xf]
    %v799 = vld [vmem:[%s794 + $0x10] sm:$0xf]
    %v800 = vld [vmem:[%s794 + $0x14] sm:$0xf]
    %v801 = vld [vmem:[%s794 + $0x18] sm:$0xf]
    %v802 = vld [vmem:[%s794 + $0x1c] sm:$0xf]
    %v811 = vunpack.c.l.b16 %v795
    %v812 = vunpack.c.l.b16 %v796
    %v813 = vunpack.c.l.b16 %v797
    %v814 = vunpack.c.l.b16 %v798
    %v815 = vunpack.c.l.b16 %v799
    %v816 = vunpack.c.l.b16 %v800
    %v817 = vunpack.c.l.b16 %v801
    %v818 = vunpack.c.l.b16 %v802
    %v819 = vpack.c.b16 %v812, %v811
    %v820 = vpack.c.b16 %v814, %v813
    %v821 = vpack.c.b16 %v816, %v815
    %v822 = vpack.c.b16 %v818, %v817
    %vm827 = vcmask 523264
    %v829 = vsel %vm827, %v786, 0
    %v832 = vsel %vm827, %v787, 0
    %v835 = vsel %vm827, %v788, 0
    %v838 = vsel %vm827, %v789, 0
    %v841 = vsel %vm827, %v790, 0
    %v844 = vsel %vm827, %v791, 0
    %v847 = vsel %vm827, %v792, 0
    %v850 = vsel %vm827, %v793, 0
    %852 = vmatprep.subr.bf16.mxu0 0
    %853 = vmatpush1.bf16.msra.mxu0 %v819
    %854 = vmatprep.subr.bf16.mxu0 0
    %855 = vmatpush1.bf16.msra.mxu0 %v820
    %856 = vmatprep.subr.bf16.mxu0 0
    %857 = vmatpush1.bf16.msra.mxu0 %v821
    %858 = vmatprep.subr.bf16.mxu0 0
    %859 = vmatpush1.bf16.msra.mxu0 %v822
    %860 = vmatprep.subr.bf16.mxu0 0
    %861 = vmatpush1.bf16.msra.mxu0 0
    %862 = vmatprep.subr.bf16.mxu0 0
    %863 = vmatpush1.bf16.msra.mxu0 0
    %864 = vmatprep.subr.bf16.mxu0 0
    %865 = vmatpush1.bf16.msra.mxu0 0
    %866 = vmatprep.subr.bf16.mxu0 0
    %867 = vmatpush1.bf16.msra.mxu0 0
    %868 = vmatprep.subr.bf16.mxu0 0
    %869 = vmatpush1.bf16.msra.mxu0 0
    %870 = vmatprep.subr.bf16.mxu0 0
    %871 = vmatpush1.bf16.msra.mxu0 0
    %872 = vmatprep.subr.bf16.mxu0 0
    %873 = vmatpush1.bf16.msra.mxu0 0
    %874 = vmatprep.subr.bf16.mxu0 0
    %875 = vmatpush1.bf16.msra.mxu0 0
    %876 = vmatprep.subr.bf16.mxu0 0
    %877 = vmatpush1.bf16.msra.mxu0 0
    %878 = vmatprep.subr.bf16.mxu0 0
    %879 = vmatpush1.bf16.msra.mxu0 0
    %880 = vmatprep.subr.bf16.mxu0 0
    %881 = vmatpush1.bf16.msra.mxu0 0
    %882 = vmatprep.subr.bf16.mxu0 0
    %883 = vmatpush1.bf16.msra.mxu0 0
    %884 = vmatprep.mubr.bf16.mxu0 0
    %885 = vmatmul.mubr.bf16.gmra.mrb[0].mxu0 %v829
    %v886 = vpop.f32.mrb[0].mxu0
    %v887 = vadd.f32 0.0, %v886
    %v888 = vpop.f32.mrb[0].mxu0
    %v889 = vpop.f32.mrb[0].mxu0
    %v890 = vadd.f32 0.0, %v889
    %v891 = vpop.f32.mrb[0].mxu0
    %892 = vmatprep.mubr.bf16.mxu0 0
    %893 = vmatmul.mubr.bf16.gmra.mrb[0].mxu0 %v832
    %v894 = vpop.f32.mrb[0].mxu0
    %v895 = vadd.f32 0.0, %v894
    %v896 = vpop.f32.mrb[0].mxu0
    %v897 = vpop.f32.mrb[0].mxu0
    %v898 = vadd.f32 0.0, %v897
    %v899 = vpop.f32.mrb[0].mxu0
    %900 = vmatprep.mubr.bf16.mxu0 0
    %901 = vmatmul.mubr.bf16.gmra.mrb[0].mxu0 %v835
    %v902 = vpop.f32.mrb[0].mxu0
    %v903 = vadd.f32 0.0, %v902
    %v904 = vpop.f32.mrb[0].mxu0
    %v905 = vpop.f32.mrb[0].mxu0
    %v906 = vadd.f32 0.0, %v905
    %v907 = vpop.f32.mrb[0].mxu0
    %908 = vmatprep.mubr.bf16.mxu0 0
    %909 = vmatmul.mubr.bf16.gmra.mrb[0].mxu0 %v838
    %v910 = vpop.f32.mrb[0].mxu0
    %v911 = vadd.f32 0.0, %v910
    %v912 = vpop.f32.mrb[0].mxu0
    %v913 = vpop.f32.mrb[0].mxu0
    %v914 = vadd.f32 0.0, %v913
    %v915 = vpop.f32.mrb[0].mxu0
    %916 = vmatprep.mubr.bf16.mxu0 0
    %917 = vmatmul.mubr.bf16.gmra.mrb[0].mxu0 %v841
    %v918 = vpop.f32.mrb[0].mxu0
    %v919 = vadd.f32 0.0, %v918
    %v920 = vpop.f32.mrb[0].mxu0
    %v921 = vpop.f32.mrb[0].mxu0
    %v922 = vadd.f32 0.0, %v921
    %v923 = vpop.f32.mrb[0].mxu0
    %924 = vmatprep.mubr.bf16.mxu0 0
    %925 = vmatmul.mubr.bf16.gmra.mrb[0].mxu0 %v844
    %v926 = vpop.f32.mrb[0].mxu0
    %v927 = vadd.f32 0.0, %v926
    %v928 = vpop.f32.mrb[0].mxu0
    %v929 = vpop.f32.mrb[0].mxu0
    %v930 = vadd.f32 0.0, %v929
    %v931 = vpop.f32.mrb[0].mxu0
    %932 = vmatprep.mubr.bf16.mxu0 0
    %933 = vmatmul.mubr.bf16.gmra.mrb[0].mxu0 %v847
    %v934 = vpop.f32.mrb[0].mxu0
    %v935 = vadd.f32 0.0, %v934
    %v936 = vpop.f32.mrb[0].mxu0
    %v937 = vpop.f32.mrb[0].mxu0
    %v938 = vadd.f32 0.0, %v937
    %v939 = vpop.f32.mrb[0].mxu0
    %940 = vmatprep.mubr.bf16.mxu0 0
    %941 = vmatmul.mubr.bf16.gmra.mrb[0].mxu0 %v850
    %v942 = vpop.f32.mrb[0].mxu0
    %v943 = vadd.f32 0.0, %v942
    %v944 = vpop.f32.mrb[0].mxu0
    %v945 = vpop.f32.mrb[0].mxu0
    %v946 = vadd.f32 0.0, %v945
    %v947 = vpop.f32.mrb[0].mxu0
    %948 = vdwg.mxu0
    %v957 = vunpack.c.l.b16 %v778
    %v958 = vunpack.c.l.b16 %v779
    %v959 = vunpack.c.l.b16 %v780
    %v960 = vunpack.c.l.b16 %v781
    %v961 = vunpack.c.l.b16 %v782
    %v962 = vunpack.c.l.b16 %v783
    %v963 = vunpack.c.l.b16 %v784
    %v964 = vunpack.c.l.b16 %v785
    %v965 = vpack.c.b16 %v958, %v957
    %v966 = vpack.c.b16 %v960, %v959
    %v967 = vpack.c.b16 %v962, %v961
    %v968 = vpack.c.b16 %v964, %v963
    %v974 = vsel %vm827, %v770, 0
    %v977 = vsel %vm827, %v771, 0
    %v980 = vsel %vm827, %v772, 0
    %v983 = vsel %vm827, %v773, 0
    %v986 = vsel %vm827, %v774, 0
    %v989 = vsel %vm827, %v775, 0
    %v992 = vsel %vm827, %v776, 0
    %v995 = vsel %vm827, %v777, 0
    %997 = vmatprep.subr.bf16.mxu0 0
    %998 = vmatpush1.bf16.msra.mxu0 %v965
    %999 = vmatprep.subr.bf16.mxu0 0
    %1000 = vmatpush1.bf16.msra.mxu0 %v966
    %1001 = vmatprep.subr.bf16.mxu0 0
    %1002 = vmatpush1.bf16.msra.mxu0 %v967
    %1003 = vmatprep.subr.bf16.mxu0 0
    %1004 = vmatpush1.bf16.msra.mxu0 %v968
    %1005 = vmatprep.subr.bf16.mxu0 0
    %1006 = vmatpush1.bf16.msra.mxu0 0
    %1007 = vmatprep.subr.bf16.mxu0 0
    %1008 = vmatpush1.bf16.msra.mxu0 0
    %1009 = vmatprep.subr.bf16.mxu0 0
    %1010 = vmatpush1.bf16.msra.mxu0 0
    %1011 = vmatprep.subr.bf16.mxu0 0
    %1012 = vmatpush1.bf16.msra.mxu0 0
    %1013 = vmatprep.subr.bf16.mxu0 0
    %1014 = vmatpush1.bf16.msra.mxu0 0
    %1015 = vmatprep.subr.bf16.mxu0 0
    %1016 = vmatpush1.bf16.msra.mxu0 0
    %1017 = vmatprep.subr.bf16.mxu0 0
    %1018 = vmatpush1.bf16.msra.mxu0 0
    %1019 = vmatprep.subr.bf16.mxu0 0
    %1020 = vmatpush1.bf16.msra.mxu0 0
    %1021 = vmatprep.subr.bf16.mxu0 0
    %1022 = vmatpush1.bf16.msra.mxu0 0
    %1023 = vmatprep.subr.bf16.mxu0 0
    %1024 = vmatpush1.bf16.msra.mxu0 0
    %1025 = vmatprep.subr.bf16.mxu0 0
    %1026 = vmatpush1.bf16.msra.mxu0 0
    %1027 = vmatprep.subr.bf16.mxu0 0
    %1028 = vmatpush1.bf16.msra.mxu0 0
    %1029 = vmatprep.mubr.bf16.mxu0 0
    %1030 = vmatmul.mubr.bf16.gmra.mrb[0].mxu0 %v974
    %v1031 = vpop.f32.mrb[0].mxu0
    %v1032 = vadd.f32 %v887, %v1031
    %v1033 = vpop.f32.mrb[0].mxu0
    %v1034 = vpop.f32.mrb[0].mxu0
    %v1035 = vadd.f32 %v890, %v1034
    %v1036 = vpop.f32.mrb[0].mxu0
    %1037 = vmatprep.mubr.bf16.mxu0 0
    %1038 = vmatmul.mubr.bf16.gmra.mrb[0].mxu0 %v977
    %v1039 = vpop.f32.mrb[0].mxu0
    %v1040 = vadd.f32 %v895, %v1039
    %v1041 = vpop.f32.mrb[0].mxu0
    %v1042 = vpop.f32.mrb[0].mxu0
    %v1043 = vadd.f32 %v898, %v1042
    %v1044 = vpop.f32.mrb[0].mxu0
    %1045 = vmatprep.mubr.bf16.mxu0 0
    %1046 = vmatmul.mubr.bf16.gmra.mrb[0].mxu0 %v980
    %v1047 = vpop.f32.mrb[0].mxu0
    %v1048 = vadd.f32 %v903, %v1047
    %v1049 = vpop.f32.mrb[0].mxu0
    %v1050 = vpop.f32.mrb[0].mxu0
    %v1051 = vadd.f32 %v906, %v1050
    %v1052 = vpop.f32.mrb[0].mxu0
    %1053 = vmatprep.mubr.bf16.mxu0 0
    %1054 = vmatmul.mubr.bf16.gmra.mrb[0].mxu0 %v983
    %v1055 = vpop.f32.mrb[0].mxu0
    %v1056 = vadd.f32 %v911, %v1055
    %v1057 = vpop.f32.mrb[0].mxu0
    %v1058 = vpop.f32.mrb[0].mxu0
    %v1059 = vadd.f32 %v914, %v1058
    %v1060 = vpop.f32.mrb[0].mxu0
    %1061 = vmatprep.mubr.bf16.mxu0 0
    %1062 = vmatmul.mubr.bf16.gmra.mrb[0].mxu0 %v986
    %v1063 = vpop.f32.mrb[0].mxu0
    %v1064 = vadd.f32 %v919, %v1063
    %v1065 = vpop.f32.mrb[0].mxu0
    %v1066 = vpop.f32.mrb[0].mxu0
    %v1067 = vadd.f32 %v922, %v1066
    %v1068 = vpop.f32.mrb[0].mxu0
    %1069 = vmatprep.mubr.bf16.mxu0 0
    %1070 = vmatmul.mubr.bf16.gmra.mrb[0].mxu0 %v989
    %v1071 = vpop.f32.mrb[0].mxu0
    %v1072 = vadd.f32 %v927, %v1071
    %v1073 = vpop.f32.mrb[0].mxu0
    %v1074 = vpop.f32.mrb[0].mxu0
    %v1075 = vadd.f32 %v930, %v1074
    %v1076 = vpop.f32.mrb[0].mxu0
    %1077 = vmatprep.mubr.bf16.mxu0 0
    %1078 = vmatmul.mubr.bf16.gmra.mrb[0].mxu0 %v992
    %v1079 = vpop.f32.mrb[0].mxu0
    %v1080 = vadd.f32 %v935, %v1079
    %v1081 = vpop.f32.mrb[0].mxu0
    %v1082 = vpop.f32.mrb[0].mxu0
    %v1083 = vadd.f32 %v938, %v1082
    %v1084 = vpop.f32.mrb[0].mxu0
    %1085 = vmatprep.mubr.bf16.mxu0 0
    %1086 = vmatmul.mubr.bf16.gmra.mrb[0].mxu0 %v995
    %v1087 = vpop.f32.mrb[0].mxu0
    %v1088 = vadd.f32 %v943, %v1087
    %v1089 = vpop.f32.mrb[0].mxu0
    %v1090 = vpop.f32.mrb[0].mxu0
    %v1091 = vadd.f32 %v946, %v1090
    %v1092 = vpop.f32.mrb[0].mxu0
    %1093 = vdwg.mxu0
    %v1094 = vpack.c.bf16 0.0, %v769
    %s1095 = scalar_lea.vmem [#allocation3], 64
    %v1096 = vld [vmem:[%s1095] sm:$0xf]
    %v1097 = vld [vmem:[%s1095 + $0x4] sm:$0xf]
    %v1098 = vld [vmem:[%s1095 + $0x8] sm:$0xf]
    %v1099 = vld [vmem:[%s1095 + $0xc] sm:$0xf]
    %v1100 = vld [vmem:[%s1095 + $0x10] sm:$0xf]
    %v1101 = vld [vmem:[%s1095 + $0x14] sm:$0xf]
    %v1102 = vld [vmem:[%s1095 + $0x18] sm:$0xf]
    %v1103 = vld [vmem:[%s1095 + $0x1c] sm:$0xf]
    %v1112 = vunpack.c.l.b16 %v1096
    %v1113 = vunpack.c.l.b16 %v1097
    %v1114 = vunpack.c.l.b16 %v1098
    %v1115 = vunpack.c.l.b16 %v1099
    %v1116 = vunpack.c.l.b16 %v1100
    %v1117 = vunpack.c.l.b16 %v1101
    %v1118 = vunpack.c.l.b16 %v1102
    %v1119 = vunpack.c.l.b16 %v1103
    %v1120 = vpack.c.b16 %v1113, %v1112
    %v1121 = vpack.c.b16 %v1115, %v1114
    %v1122 = vpack.c.b16 %v1117, %v1116
    %v1123 = vpack.c.b16 %v1119, %v1118
    %v1129 = vsel %vm827, %v1094, 0
    %1131 = vmatprep.subr.bf16.mxu0 0
    %1132 = vmatpush1.bf16.msra.mxu0 %v1120
    %1133 = vmatprep.subr.bf16.mxu0 0
    %1134 = vmatpush1.bf16.msra.mxu0 %v1121
    %1135 = vmatprep.subr.bf16.mxu0 0
    %1136 = vmatpush1.bf16.msra.mxu0 %v1122
    %1137 = vmatprep.subr.bf16.mxu0 0
    %1138 = vmatpush1.bf16.msra.mxu0 %v1123
    %1139 = vmatprep.subr.bf16.mxu0 0
    %1140 = vmatpush1.bf16.msra.mxu0 0
    %1141 = vmatprep.subr.bf16.mxu0 0
    %1142 = vmatpush1.bf16.msra.mxu0 0
    %1143 = vmatprep.subr.bf16.mxu0 0
    %1144 = vmatpush1.bf16.msra.mxu0 0
    %1145 = vmatprep.subr.bf16.mxu0 0
    %1146 = vmatpush1.bf16.msra.mxu0 0
    %1147 = vmatprep.subr.bf16.mxu0 0
    %1148 = vmatpush1.bf16.msra.mxu0 0
    %1149 = vmatprep.subr.bf16.mxu0 0
    %1150 = vmatpush1.bf16.msra.mxu0 0
    %1151 = vmatprep.subr.bf16.mxu0 0
    %1152 = vmatpush1.bf16.msra.mxu0 0
    %1153 = vmatprep.subr.bf16.mxu0 0
    %1154 = vmatpush1.bf16.msra.mxu0 0
    %1155 = vmatprep.subr.bf16.mxu0 0
    %1156 = vmatpush1.bf16.msra.mxu0 0
    %1157 = vmatprep.subr.bf16.mxu0 0
    %1158 = vmatpush1.bf16.msra.mxu0 0
    %1159 = vmatprep.subr.bf16.mxu0 0
    %1160 = vmatpush1.bf16.msra.mxu0 0
    %1161 = vmatprep.subr.bf16.mxu0 0
    %1162 = vmatpush1.bf16.msra.mxu0 0
    %1163 = vmatprep.mubr.bf16.mxu0 0
    %1164 = vmatmul.mubr.bf16.gmra.mrb[0].mxu0 %v977
    %v1165 = vpop.f32.mrb[0].mxu0
    %v1166 = vadd.f32 0.0, %v1165
    %v1167 = vpop.f32.mrb[0].mxu0
    %v1168 = vpop.f32.mrb[0].mxu0
    %v1169 = vadd.f32 0.0, %v1168
    %v1170 = vpop.f32.mrb[0].mxu0
    %1171 = vmatprep.mubr.bf16.mxu0 0
    %1172 = vmatmul.mubr.bf16.gmra.mrb[0].mxu0 %v980
    %v1173 = vpop.f32.mrb[0].mxu0
    %v1174 = vadd.f32 0.0, %v1173
    %v1175 = vpop.f32.mrb[0].mxu0
    %v1176 = vpop.f32.mrb[0].mxu0
    %v1177 = vadd.f32 0.0, %v1176
    %v1178 = vpop.f32.mrb[0].mxu0
    %1179 = vmatprep.mubr.bf16.mxu0 0
    %1180 = vmatmul.mubr.bf16.gmra.mrb[0].mxu0 %v983
    %v1181 = vpop.f32.mrb[0].mxu0
    %v1182 = vadd.f32 0.0, %v1181
    %v1183 = vpop.f32.mrb[0].mxu0
    %v1184 = vpop.f32.mrb[0].mxu0
    %v1185 = vadd.f32 0.0, %v1184
    %v1186 = vpop.f32.mrb[0].mxu0
    %1187 = vmatprep.mubr.bf16.mxu0 0
    %1188 = vmatmul.mubr.bf16.gmra.mrb[0].mxu0 %v986
    %v1189 = vpop.f32.mrb[0].mxu0
    %v1190 = vadd.f32 0.0, %v1189
    %v1191 = vpop.f32.mrb[0].mxu0
    %v1192 = vpop.f32.mrb[0].mxu0
    %v1193 = vadd.f32 0.0, %v1192
    %v1194 = vpop.f32.mrb[0].mxu0
    %1195 = vmatprep.mubr.bf16.mxu0 0
    %1196 = vmatmul.mubr.bf16.gmra.mrb[0].mxu0 %v989
    %v1197 = vpop.f32.mrb[0].mxu0
    %v1198 = vadd.f32 0.0, %v1197
    %v1199 = vpop.f32.mrb[0].mxu0
    %v1200 = vpop.f32.mrb[0].mxu0
    %v1201 = vadd.f32 0.0, %v1200
    %v1202 = vpop.f32.mrb[0].mxu0
    %1203 = vmatprep.mubr.bf16.mxu0 0
    %1204 = vmatmul.mubr.bf16.gmra.mrb[0].mxu0 %v992
    %v1205 = vpop.f32.mrb[0].mxu0
    %v1206 = vadd.f32 0.0, %v1205
    %v1207 = vpop.f32.mrb[0].mxu0
    %v1208 = vpop.f32.mrb[0].mxu0
    %v1209 = vadd.f32 0.0, %v1208
    %v1210 = vpop.f32.mrb[0].mxu0
    %1211 = vmatprep.mubr.bf16.mxu0 0
    %1212 = vmatmul.mubr.bf16.gmra.mrb[0].mxu0 %v995
    %v1213 = vpop.f32.mrb[0].mxu0
    %v1214 = vadd.f32 0.0, %v1213
    %v1215 = vpop.f32.mrb[0].mxu0
    %v1216 = vpop.f32.mrb[0].mxu0
    %v1217 = vadd.f32 0.0, %v1216
    %v1218 = vpop.f32.mrb[0].mxu0
    %1219 = vmatprep.mubr.bf16.mxu0 0
    %1220 = vmatmul.mubr.bf16.gmra.mrb[0].mxu0 %v1129
    %v1221 = vpop.f32.mrb[0].mxu0
    %v1222 = vadd.f32 0.0, %v1221
    %v1223 = vpop.f32.mrb[0].mxu0
    %v1224 = vpop.f32.mrb[0].mxu0
    %v1225 = vadd.f32 0.0, %v1224
    %v1226 = vpop.f32.mrb[0].mxu0
    %1227 = vdwg.mxu0
    %v1228 = vadd.f32 %v1032, %v1166
    %v1229 = vadd.f32 %v1035, %v1169
    %v1230 = vadd.f32 %v1040, %v1174
    %v1231 = vadd.f32 %v1043, %v1177
    %v1232 = vadd.f32 %v1048, %v1182
    %v1233 = vadd.f32 %v1051, %v1185
    %v1234 = vadd.f32 %v1056, %v1190
    %v1235 = vadd.f32 %v1059, %v1193
    %v1236 = vadd.f32 %v1064, %v1198
    %v1237 = vadd.f32 %v1067, %v1201
    %v1238 = vadd.f32 %v1072, %v1206
    %v1239 = vadd.f32 %v1075, %v1209
    %v1240 = vadd.f32 %v1080, %v1214
    %v1241 = vadd.f32 %v1083, %v1217
    %v1242 = vadd.f32 %v1088, %v1222
    %v1243 = vadd.f32 %v1091, %v1225
    %v1244 = vld [vmem:[%s4] sm:$0x1]
    %v1246 = vlaneseq
    %v1247 = vshrl.u32 %v1246, 7
    %v1248 = vsub.s32 0, %v1247
    %v1249 = vrot.slane %v1244, %v1248
    %v1251 = vadd.f32 %v1228, %v1249
    %v1252 = vadd.f32 %v1229, %v1249
    %v1253 = vadd.f32 %v1230, %v1249
    %v1254 = vadd.f32 %v1231, %v1249
    %v1255 = vadd.f32 %v1232, %v1249
    %v1256 = vadd.f32 %v1233, %v1249
    %v1257 = vadd.f32 %v1234, %v1249
    %v1258 = vadd.f32 %v1235, %v1249
    %v1259 = vadd.f32 %v1236, %v1249
    %v1260 = vadd.f32 %v1237, %v1249
    %v1261 = vadd.f32 %v1238, %v1249
    %v1262 = vadd.f32 %v1239, %v1249
    %v1263 = vadd.f32 %v1240, %v1249
    %v1264 = vadd.f32 %v1241, %v1249
    %v1265 = vadd.f32 %v1242, %v1249
    %v1266 = vadd.f32 %v1243, %v1249
    %v1267 = vmax.f32 %v1251, 0.0
    %v1268 = vmax.f32 %v1252, 0.0
    %v1269 = vmax.f32 %v1253, 0.0
    %v1270 = vmax.f32 %v1254, 0.0
    %v1271 = vmax.f32 %v1255, 0.0
    %v1272 = vmax.f32 %v1256, 0.0
    %v1273 = vmax.f32 %v1257, 0.0
    %v1274 = vmax.f32 %v1258, 0.0
    %v1275 = vmax.f32 %v1259, 0.0
    %v1276 = vmax.f32 %v1260, 0.0
    %v1277 = vmax.f32 %v1261, 0.0
    %v1278 = vmax.f32 %v1262, 0.0
    %v1279 = vmax.f32 %v1263, 0.0
    %v1280 = vmax.f32 %v1264, 0.0
    %v1281 = vmax.f32 %v1265, 0.0
    %v1282 = vmax.f32 %v1266, 0.0
    %v1283 = vpack.c.bf16 %v1268, %v1267
    %v1284 = vpack.c.bf16 %v1270, %v1269
    %v1285 = vpack.c.bf16 %v1272, %v1271
    %v1286 = vpack.c.bf16 %v1274, %v1273
    %v1287 = vpack.c.bf16 %v1276, %v1275
    %v1288 = vpack.c.bf16 %v1278, %v1277
    %v1289 = vpack.c.bf16 %v1280, %v1279
    %v1290 = vpack.c.bf16 %v1282, %v1281
    %v1291 = vld [vmem:[%s5] sm:$0xff]
    %v1292 = vld [vmem:[%s5 + $0x8] sm:$0xf]
    %v1293 = vld [vmem:[%s5 + $0xc] sm:$0xff]
    %v1294 = vld [vmem:[%s5 + $0x14] sm:$0xf]
    %v1295 = vld [vmem:[%s5 + $0x18] sm:$0xff]
    %v1296 = vld [vmem:[%s5 + $0x20] sm:$0xf]
    %v1297 = vld [vmem:[%s5 + $0x24] sm:$0xff]
    %v1298 = vld [vmem:[%s5 + $0x2c] sm:$0xf]
    %v1299 = vld [vmem:[%s5 + $0x30] sm:$0xff]
    %v1300 = vld [vmem:[%s5 + $0x38] sm:$0xf]
    %v1301 = vld [vmem:[%s5 + $0x3c] sm:$0xff]
    %v1302 = vld [vmem:[%s5 + $0x44] sm:$0xf]
    %v1303 = vld [vmem:[%s5 + $0x48] sm:$0xff]
    %v1304 = vld [vmem:[%s5 + $0x50] sm:$0xf]
    %v1305 = vld [vmem:[%s5 + $0x54] sm:$0xff]
    %v1306 = vld [vmem:[%s5 + $0x5c] sm:$0xf]
    %v1307 = vld [vmem:[%s5 + $0x60] sm:$0xff]
    %v1308 = vld [vmem:[%s5 + $0x68] sm:$0xf]
    %v1309 = vld [vmem:[%s5 + $0x6c] sm:$0xff]
    %v1310 = vld [vmem:[%s5 + $0x74] sm:$0xf]
    %v1311 = vld [vmem:[%s5 + $0x78] sm:$0xff]
    %v1312 = vld [vmem:[%s5 + $0x80] sm:$0xf]
    %v1313 = vld [vmem:[%s5 + $0x84] sm:$0xff]
    %v1314 = vld [vmem:[%s5 + $0x8c] sm:$0xf]
    %v1315 = vld [vmem:[%s5 + $0x90] sm:$0xff]
    %v1316 = vld [vmem:[%s5 + $0x98] sm:$0xf]
    %v1317 = vld [vmem:[%s5 + $0x9c] sm:$0xff]
    %v1318 = vld [vmem:[%s5 + $0xa4] sm:$0xf]
    %v1319 = vld [vmem:[%s5 + $0xa8] sm:$0xff]
    %v1320 = vld [vmem:[%s5 + $0xb0] sm:$0xf]
    %v1321 = vld [vmem:[%s5 + $0xb4] sm:$0xff]
    %v1322 = vld [vmem:[%s5 + $0xbc] sm:$0xf]
    %v1323 = vld [vmem:[%s6] sm:$0x7]
    %v1325 = vlaneseq
    %v1326 = vshrl.u32 %v1325, 7
    %v1327 = vsub.s32 0, %v1326
    %v1328 = vrot.slane %v1323, %v1327
    %v1329 = vlaneseq
    %v1330 = vshrl.u32 %v1329, 7
    %v1331 = vsub.s32 1, %v1330
    %v1332 = vrot.slane %v1323, %v1331
    %v1333 = vlaneseq
    %v1334 = vshrl.u32 %v1333, 7
    %v1335 = vsub.s32 2, %v1334
    %v1336 = vrot.slane %v1323, %v1335
    %v1372 = vunpack.c.l.b16 %v1291
    %v1373 = vunpack.c.h.b16 %v1291
    %v1374 = vunpack.c.l.b16 %v1292
    %v1375 = vunpack.c.l.b16 %v1293
    %v1376 = vunpack.c.h.b16 %v1293
    %v1377 = vunpack.c.l.b16 %v1294
    %v1378 = vunpack.c.l.b16 %v1295
    %v1379 = vunpack.c.h.b16 %v1295
    %v1380 = vunpack.c.l.b16 %v1296
    %v1381 = vunpack.c.l.b16 %v1297
    %v1382 = vunpack.c.h.b16 %v1297
    %v1383 = vunpack.c.l.b16 %v1298
    %v1384 = vunpack.c.l.b16 %v1299
    %v1385 = vunpack.c.h.b16 %v1299
    %v1386 = vunpack.c.l.b16 %v1300
    %v1387 = vunpack.c.l.b16 %v1301
    %v1388 = vunpack.c.h.b16 %v1301
    %v1389 = vunpack.c.l.b16 %v1302
    %v1390 = vunpack.c.l.b16 %v1303
    %v1391 = vunpack.c.h.b16 %v1303
    %v1392 = vunpack.c.l.b16 %v1304
    %v1393 = vunpack.c.l.b16 %v1305
    %v1394 = vunpack.c.h.b16 %v1305
    %v1395 = vunpack.c.l.b16 %v1306
    %v1396 = vunpack.c.l.b16 %v1307
    %v1397 = vunpack.c.h.b16 %v1307
    %v1398 = vunpack.c.l.b16 %v1308
    %v1399 = vunpack.c.l.b16 %v1309
    %v1400 = vunpack.c.h.b16 %v1309
    %v1401 = vunpack.c.l.b16 %v1310
    %v1402 = vunpack.c.l.b16 %v1311
    %v1403 = vunpack.c.h.b16 %v1311
    %v1404 = vunpack.c.l.b16 %v1312
    %v1405 = vunpack.c.l.b16 %v1313
    %v1406 = vunpack.c.h.b16 %v1313
    %v1407 = vunpack.c.l.b16 %v1314
    %v1408 = vunpack.c.l.b16 %v1315
    %v1409 = vunpack.c.h.b16 %v1315
    %v1410 = vunpack.c.l.b16 %v1316
    %v1411 = vunpack.c.l.b16 %v1317
    %v1412 = vunpack.c.h.b16 %v1317
    %v1413 = vunpack.c.l.b16 %v1318
    %v1414 = vunpack.c.l.b16 %v1319
    %v1415 = vunpack.c.h.b16 %v1319
    %v1416 = vunpack.c.l.b16 %v1320
    %v1417 = vunpack.c.l.b16 %v1321
    %v1418 = vunpack.c.h.b16 %v1321
    %v1419 = vunpack.c.l.b16 %v1322
    %v1420 = vpack.c.b16 %v1375, %v1372
    %v1421 = vpack.c.b16 %v1376, %v1373
    %v1422 = vpack.c.b16 %v1377, %v1374
    %v1423 = vpack.c.b16 %v1381, %v1378
    %v1424 = vpack.c.b16 %v1382, %v1379
    %v1425 = vpack.c.b16 %v1383, %v1380
    %v1426 = vpack.c.b16 %v1387, %v1384
    %v1427 = vpack.c.b16 %v1388, %v1385
    %v1428 = vpack.c.b16 %v1389, %v1386
    %v1429 = vpack.c.b16 %v1393, %v1390
    %v1430 = vpack.c.b16 %v1394, %v1391
    %v1431 = vpack.c.b16 %v1395, %v1392
    %v1432 = vpack.c.b16 %v1399, %v1396
    %v1433 = vpack.c.b16 %v1400, %v1397
    %v1434 = vpack.c.b16 %v1401, %v1398
    %v1435 = vpack.c.b16 %v1405, %v1402
    %v1436 = vpack.c.b16 %v1406, %v1403
    %v1437 = vpack.c.b16 %v1407, %v1404
    %v1438 = vpack.c.b16 %v1411, %v1408
    %v1439 = vpack.c.b16 %v1412, %v1409
    %v1440 = vpack.c.b16 %v1413, %v1410
    %v1441 = vpack.c.b16 %v1417, %v1414
    %v1442 = vpack.c.b16 %v1418, %v1415
    %v1443 = vpack.c.b16 %v1419, %v1416
    %1468 = vmatprep.subr.bf16.mxu0 %v1421
    %1469 = vmatpush1.bf16.msra.mxu0 %v1420
    %1470 = vmatprep.subr.bf16.mxu0 %v1424
    %1471 = vmatpush1.bf16.msra.mxu0 %v1423
    %1472 = vmatprep.subr.bf16.mxu0 %v1427
    %1473 = vmatpush1.bf16.msra.mxu0 %v1426
    %1474 = vmatprep.subr.bf16.mxu0 %v1430
    %1475 = vmatpush1.bf16.msra.mxu0 %v1429
    %1476 = vmatprep.subr.bf16.mxu0 %v1433
    %1477 = vmatpush1.bf16.msra.mxu0 %v1432
    %1478 = vmatprep.subr.bf16.mxu0 %v1436
    %1479 = vmatpush1.bf16.msra.mxu0 %v1435
    %1480 = vmatprep.subr.bf16.mxu0 %v1439
    %1481 = vmatpush1.bf16.msra.mxu0 %v1438
    %1482 = vmatprep.subr.bf16.mxu0 %v1442
    %1483 = vmatpush1.bf16.msra.mxu0 %v1441
    %1484 = vmatprep.subr.bf16.mxu0 0
    %1485 = vmatpush1.bf16.msra.mxu0 0
    %1486 = vmatprep.subr.bf16.mxu0 0
    %1487 = vmatpush1.bf16.msra.mxu0 0
    %1488 = vmatprep.subr.bf16.mxu0 0
    %1489 = vmatpush1.bf16.msra.mxu0 0
    %1490 = vmatprep.subr.bf16.mxu0 0
    %1491 = vmatpush1.bf16.msra.mxu0 0
    %1492 = vmatprep.subr.bf16.mxu0 0
    %1493 = vmatpush1.bf16.msra.mxu0 0
    %1494 = vmatprep.subr.bf16.mxu0 0
    %1495 = vmatpush1.bf16.msra.mxu0 0
    %1496 = vmatprep.subr.bf16.mxu0 0
    %1497 = vmatpush1.bf16.msra.mxu0 0
    %1498 = vmatprep.subr.bf16.mxu0 0
    %1499 = vmatpush1.bf16.msra.mxu0 0
    %1500 = vmatprep.mubr.bf16.mxu0 0
    %1501 = vmatmul.mubr.bf16.gmra.mrb[0].mxu0 %v1283
    %v1502 = vpop.f32.mrb[0].mxu0
    %v1503 = vadd.f32 %v1328, %v1502
    %v1504 = vpop.f32.mrb[0].mxu0
    %v1505 = vadd.f32 %v1332, %v1504
    %v1506 = vpop.f32.mrb[0].mxu0
    %v1507 = vadd.f32 %v1328, %v1506
    %v1508 = vpop.f32.mrb[0].mxu0
    %v1509 = vadd.f32 %v1332, %v1508
    %1510 = vmatprep.mubr.bf16.mxu0 0
    %1511 = vmatmul.mubr.bf16.gmra.mrb[0].mxu0 %v1284
    %v1512 = vpop.f32.mrb[0].mxu0
    %v1513 = vadd.f32 %v1328, %v1512
    %v1514 = vpop.f32.mrb[0].mxu0
    %v1515 = vadd.f32 %v1332, %v1514
    %v1516 = vpop.f32.mrb[0].mxu0
    %v1517 = vadd.f32 %v1328, %v1516
    %v1518 = vpop.f32.mrb[0].mxu0
    %v1519 = vadd.f32 %v1332, %v1518
    %1520 = vmatprep.mubr.bf16.mxu0 0
    %1521 = vmatmul.mubr.bf16.gmra.mrb[0].mxu0 %v1285
    %v1522 = vpop.f32.mrb[0].mxu0
    %v1523 = vadd.f32 %v1328, %v1522
    %v1524 = vpop.f32.mrb[0].mxu0
    %v1525 = vadd.f32 %v1332, %v1524
    %v1526 = vpop.f32.mrb[0].mxu0
    %v1527 = vadd.f32 %v1328, %v1526
    %v1528 = vpop.f32.mrb[0].mxu0
    %v1529 = vadd.f32 %v1332, %v1528
    %1530 = vmatprep.mubr.bf16.mxu0 0
    %1531 = vmatmul.mubr.bf16.gmra.mrb[0].mxu0 %v1286
    %v1532 = vpop.f32.mrb[0].mxu0
    %v1533 = vadd.f32 %v1328, %v1532
    %v1534 = vpop.f32.mrb[0].mxu0
    %v1535 = vadd.f32 %v1332, %v1534
    %v1536 = vpop.f32.mrb[0].mxu0
    %v1537 = vadd.f32 %v1328, %v1536
    %v1538 = vpop.f32.mrb[0].mxu0
    %v1539 = vadd.f32 %v1332, %v1538
    %1540 = vmatprep.mubr.bf16.mxu0 0
    %1541 = vmatmul.mubr.bf16.gmra.mrb[0].mxu0 %v1287
    %v1542 = vpop.f32.mrb[0].mxu0
    %v1543 = vadd.f32 %v1328, %v1542
    %v1544 = vpop.f32.mrb[0].mxu0
    %v1545 = vadd.f32 %v1332, %v1544
    %v1546 = vpop.f32.mrb[0].mxu0
    %v1547 = vadd.f32 %v1328, %v1546
    %v1548 = vpop.f32.mrb[0].mxu0
    %v1549 = vadd.f32 %v1332, %v1548
    %1550 = vmatprep.mubr.bf16.mxu0 0
    %1551 = vmatmul.mubr.bf16.gmra.mrb[0].mxu0 %v1288
    %v1552 = vpop.f32.mrb[0].mxu0
    %v1553 = vadd.f32 %v1328, %v1552
    %v1554 = vpop.f32.mrb[0].mxu0
    %v1555 = vadd.f32 %v1332, %v1554
    %v1556 = vpop.f32.mrb[0].mxu0
    %v1557 = vadd.f32 %v1328, %v1556
    %v1558 = vpop.f32.mrb[0].mxu0
    %v1559 = vadd.f32 %v1332, %v1558
    %1560 = vmatprep.mubr.bf16.mxu0 0
    %1561 = vmatmul.mubr.bf16.gmra.mrb[0].mxu0 %v1289
    %v1562 = vpop.f32.mrb[0].mxu0
    %v1563 = vadd.f32 %v1328, %v1562
    %v1564 = vpop.f32.mrb[0].mxu0
    %v1565 = vadd.f32 %v1332, %v1564
    %v1566 = vpop.f32.mrb[0].mxu0
    %v1567 = vadd.f32 %v1328, %v1566
    %v1568 = vpop.f32.mrb[0].mxu0
    %v1569 = vadd.f32 %v1332, %v1568
    %1570 = vmatprep.mubr.bf16.mxu0 0
    %1571 = vmatmul.mubr.bf16.gmra.mrb[0].mxu0 %v1290
    %v1572 = vpop.f32.mrb[0].mxu0
    %v1573 = vadd.f32 %v1328, %v1572
    %v1574 = vpop.f32.mrb[0].mxu0
    %v1575 = vadd.f32 %v1332, %v1574
    %v1576 = vpop.f32.mrb[0].mxu0
    %v1577 = vadd.f32 %v1328, %v1576
    %v1578 = vpop.f32.mrb[0].mxu0
    %v1579 = vadd.f32 %v1332, %v1578
    %1580 = vdwg.mxu0
    %1581 = vmatprep.subr.bf16.mxu0 0
    %1582 = vmatpush1.bf16.msra.mxu0 %v1422
    %1583 = vmatprep.subr.bf16.mxu0 0
    %1584 = vmatpush1.bf16.msra.mxu0 %v1425
    %1585 = vmatprep.subr.bf16.mxu0 0
    %1586 = vmatpush1.bf16.msra.mxu0 %v1428
    %1587 = vmatprep.subr.bf16.mxu0 0
    %1588 = vmatpush1.bf16.msra.mxu0 %v1431
    %1589 = vmatprep.subr.bf16.mxu0 0
    %1590 = vmatpush1.bf16.msra.mxu0 %v1434
    %1591 = vmatprep.subr.bf16.mxu0 0
    %1592 = vmatpush1.bf16.msra.mxu0 %v1437
    %1593 = vmatprep.subr.bf16.mxu0 0
    %1594 = vmatpush1.bf16.msra.mxu0 %v1440
    %1595 = vmatprep.subr.bf16.mxu0 0
    %1596 = vmatpush1.bf16.msra.mxu0 %v1443
    %1597 = vmatprep.subr.bf16.mxu0 0
    %1598 = vmatpush1.bf16.msra.mxu0 0
    %1599 = vmatprep.subr.bf16.mxu0 0
    %1600 = vmatpush1.bf16.msra.mxu0 0
    %1601 = vmatprep.subr.bf16.mxu0 0
    %1602 = vmatpush1.bf16.msra.mxu0 0
    %1603 = vmatprep.subr.bf16.mxu0 0
    %1604 = vmatpush1.bf16.msra.mxu0 0
    %1605 = vmatprep.subr.bf16.mxu0 0
    %1606 = vmatpush1.bf16.msra.mxu0 0
    %1607 = vmatprep.subr.bf16.mxu0 0
    %1608 = vmatpush1.bf16.msra.mxu0 0
    %1609 = vmatprep.subr.bf16.mxu0 0
    %1610 = vmatpush1.bf16.msra.mxu0 0
    %1611 = vmatprep.subr.bf16.mxu0 0
    %1612 = vmatpush1.bf16.msra.mxu0 0
    %1613 = vmatprep.mubr.bf16.mxu0 0
    %1614 = vmatmul.mubr.bf16.gmra.mrb[0].mxu0 %v1283
    %v1615 = vpop.f32.mrb[0].mxu0
    %v1616 = vadd.f32 %v1336, %v1615
    %v1617 = vpop.f32.mrb[0].mxu0
    %v1618 = vpop.f32.mrb[0].mxu0
    %v1619 = vadd.f32 %v1336, %v1618
    %v1620 = vpop.f32.mrb[0].mxu0
    %1621 = vmatprep.mubr.bf16.mxu0 0
    %1622 = vmatmul.mubr.bf16.gmra.mrb[0].mxu0 %v1284
    %v1623 = vpop.f32.mrb[0].mxu0
    %v1624 = vadd.f32 %v1336, %v1623
    %v1625 = vpop.f32.mrb[0].mxu0
    %v1626 = vpop.f32.mrb[0].mxu0
    %v1627 = vadd.f32 %v1336, %v1626
    %v1628 = vpop.f32.mrb[0].mxu0
    %1629 = vmatprep.mubr.bf16.mxu0 0
    %1630 = vmatmul.mubr.bf16.gmra.mrb[0].mxu0 %v1285
    %v1631 = vpop.f32.mrb[0].mxu0
    %v1632 = vadd.f32 %v1336, %v1631
    %v1633 = vpop.f32.mrb[0].mxu0
    %v1634 = vpop.f32.mrb[0].mxu0
    %v1635 = vadd.f32 %v1336, %v1634
    %v1636 = vpop.f32.mrb[0].mxu0
    %1637 = vmatprep.mubr.bf16.mxu0 0
    %1638 = vmatmul.mubr.bf16.gmra.mrb[0].mxu0 %v1286
    %v1639 = vpop.f32.mrb[0].mxu0
    %v1640 = vadd.f32 %v1336, %v1639
    %v1641 = vpop.f32.mrb[0].mxu0
    %v1642 = vpop.f32.mrb[0].mxu0
    %v1643 = vadd.f32 %v1336, %v1642
    %v1644 = vpop.f32.mrb[0].mxu0
    %1645 = vmatprep.mubr.bf16.mxu0 0
    %1646 = vmatmul.mubr.bf16.gmra.mrb[0].mxu0 %v1287
    %v1647 = vpop.f32.mrb[0].mxu0
    %v1648 = vadd.f32 %v1336, %v1647
    %v1649 = vpop.f32.mrb[0].mxu0
    %v1650 = vpop.f32.mrb[0].mxu0
    %v1651 = vadd.f32 %v1336, %v1650
    %v1652 = vpop.f32.mrb[0].mxu0
    %1653 = vmatprep.mubr.bf16.mxu0 0
    %1654 = vmatmul.mubr.bf16.gmra.mrb[0].mxu0 %v1288
    %v1655 = vpop.f32.mrb[0].mxu0
    %v1656 = vadd.f32 %v1336, %v1655
    %v1657 = vpop.f32.mrb[0].mxu0
    %v1658 = vpop.f32.mrb[0].mxu0
    %v1659 = vadd.f32 %v1336, %v1658
    %v1660 = vpop.f32.mrb[0].mxu0
    %1661 = vmatprep.mubr.bf16.mxu0 0
    %1662 = vmatmul.mubr.bf16.gmra.mrb[0].mxu0 %v1289
    %v1663 = vpop.f32.mrb[0].mxu0
    %v1664 = vadd.f32 %v1336, %v1663
    %v1665 = vpop.f32.mrb[0].mxu0
    %v1666 = vpop.f32.mrb[0].mxu0
    %v1667 = vadd.f32 %v1336, %v1666
    %v1668 = vpop.f32.mrb[0].mxu0
    %1669 = vmatprep.mubr.bf16.mxu0 0
    %1670 = vmatmul.mubr.bf16.gmra.mrb[0].mxu0 %v1290
    %v1671 = vpop.f32.mrb[0].mxu0
    %v1672 = vadd.f32 %v1336, %v1671
    %v1673 = vpop.f32.mrb[0].mxu0
    %v1674 = vpop.f32.mrb[0].mxu0
    %v1675 = vadd.f32 %v1336, %v1674
    %v1676 = vpop.f32.mrb[0].mxu0
    %1677 = vdwg.mxu0
    %1678 = vst [vmem:[#allocation2] sm:$0xff] %v1503
    %1679 = vst [vmem:[#allocation2 + $0x8] sm:$0xff] %v1505
    %1680 = vst [vmem:[#allocation2 + $0x10] sm:$0xff] %v1616
    %1681 = vst [vmem:[#allocation2 + $0x18] sm:$0xff] %v1507
    %1682 = vst [vmem:[#allocation2 + $0x20] sm:$0xff] %v1509
    %1683 = vst [vmem:[#allocation2 + $0x28] sm:$0xff] %v1619
    %1684 = vst [vmem:[#allocation2 + $0x30] sm:$0xff] %v1513
    %1685 = vst [vmem:[#allocation2 + $0x38] sm:$0xff] %v1515
    %1686 = vst [vmem:[#allocation2 + $0x40] sm:$0xff] %v1624
    %1687 = vst [vmem:[#allocation2 + $0x48] sm:$0xff] %v1517
    %1688 = vst [vmem:[#allocation2 + $0x50] sm:$0xff] %v1519
    %1689 = vst [vmem:[#allocation2 + $0x58] sm:$0xff] %v1627
    %1690 = vst [vmem:[#allocation2 + $0x60] sm:$0xff] %v1523
    %1691 = vst [vmem:[#allocation2 + $0x68] sm:$0xff] %v1525
    %1692 = vst [vmem:[#allocation2 + $0x70] sm:$0xff] %v1632
    %1693 = vst [vmem:[#allocation2 + $0x78] sm:$0xff] %v1527
    %1694 = vst [vmem:[#allocation2 + $0x80] sm:$0xff] %v1529
    %1695 = vst [vmem:[#allocation2 + $0x88] sm:$0xff] %v1635
    %1696 = vst [vmem:[#allocation2 + $0x90] sm:$0xff] %v1533
    %1697 = vst [vmem:[#allocation2 + $0x98] sm:$0xff] %v1535
    %1698 = vst [vmem:[#allocation2 + $0xa0] sm:$0xff] %v1640
    %1699 = vst [vmem:[#allocation2 + $0xa8] sm:$0xff] %v1537
    %1700 = vst [vmem:[#allocation2 + $0xb0] sm:$0xff] %v1539
    %1701 = vst [vmem:[#allocation2 + $0xb8] sm:$0xff] %v1643
    %1702 = vst [vmem:[#allocation2 + $0xc0] sm:$0xff] %v1543
    %1703 = vst [vmem:[#allocation2 + $0xc8] sm:$0xff] %v1545
    %1704 = vst [vmem:[#allocation2 + $0xd0] sm:$0xff] %v1648
    %1705 = vst [vmem:[#allocation2 + $0xd8] sm:$0xff] %v1547
    %1706 = vst [vmem:[#allocation2 + $0xe0] sm:$0xff] %v1549
    %1707 = vst [vmem:[#allocation2 + $0xe8] sm:$0xff] %v1651
    %1708 = vst [vmem:[#allocation2 + $0xf0] sm:$0xff] %v1553
    %1709 = vst [vmem:[#allocation2 + $0xf8] sm:$0xff] %v1555
    %1710 = vst [vmem:[#allocation2 + $0x100] sm:$0xff] %v1656
    %1711 = vst [vmem:[#allocation2 + $0x108] sm:$0xff] %v1557
    %1712 = vst [vmem:[#allocation2 + $0x110] sm:$0xff] %v1559
    %1713 = vst [vmem:[#allocation2 + $0x118] sm:$0xff] %v1659
    %1714 = vst [vmem:[#allocation2 + $0x120] sm:$0xff] %v1563
    %1715 = vst [vmem:[#allocation2 + $0x128] sm:$0xff] %v1565
    %1716 = vst [vmem:[#allocation2 + $0x130] sm:$0xff] %v1664
    %1717 = vst [vmem:[#allocation2 + $0x138] sm:$0xff] %v1567
    %1718 = vst [vmem:[#allocation2 + $0x140] sm:$0xff] %v1569
    %1719 = vst [vmem:[#allocation2 + $0x148] sm:$0xff] %v1667
    %1720 = vst [vmem:[#allocation2 + $0x150] sm:$0xff] %v1573
    %1721 = vst [vmem:[#allocation2 + $0x158] sm:$0xff] %v1575
    %1722 = vst [vmem:[#allocation2 + $0x160] sm:$0xff] %v1672
    %1723 = vst [vmem:[#allocation2 + $0x168] sm:$0xff] %v1577
    %1724 = vst [vmem:[#allocation2 + $0x170] sm:$0xff] %v1579
    %1725 = vst [vmem:[#allocation2 + $0x178] sm:$0xff] %v1675
    %v1726 = vld [vmem:[#allocation6] sm:$0xff]
    %v1727 = vld [vmem:[#allocation6 + $0x8] sm:$0xf]
    %v1728 = vld [vmem:[#allocation6 + $0xc] sm:$0xff]
    %v1729 = vld [vmem:[#allocation6 + $0x14] sm:$0xf]
    %v1730 = vld [vmem:[#allocation6 + $0x18] sm:$0xff]
    %v1731 = vld [vmem:[#allocation6 + $0x20] sm:$0xf]
    %v1732 = vld [vmem:[#allocation6 + $0x24] sm:$0xff]
    %v1733 = vld [vmem:[#allocation6 + $0x2c] sm:$0xf]
    %v1734 = vld [vmem:[#allocation6 + $0x30] sm:$0xff]
    %v1735 = vld [vmem:[#allocation6 + $0x38] sm:$0xf]
    %v1736 = vld [vmem:[#allocation6 + $0x3c] sm:$0xff]
    %v1737 = vld [vmem:[#allocation6 + $0x44] sm:$0xf]
    %v1738 = vld [vmem:[#allocation6 + $0x48] sm:$0xff]
    %v1739 = vld [vmem:[#allocation6 + $0x50] sm:$0xf]
    %v1740 = vld [vmem:[#allocation6 + $0x54] sm:$0xff]
    %v1741 = vld [vmem:[#allocation6 + $0x5c] sm:$0xf]
    %v1742 = vld [vmem:[#allocation6 + $0x60] sm:$0xff]
    %v1743 = vld [vmem:[#allocation6 + $0x68] sm:$0xf]
    %v1744 = vld [vmem:[#allocation6 + $0x6c] sm:$0xff]
    %v1745 = vld [vmem:[#allocation6 + $0x74] sm:$0xf]
    %v1746 = vld [vmem:[#allocation6 + $0x78] sm:$0xff]
    %v1747 = vld [vmem:[#allocation6 + $0x80] sm:$0xf]
    %v1748 = vld [vmem:[#allocation6 + $0x84] sm:$0xff]
    %v1749 = vld [vmem:[#allocation6 + $0x8c] sm:$0xf]
    %v1750 = vld [vmem:[#allocation6 + $0x90] sm:$0xff]
    %v1751 = vld [vmem:[#allocation6 + $0x98] sm:$0xf]
    %v1752 = vld [vmem:[#allocation6 + $0x9c] sm:$0xff]
    %v1753 = vld [vmem:[#allocation6 + $0xa4] sm:$0xf]
    %v1754 = vld [vmem:[#allocation6 + $0xa8] sm:$0xff]
    %v1755 = vld [vmem:[#allocation6 + $0xb0] sm:$0xf]
    %v1756 = vld [vmem:[#allocation6 + $0xb4] sm:$0xff]
    %v1757 = vld [vmem:[#allocation6 + $0xbc] sm:$0xf]
    %v1758 = vld [vmem:[%s8] sm:$0x1]
    %v1759 = vlaneseq
    %v1760 = vand.u32 %v1759, 127
    %v1761 = vadd.s32 %v1760, 128
    %v1762 = vadd.s32 %v1760, 256
    %vm1763 = vcmp.lt.s32.totalorder %v1760, 0
    %v1764 = vsub.s32 0, %v1760
    %v1765 = vsel %vm1763, %v1764, %v1760
    %v1766 = vshrl.u32 %v1765, 7
    %v1767 = vand.u32 %v1765, 127
    %v1768 = vsub.s32 0, %v1767
    %v1769 = vsel %vm1763, %v1768, %v1767
    %vm1770 = vcmp.lt.s32.totalorder %v1761, 0
    %v1771 = vsub.s32 0, %v1761
    %v1772 = vsel %vm1770, %v1771, %v1761
    %v1773 = vshrl.u32 %v1772, 7
    %v1774 = vand.u32 %v1772, 127
    %v1775 = vsub.s32 0, %v1774
    %v1776 = vsel %vm1770, %v1775, %v1774
    %vm1777 = vcmp.lt.s32.totalorder %v1762, 0
    %v1778 = vsub.s32 0, %v1762
    %v1779 = vsel %vm1777, %v1778, %v1762
    %v1780 = vshrl.u32 %v1779, 7
    %v1781 = vand.u32 %v1779, 127
    %v1782 = vsub.s32 0, %v1781
    %v1783 = vsel %vm1777, %v1782, %v1781
    %vm1784 = vcmp.ne.s32.totalorder %v1769, 0
    %vm1785 = vcmp.ne.s32.totalorder %v1776, 0
    %vm1786 = vcmp.ne.s32.totalorder %v1783, 0
    %vm1787 = vcmp.lt.s32.totalorder %v1769, 0
    %vm1788 = vcmp.lt.s32.totalorder %v1776, 0
    %vm1789 = vcmp.lt.s32.totalorder %v1783, 0
    %vm1790 = vmand %vm1787, %vm1784
    %vm1791 = vmand %vm1788, %vm1785
    %vm1792 = vmand %vm1789, %vm1786
    %v1793 = vadd.s32 %v1769, 128
    %v1794 = vadd.s32 %v1776, 128
    %v1795 = vadd.s32 %v1783, 128
    %v1796 = vsel %vm1790, %v1793, %v1769
    %v1797 = vsel %vm1791, %v1794, %v1776
    %v1798 = vsel %vm1792, %v1795, %v1783
    %vm1799 = vcmp.lt.s32.totalorder %v1796, 64
    %vm1800 = vcmp.lt.s32.totalorder %v1797, 64
    %vm1801 = vcmp.lt.s32.totalorder %v1798, 64
    %v1802 = vld [vmem:[#allocation2] sm:$0xff]
    %v1803 = vld [vmem:[#allocation2 + $0x8] sm:$0xff]
    %v1804 = vld [vmem:[#allocation2 + $0x10] sm:$0xff]
    %v1805 = vld [vmem:[#allocation2 + $0x168] sm:$0xff]
    %v1806 = vld [vmem:[#allocation2 + $0x170] sm:$0xff]
    %v1807 = vld [vmem:[#allocation2 + $0x178] sm:$0xff]
    %v1808 = vsel %vm1799, %v1802, %v1805
    %v1809 = vsel %vm1800, %v1803, %v1806
    %v1810 = vsel %vm1801, %v1804, %v1807
    %v1843 = vunpack.c.l.b16 %v1726
    %v1844 = vunpack.c.h.b16 %v1726
    %v1845 = vunpack.c.l.b16 %v1727
    %v1846 = vunpack.c.l.b16 %v1728
    %v1847 = vunpack.c.h.b16 %v1728
    %v1848 = vunpack.c.l.b16 %v1729
    %v1849 = vunpack.c.l.b16 %v1730
    %v1850 = vunpack.c.h.b16 %v1730
    %v1851 = vunpack.c.l.b16 %v1731
    %v1852 = vunpack.c.l.b16 %v1732
    %v1853 = vunpack.c.h.b16 %v1732
    %v1854 = vunpack.c.l.b16 %v1733
    %v1855 = vunpack.c.l.b16 %v1734
    %v1856 = vunpack.c.h.b16 %v1734
    %v1857 = vunpack.c.l.b16 %v1735
    %v1858 = vunpack.c.l.b16 %v1736
    %v1859 = vunpack.c.h.b16 %v1736
    %v1860 = vunpack.c.l.b16 %v1737
    %v1861 = vunpack.c.l.b16 %v1738
    %v1862 = vunpack.c.h.b16 %v1738
    %v1863 = vunpack.c.l.b16 %v1739
    %v1864 = vunpack.c.l.b16 %v1740
    %v1865 = vunpack.c.h.b16 %v1740
    %v1866 = vunpack.c.l.b16 %v1741
    %v1867 = vunpack.c.l.b16 %v1742
    %v1868 = vunpack.c.h.b16 %v1742
    %v1869 = vunpack.c.l.b16 %v1743
    %v1870 = vunpack.c.l.b16 %v1744
    %v1871 = vunpack.c.h.b16 %v1744
    %v1872 = vunpack.c.l.b16 %v1745
    %v1873 = vunpack.c.l.b16 %v1746
    %v1874 = vunpack.c.h.b16 %v1746
    %v1875 = vunpack.c.l.b16 %v1747
    %v1876 = vunpack.c.l.b16 %v1748
    %v1877 = vunpack.c.h.b16 %v1748
    %v1878 = vunpack.c.l.b16 %v1749
    %v1879 = vunpack.c.l.b16 %v1750
    %v1880 = vunpack.c.h.b16 %v1750
    %v1881 = vunpack.c.l.b16 %v1751
    %v1882 = vunpack.c.l.b16 %v1752
    %v1883 = vunpack.c.h.b16 %v1752
    %v1884 = vunpack.c.l.b16 %v1753
    %v1885 = vunpack.c.l.b16 %v1754
    %v1886 = vunpack.c.h.b16 %v1754
    %v1887 = vunpack.c.l.b16 %v1755
    %v1888 = vunpack.c.l.b16 %v1756
    %v1889 = vunpack.c.h.b16 %v1756
    %v1890 = vunpack.c.l.b16 %v1757
    %v1891 = vpack.c.b16 %v1846, %v1843
    %v1892 = vpack.c.b16 %v1847, %v1844
    %v1893 = vpack.c.b16 %v1848, %v1845
    %v1894 = vpack.c.b16 %v1852, %v1849
    %v1895 = vpack.c.b16 %v1853, %v1850
    %v1896 = vpack.c.b16 %v1854, %v1851
    %v1897 = vpack.c.b16 %v1858, %v1855
    %v1898 = vpack.c.b16 %v1859, %v1856
    %v1899 = vpack.c.b16 %v1860, %v1857
    %v1900 = vpack.c.b16 %v1864, %v1861
    %v1901 = vpack.c.b16 %v1865, %v1862
    %v1902 = vpack.c.b16 %v1866, %v1863
    %v1903 = vpack.c.b16 %v1870, %v1867
    %v1904 = vpack.c.b16 %v1871, %v1868
    %v1905 = vpack.c.b16 %v1872, %v1869
    %v1906 = vpack.c.b16 %v1876, %v1873
    %v1907 = vpack.c.b16 %v1877, %v1874
    %v1908 = vpack.c.b16 %v1878, %v1875
    %v1909 = vpack.c.b16 %v1882, %v1879
    %v1910 = vpack.c.b16 %v1883, %v1880
    %v1911 = vpack.c.b16 %v1884, %v1881
    %v1912 = vpack.c.b16 %v1888, %v1885
    %v1913 = vpack.c.b16 %v1889, %v1886
    %v1914 = vpack.c.b16 %v1890, %v1887
    %1939 = vmatprep.subr.bf16.mxu0 %v1892
    %1940 = vmatpush1.bf16.msra.mxu0 %v1891
    %1941 = vmatprep.subr.bf16.mxu0 %v1895
    %1942 = vmatpush1.bf16.msra.mxu0 %v1894
    %1943 = vmatprep.subr.bf16.mxu0 %v1898
    %1944 = vmatpush1.bf16.msra.mxu0 %v1897
    %1945 = vmatprep.subr.bf16.mxu0 %v1901
    %1946 = vmatpush1.bf16.msra.mxu0 %v1900
    %1947 = vmatprep.subr.bf16.mxu0 %v1904
    %1948 = vmatpush1.bf16.msra.mxu0 %v1903
    %1949 = vmatprep.subr.bf16.mxu0 %v1907
    %1950 = vmatpush1.bf16.msra.mxu0 %v1906
    %1951 = vmatprep.subr.bf16.mxu0 %v1910
    %1952 = vmatpush1.bf16.msra.mxu0 %v1909
    %1953 = vmatprep.subr.bf16.mxu0 %v1913
    %1954 = vmatpush1.bf16.msra.mxu0 %v1912
    %1955 = vmatprep.subr.bf16.mxu0 0
    %1956 = vmatpush1.bf16.msra.mxu0 0
    %1957 = vmatprep.subr.bf16.mxu0 0
    %1958 = vmatpush1.bf16.msra.mxu0 0
    %1959 = vmatprep.subr.bf16.mxu0 0
    %1960 = vmatpush1.bf16.msra.mxu0 0
    %1961 = vmatprep.subr.bf16.mxu0 0
    %1962 = vmatpush1.bf16.msra.mxu0 0
    %1963 = vmatprep.subr.bf16.mxu0 0
    %1964 = vmatpush1.bf16.msra.mxu0 0
    %1965 = vmatprep.subr.bf16.mxu0 0
    %1966 = vmatpush1.bf16.msra.mxu0 0
    %1967 = vmatprep.subr.bf16.mxu0 0
    %1968 = vmatpush1.bf16.msra.mxu0 0
    %1969 = vmatprep.subr.bf16.mxu0 0
    %1970 = vmatpush1.bf16.msra.mxu0 0
    %1971 = vmatprep.mubr.bf16.mxu0 0
    %1972 = vmatmul.mubr.bf16.gmra.mrb[0].mxu0 0
    %v1973 = vpop.f32.mrb[0].mxu0
    %v1974 = vadd.f32 0.0, %v1973
    %v1975 = vpop.f32.mrb[0].mxu0
    %v1976 = vadd.f32 0.0, %v1975
    %v1977 = vpop.f32.mrb[0].mxu0
    %v1978 = vpop.f32.mrb[0].mxu0
    %1979 = vdwg.mxu0
    %1980 = vmatprep.subr.bf16.mxu0 0
    %1981 = vmatpush1.bf16.msra.mxu0 %v1893
    %1982 = vmatprep.subr.bf16.mxu0 0
    %1983 = vmatpush1.bf16.msra.mxu0 %v1896
    %1984 = vmatprep.subr.bf16.mxu0 0
    %1985 = vmatpush1.bf16.msra.mxu0 %v1899
    %1986 = vmatprep.subr.bf16.mxu0 0
    %1987 = vmatpush1.bf16.msra.mxu0 %v1902
    %1988 = vmatprep.subr.bf16.mxu0 0
    %1989 = vmatpush1.bf16.msra.mxu0 %v1905
    %1990 = vmatprep.subr.bf16.mxu0 0
    %1991 = vmatpush1.bf16.msra.mxu0 %v1908
    %1992 = vmatprep.subr.bf16.mxu0 0
    %1993 = vmatpush1.bf16.msra.mxu0 %v1911
    %1994 = vmatprep.subr.bf16.mxu0 0
    %1995 = vmatpush1.bf16.msra.mxu0 %v1914
    %1996 = vmatprep.subr.bf16.mxu0 0
    %1997 = vmatpush1.bf16.msra.mxu0 0
    %1998 = vmatprep.subr.bf16.mxu0 0
    %1999 = vmatpush1.bf16.msra.mxu0 0
    %2000 = vmatprep.subr.bf16.mxu0 0
    %2001 = vmatpush1.bf16.msra.mxu0 0
    %2002 = vmatprep.subr.bf16.mxu0 0
    %2003 = vmatpush1.bf16.msra.mxu0 0
    %2004 = vmatprep.subr.bf16.mxu0 0
    %2005 = vmatpush1.bf16.msra.mxu0 0
    %2006 = vmatprep.subr.bf16.mxu0 0
    %2007 = vmatpush1.bf16.msra.mxu0 0
    %2008 = vmatprep.subr.bf16.mxu0 0
    %2009 = vmatpush1.bf16.msra.mxu0 0
    %2010 = vmatprep.subr.bf16.mxu0 0
    %2011 = vmatpush1.bf16.msra.mxu0 0
    %2012 = vmatprep.mubr.bf16.mxu0 0
    %2013 = vmatmul.mubr.bf16.gmra.mrb[0].mxu0 0
    %v2014 = vpop.f32.mrb[0].mxu0
    %v2015 = vadd.f32 0.0, %v2014
    %v2016 = vpop.f32.mrb[0].mxu0
    %v2017 = vpop.f32.mrb[0].mxu0
    %v2018 = vpop.f32.mrb[0].mxu0
    %2019 = vdwg.mxu0
    %v2020 = vadd.f32 %v1808, %v1974
    %v2021 = vadd.f32 %v1809, %v1976
    %v2022 = vxor.u32 %v2020, 2147483648
    %v2023 = vxor.u32 %v2021, 2147483648
    %v2024 = vmul.f32 %v2022, 1.442695
    %v2025 = vpow.pop %v2024
    %v2026 = vmul.f32 %v2023, 1.442695
    %v2027 = vpow.pop %v2026
    %v2028 = vadd.f32 %v2025, 1.0
    %v2029 = vadd.f32 %v2027, 1.0
    %v2030 = vrcp.pop %v2028
    %v2031 = vmul.f32 1.0, %v2030
    %v2032 = vrcp.pop %v2029
    %v2033 = vmul.f32 1.0, %v2032
    %v2035 = vlaneseq
    %v2036 = vshrl.u32 %v2035, 7
    %v2037 = vsub.s32 0, %v2036
    %v2038 = vrot.slane %v1758, %v2037
    %v2040 = vadd.f32 %v2015, %v2038
    %v2041 = vmul.f32 %v2031, %v2040
    %v2042 = vadd.f32 %v1810, %v2041
    %v2043 = vtanh.pop %v2042
    %v2044 = vsub.f32 1.0, %v2033
    %v2045 = vmul.f32 %v2044, %v2043
    %v2046 = vmul.f32 %v2033, 0.0
    %v2047 = vadd.f32 %v2045, %v2046
    %v2048 = vld [vmem:[#allocation2 + $0x18] sm:$0xff]
    %v2049 = vld [vmem:[#allocation2 + $0x20] sm:$0xff]
    %v2050 = vld [vmem:[#allocation2 + $0x28] sm:$0xff]
    %v2051 = vld [vmem:[#allocation2 + $0x150] sm:$0xff]
    %v2052 = vld [vmem:[#allocation2 + $0x158] sm:$0xff]
    %v2053 = vld [vmem:[#allocation2 + $0x160] sm:$0xff]
    %v2054 = vsel %vm1799, %v2048, %v2051
    %v2055 = vsel %vm1800, %v2049, %v2052
    %v2056 = vsel %vm1801, %v2050, %v2053
    %v2057 = vpack.c.bf16 %v2047, %v2047
    %2058 = vmatprep.subr.bf16.mxu0 %v1892
    %2059 = vmatpush1.bf16.msra.mxu0 %v1891
    %2060 = vmatprep.subr.bf16.mxu0 %v1895
    %2061 = vmatpush1.bf16.msra.mxu0 %v1894
    %2062 = vmatprep.subr.bf16.mxu0 %v1898
    %2063 = vmatpush1.bf16.msra.mxu0 %v1897
    %2064 = vmatprep.subr.bf16.mxu0 %v1901
    %2065 = vmatpush1.bf16.msra.mxu0 %v1900
    %2066 = vmatprep.subr.bf16.mxu0 %v1904
    %2067 = vmatpush1.bf16.msra.mxu0 %v1903
    %2068 = vmatprep.subr.bf16.mxu0 %v1907
    %2069 = vmatpush1.bf16.msra.mxu0 %v1906
    %2070 = vmatprep.subr.bf16.mxu0 %v1910
    %2071 = vmatpush1.bf16.msra.mxu0 %v1909
    %2072 = vmatprep.subr.bf16.mxu0 %v1913
    %2073 = vmatpush1.bf16.msra.mxu0 %v1912
    %2074 = vmatprep.subr.bf16.mxu0 0
    %2075 = vmatpush1.bf16.msra.mxu0 0
    %2076 = vmatprep.subr.bf16.mxu0 0
    %2077 = vmatpush1.bf16.msra.mxu0 0
    %2078 = vmatprep.subr.bf16.mxu0 0
    %2079 = vmatpush1.bf16.msra.mxu0 0
    %2080 = vmatprep.subr.bf16.mxu0 0
    %2081 = vmatpush1.bf16.msra.mxu0 0
    %2082 = vmatprep.subr.bf16.mxu0 0
    %2083 = vmatpush1.bf16.msra.mxu0 0
    %2084 = vmatprep.subr.bf16.mxu0 0
    %2085 = vmatpush1.bf16.msra.mxu0 0
    %2086 = vmatprep.subr.bf16.mxu0 0
    %2087 = vmatpush1.bf16.msra.mxu0 0
    %2088 = vmatprep.subr.bf16.mxu0 0
    %2089 = vmatpush1.bf16.msra.mxu0 0
    %2090 = vmatprep.mubr.bf16.mxu0 0
    %2091 = vmatmul.mubr.bf16.gmra.mrb[0].mxu0 %v2057
    %v2092 = vpop.f32.mrb[0].mxu0
    %v2093 = vadd.f32 0.0, %v2092
    %v2094 = vpop.f32.mrb[0].mxu0
    %v2095 = vadd.f32 0.0, %v2094
    %v2096 = vpop.f32.mrb[0].mxu0
    %v2097 = vpop.f32.mrb[0].mxu0
    %2098 = vdwg.mxu0
    %2099 = vmatprep.subr.bf16.mxu0 0
    %2100 = vmatpush1.bf16.msra.mxu0 %v1893
    %2101 = vmatprep.subr.bf16.mxu0 0
    %2102 = vmatpush1.bf16.msra.mxu0 %v1896
    %2103 = vmatprep.subr.bf16.mxu0 0
    %2104 = vmatpush1.bf16.msra.mxu0 %v1899
    %2105 = vmatprep.subr.bf16.mxu0 0
    %2106 = vmatpush1.bf16.msra.mxu0 %v1902
    %2107 = vmatprep.subr.bf16.mxu0 0
    %2108 = vmatpush1.bf16.msra.mxu0 %v1905
    %2109 = vmatprep.subr.bf16.mxu0 0
    %2110 = vmatpush1.bf16.msra.mxu0 %v1908
    %2111 = vmatprep.subr.bf16.mxu0 0
    %2112 = vmatpush1.bf16.msra.mxu0 %v1911
    %2113 = vmatprep.subr.bf16.mxu0 0
    %2114 = vmatpush1.bf16.msra.mxu0 %v1914
    %2115 = vmatprep.subr.bf16.mxu0 0
    %2116 = vmatpush1.bf16.msra.mxu0 0
    %2117 = vmatprep.subr.bf16.mxu0 0
    %2118 = vmatpush1.bf16.msra.mxu0 0
    %2119 = vmatprep.subr.bf16.mxu0 0
    %2120 = vmatpush1.bf16.msra.mxu0 0
    %2121 = vmatprep.subr.bf16.mxu0 0
    %2122 = vmatpush1.bf16.msra.mxu0 0
    %2123 = vmatprep.subr.bf16.mxu0 0
    %2124 = vmatpush1.bf16.msra.mxu0 0
    %2125 = vmatprep.subr.bf16.mxu0 0
    %2126 = vmatpush1.bf16.msra.mxu0 0
    %2127 = vmatprep.subr.bf16.mxu0 0
    %2128 = vmatpush1.bf16.msra.mxu0 0
    %2129 = vmatprep.subr.bf16.mxu0 0
    %2130 = vmatpush1.bf16.msra.mxu0 0
    %2131 = vmatprep.mubr.bf16.mxu0 0
    %2132 = vmatmul.mubr.bf16.gmra.mrb[0].mxu0 %v2057
    %v2133 = vpop.f32.mrb[0].mxu0
    %v2134 = vadd.f32 0.0, %v2133
    %v2135 = vpop.f32.mrb[0].mxu0
    %v2136 = vpop.f32.mrb[0].mxu0
    %v2137 = vpop.f32.mrb[0].mxu0
    %2138 = vdwg.mxu0
    %v2139 = vadd.f32 %v2054, %v2093
    %v2140 = vadd.f32 %v2055, %v2095
    %v2141 = vxor.u32 %v2139, 2147483648
    %v2142 = vxor.u32 %v2140, 2147483648
    %v2143 = vmul.f32 %v2141, 1.442695
    %v2144 = vpow.pop %v2143
    %v2145 = vmul.f32 %v2142, 1.442695
    %v2146 = vpow.pop %v2145
    %v2147 = vadd.f32 %v2144, 1.0
    %v2148 = vadd.f32 %v2146, 1.0
    %v2149 = vrcp.pop %v2147
    %v2150 = vmul.f32 1.0, %v2149
    %v2151 = vrcp.pop %v2148
    %v2152 = vmul.f32 1.0, %v2151
    %v2153 = vadd.f32 %v2134, %v2038
    %v2154 = vmul.f32 %v2150, %v2153
    %v2155 = vadd.f32 %v2056, %v2154
    %v2156 = vtanh.pop %v2155
    %v2157 = vsub.f32 1.0, %v2152
    %v2158 = vmul.f32 %v2157, %v2156
    %v2159 = vmul.f32 %v2152, %v2047
    %v2160 = vadd.f32 %v2158, %v2159
    %v2161 = vld [vmem:[#allocation2 + $0x30] sm:$0xff]
    %v2162 = vld [vmem:[#allocation2 + $0x38] sm:$0xff]
    %v2163 = vld [vmem:[#allocation2 + $0x40] sm:$0xff]
    %v2164 = vld [vmem:[#allocation2 + $0x138] sm:$0xff]
    %v2165 = vld [vmem:[#allocation2 + $0x140] sm:$0xff]
    %v2166 = vld [vmem:[#allocation2 + $0x148] sm:$0xff]
    %v2167 = vsel %vm1799, %v2161, %v2164
    %v2168 = vsel %vm1800, %v2162, %v2165
    %v2169 = vsel %vm1801, %v2163, %v2166
    %v2170 = vpack.c.bf16 %v2160, %v2160
    %2171 = vmatprep.subr.bf16.mxu0 %v1892
    %2172 = vmatpush1.bf16.msra.mxu0 %v1891
    %2173 = vmatprep.subr.bf16.mxu0 %v1895
    %2174 = vmatpush1.bf16.msra.mxu0 %v1894
    %2175 = vmatprep.subr.bf16.mxu0 %v1898
    %2176 = vmatpush1.bf16.msra.mxu0 %v1897
    %2177 = vmatprep.subr.bf16.mxu0 %v1901
    %2178 = vmatpush1.bf16.msra.mxu0 %v1900
    %2179 = vmatprep.subr.bf16.mxu0 %v1904
    %2180 = vmatpush1.bf16.msra.mxu0 %v1903
    %2181 = vmatprep.subr.bf16.mxu0 %v1907
    %2182 = vmatpush1.bf16.msra.mxu0 %v1906
    %2183 = vmatprep.subr.bf16.mxu0 %v1910
    %2184 = vmatpush1.bf16.msra.mxu0 %v1909
    %2185 = vmatprep.subr.bf16.mxu0 %v1913
    %2186 = vmatpush1.bf16.msra.mxu0 %v1912
    %2187 = vmatprep.subr.bf16.mxu0 0
    %2188 = vmatpush1.bf16.msra.mxu0 0
    %2189 = vmatprep.subr.bf16.mxu0 0
    %2190 = vmatpush1.bf16.msra.mxu0 0
    %2191 = vmatprep.subr.bf16.mxu0 0
    %2192 = vmatpush1.bf16.msra.mxu0 0
    %2193 = vmatprep.subr.bf16.mxu0 0
    %2194 = vmatpush1.bf16.msra.mxu0 0
    %2195 = vmatprep.subr.bf16.mxu0 0
    %2196 = vmatpush1.bf16.msra.mxu0 0
    %2197 = vmatprep.subr.bf16.mxu0 0
    %2198 = vmatpush1.bf16.msra.mxu0 0
    %2199 = vmatprep.subr.bf16.mxu0 0
    %2200 = vmatpush1.bf16.msra.mxu0 0
    %2201 = vmatprep.subr.bf16.mxu0 0
    %2202 = vmatpush1.bf16.msra.mxu0 0
    %2203 = vmatprep.mubr.bf16.mxu0 0
    %2204 = vmatmul.mubr.bf16.gmra.mrb[0].mxu0 %v2170
    %v2205 = vpop.f32.mrb[0].mxu0
    %v2206 = vadd.f32 0.0, %v2205
    %v2207 = vpop.f32.mrb[0].mxu0
    %v2208 = vadd.f32 0.0, %v2207
    %v2209 = vpop.f32.mrb[0].mxu0
    %v2210 = vpop.f32.mrb[0].mxu0
    %2211 = vdwg.mxu0
    %2212 = vmatprep.subr.bf16.mxu0 0
    %2213 = vmatpush1.bf16.msra.mxu0 %v1893
    %2214 = vmatprep.subr.bf16.mxu0 0
    %2215 = vmatpush1.bf16.msra.mxu0 %v1896
    %2216 = vmatprep.subr.bf16.mxu0 0
    %2217 = vmatpush1.bf16.msra.mxu0 %v1899
    %2218 = vmatprep.subr.bf16.mxu0 0
    %2219 = vmatpush1.bf16.msra.mxu0 %v1902
    %2220 = vmatprep.subr.bf16.mxu0 0
    %2221 = vmatpush1.bf16.msra.mxu0 %v1905
    %2222 = vmatprep.subr.bf16.mxu0 0
    %2223 = vmatpush1.bf16.msra.mxu0 %v1908
    %2224 = vmatprep.subr.bf16.mxu0 0
    %2225 = vmatpush1.bf16.msra.mxu0 %v1911
    %2226 = vmatprep.subr.bf16.mxu0 0
    %2227 = vmatpush1.bf16.msra.mxu0 %v1914
    %2228 = vmatprep.subr.bf16.mxu0 0
    %2229 = vmatpush1.bf16.msra.mxu0 0
    %2230 = vmatprep.subr.bf16.mxu0 0
    %2231 = vmatpush1.bf16.msra.mxu0 0
    %2232 = vmatprep.subr.bf16.mxu0 0
    %2233 = vmatpush1.bf16.msra.mxu0 0
    %2234 = vmatprep.subr.bf16.mxu0 0
    %2235 = vmatpush1.bf16.msra.mxu0 0
    %2236 = vmatprep.subr.bf16.mxu0 0
    %2237 = vmatpush1.bf16.msra.mxu0 0
    %2238 = vmatprep.subr.bf16.mxu0 0
    %2239 = vmatpush1.bf16.msra.mxu0 0
    %2240 = vmatprep.subr.bf16.mxu0 0
    %2241 = vmatpush1.bf16.msra.mxu0 0
    %2242 = vmatprep.subr.bf16.mxu0 0
    %2243 = vmatpush1.bf16.msra.mxu0 0
    %2244 = vmatprep.mubr.bf16.mxu0 0
    %2245 = vmatmul.mubr.bf16.gmra.mrb[0].mxu0 %v2170
    %v2246 = vpop.f32.mrb[0].mxu0
    %v2247 = vadd.f32 0.0, %v2246
    %v2248 = vpop.f32.mrb[0].mxu0
    %v2249 = vpop.f32.mrb[0].mxu0
    %v2250 = vpop.f32.mrb[0].mxu0
    %2251 = vdwg.mxu0
    %v2252 = vadd.f32 %v2167, %v2206
    %v2253 = vadd.f32 %v2168, %v2208
    %v2254 = vxor.u32 %v2252, 2147483648
    %v2255 = vxor.u32 %v2253, 2147483648
    %v2256 = vmul.f32 %v2254, 1.442695
    %v2257 = vpow.pop %v2256
    %v2258 = vmul.f32 %v2255, 1.442695
    %v2259 = vpow.pop %v2258
    %v2260 = vadd.f32 %v2257, 1.0
    %v2261 = vadd.f32 %v2259, 1.0
    %v2262 = vrcp.pop %v2260
    %v2263 = vmul.f32 1.0, %v2262
    %v2264 = vrcp.pop %v2261
    %v2265 = vmul.f32 1.0, %v2264
    %v2266 = vadd.f32 %v2247, %v2038
    %v2267 = vmul.f32 %v2263, %v2266
    %v2268 = vadd.f32 %v2169, %v2267
    %v2269 = vtanh.pop %v2268
    %v2270 = vsub.f32 1.0, %v2265
    %v2271 = vmul.f32 %v2270, %v2269
    %v2272 = vmul.f32 %v2265, %v2160
    %v2273 = vadd.f32 %v2271, %v2272
    %v2274 = vld [vmem:[#allocation2 + $0x48] sm:$0xff]
    %v2275 = vld [vmem:[#allocation2 + $0x50] sm:$0xff]
    %v2276 = vld [vmem:[#allocation2 + $0x58] sm:$0xff]
    %v2277 = vld [vmem:[#allocation2 + $0x120] sm:$0xff]
    %v2278 = vld [vmem:[#allocation2 + $0x128] sm:$0xff]
    %v2279 = vld [vmem:[#allocation2 + $0x130] sm:$0xff]
    %v2280 = vsel %vm1799, %v2274, %v2277
    %v2281 = vsel %vm1800, %v2275, %v2278
    %v2282 = vsel %vm1801, %v2276, %v2279
    %v2283 = vpack.c.bf16 %v2273, %v2273
    %2284 = vmatprep.subr.bf16.mxu0 %v1892
    %2285 = vmatpush1.bf16.msra.mxu0 %v1891
    %2286 = vmatprep.subr.bf16.mxu0 %v1895
    %2287 = vmatpush1.bf16.msra.mxu0 %v1894
    %2288 = vmatprep.subr.bf16.mxu0 %v1898
    %2289 = vmatpush1.bf16.msra.mxu0 %v1897
    %2290 = vmatprep.subr.bf16.mxu0 %v1901
    %2291 = vmatpush1.bf16.msra.mxu0 %v1900
    %2292 = vmatprep.subr.bf16.mxu0 %v1904
    %2293 = vmatpush1.bf16.msra.mxu0 %v1903
    %2294 = vmatprep.subr.bf16.mxu0 %v1907
    %2295 = vmatpush1.bf16.msra.mxu0 %v1906
    %2296 = vmatprep.subr.bf16.mxu0 %v1910
    %2297 = vmatpush1.bf16.msra.mxu0 %v1909
    %2298 = vmatprep.subr.bf16.mxu0 %v1913
    %2299 = vmatpush1.bf16.msra.mxu0 %v1912
    %2300 = vmatprep.subr.bf16.mxu0 0
    %2301 = vmatpush1.bf16.msra.mxu0 0
    %2302 = vmatprep.subr.bf16.mxu0 0
    %2303 = vmatpush1.bf16.msra.mxu0 0
    %2304 = vmatprep.subr.bf16.mxu0 0
    %2305 = vmatpush1.bf16.msra.mxu0 0
    %2306 = vmatprep.subr.bf16.mxu0 0
    %2307 = vmatpush1.bf16.msra.mxu0 0
    %2308 = vmatprep.subr.bf16.mxu0 0
    %2309 = vmatpush1.bf16.msra.mxu0 0
    %2310 = vmatprep.subr.bf16.mxu0 0
    %2311 = vmatpush1.bf16.msra.mxu0 0
    %2312 = vmatprep.subr.bf16.mxu0 0
    %2313 = vmatpush1.bf16.msra.mxu0 0
    %2314 = vmatprep.subr.bf16.mxu0 0
    %2315 = vmatpush1.bf16.msra.mxu0 0
    %2316 = vmatprep.mubr.bf16.mxu0 0
    %2317 = vmatmul.mubr.bf16.gmra.mrb[0].mxu0 %v2283
    %v2318 = vpop.f32.mrb[0].mxu0
    %v2319 = vadd.f32 0.0, %v2318
    %v2320 = vpop.f32.mrb[0].mxu0
    %v2321 = vadd.f32 0.0, %v2320
    %v2322 = vpop.f32.mrb[0].mxu0
    %v2323 = vpop.f32.mrb[0].mxu0
    %2324 = vdwg.mxu0
    %2325 = vmatprep.subr.bf16.mxu0 0
    %2326 = vmatpush1.bf16.msra.mxu0 %v1893
    %2327 = vmatprep.subr.bf16.mxu0 0
    %2328 = vmatpush1.bf16.msra.mxu0 %v1896
    %2329 = vmatprep.subr.bf16.mxu0 0
    %2330 = vmatpush1.bf16.msra.mxu0 %v1899
    %2331 = vmatprep.subr.bf16.mxu0 0
    %2332 = vmatpush1.bf16.msra.mxu0 %v1902
    %2333 = vmatprep.subr.bf16.mxu0 0
    %2334 = vmatpush1.bf16.msra.mxu0 %v1905
    %2335 = vmatprep.subr.bf16.mxu0 0
    %2336 = vmatpush1.bf16.msra.mxu0 %v1908
    %2337 = vmatprep.subr.bf16.mxu0 0
    %2338 = vmatpush1.bf16.msra.mxu0 %v1911
    %2339 = vmatprep.subr.bf16.mxu0 0
    %2340 = vmatpush1.bf16.msra.mxu0 %v1914
    %2341 = vmatprep.subr.bf16.mxu0 0
    %2342 = vmatpush1.bf16.msra.mxu0 0
    %2343 = vmatprep.subr.bf16.mxu0 0
    %2344 = vmatpush1.bf16.msra.mxu0 0
    %2345 = vmatprep.subr.bf16.mxu0 0
    %2346 = vmatpush1.bf16.msra.mxu0 0
    %2347 = vmatprep.subr.bf16.mxu0 0
    %2348 = vmatpush1.bf16.msra.mxu0 0
    %2349 = vmatprep.subr.bf16.mxu0 0
    %2350 = vmatpush1.bf16.msra.mxu0 0
    %2351 = vmatprep.subr.bf16.mxu0 0
    %2352 = vmatpush1.bf16.msra.mxu0 0
    %2353 = vmatprep.subr.bf16.mxu0 0
    %2354 = vmatpush1.bf16.msra.mxu0 0
    %2355 = vmatprep.subr.bf16.mxu0 0
    %2356 = vmatpush1.bf16.msra.mxu0 0
    %2357 = vmatprep.mubr.bf16.mxu0 0
    %2358 = vmatmul.mubr.bf16.gmra.mrb[0].mxu0 %v2283
    %v2359 = vpop.f32.mrb[0].mxu0
    %v2360 = vadd.f32 0.0, %v2359
    %v2361 = vpop.f32.mrb[0].mxu0
    %v2362 = vpop.f32.mrb[0].mxu0
    %v2363 = vpop.f32.mrb[0].mxu0
    %2364 = vdwg.mxu0
    %v2365 = vadd.f32 %v2280, %v2319
    %v2366 = vadd.f32 %v2281, %v2321
    %v2367 = vxor.u32 %v2365, 2147483648
    %v2368 = vxor.u32 %v2366, 2147483648
    %v2369 = vmul.f32 %v2367, 1.442695
    %v2370 = vpow.pop %v2369
    %v2371 = vmul.f32 %v2368, 1.442695
    %v2372 = vpow.pop %v2371
    %v2373 = vadd.f32 %v2370, 1.0
    %v2374 = vadd.f32 %v2372, 1.0
    %v2375 = vrcp.pop %v2373
    %v2376 = vmul.f32 1.0, %v2375
    %v2377 = vrcp.pop %v2374
    %v2378 = vmul.f32 1.0, %v2377
    %v2379 = vadd.f32 %v2360, %v2038
    %v2380 = vmul.f32 %v2376, %v2379
    %v2381 = vadd.f32 %v2282, %v2380
    %v2382 = vtanh.pop %v2381
    %v2383 = vsub.f32 1.0, %v2378
    %v2384 = vmul.f32 %v2383, %v2382
    %v2385 = vmul.f32 %v2378, %v2273
    %v2386 = vadd.f32 %v2384, %v2385
    %v2387 = vld [vmem:[#allocation2 + $0x60] sm:$0xff]
    %v2388 = vld [vmem:[#allocation2 + $0x68] sm:$0xff]
    %v2389 = vld [vmem:[#allocation2 + $0x70] sm:$0xff]
    %v2390 = vld [vmem:[#allocation2 + $0x108] sm:$0xff]
    %v2391 = vld [vmem:[#allocation2 + $0x110] sm:$0xff]
    %v2392 = vld [vmem:[#allocation2 + $0x118] sm:$0xff]
    %v2393 = vsel %vm1799, %v2387, %v2390
    %v2394 = vsel %vm1800, %v2388, %v2391
    %v2395 = vsel %vm1801, %v2389, %v2392
    %v2396 = vpack.c.bf16 %v2386, %v2386
    %2397 = vmatprep.subr.bf16.mxu0 %v1892
    %2398 = vmatpush1.bf16.msra.mxu0 %v1891
    %2399 = vmatprep.subr.bf16.mxu0 %v1895
    %2400 = vmatpush1.bf16.msra.mxu0 %v1894
    %2401 = vmatprep.subr.bf16.mxu0 %v1898
    %2402 = vmatpush1.bf16.msra.mxu0 %v1897
    %2403 = vmatprep.subr.bf16.mxu0 %v1901
    %2404 = vmatpush1.bf16.msra.mxu0 %v1900
    %2405 = vmatprep.subr.bf16.mxu0 %v1904
    %2406 = vmatpush1.bf16.msra.mxu0 %v1903
    %2407 = vmatprep.subr.bf16.mxu0 %v1907
    %2408 = vmatpush1.bf16.msra.mxu0 %v1906
    %2409 = vmatprep.subr.bf16.mxu0 %v1910
    %2410 = vmatpush1.bf16.msra.mxu0 %v1909
    %2411 = vmatprep.subr.bf16.mxu0 %v1913
    %2412 = vmatpush1.bf16.msra.mxu0 %v1912
    %2413 = vmatprep.subr.bf16.mxu0 0
    %2414 = vmatpush1.bf16.msra.mxu0 0
    %2415 = vmatprep.subr.bf16.mxu0 0
    %2416 = vmatpush1.bf16.msra.mxu0 0
    %2417 = vmatprep.subr.bf16.mxu0 0
    %2418 = vmatpush1.bf16.msra.mxu0 0
    %2419 = vmatprep.subr.bf16.mxu0 0
    %2420 = vmatpush1.bf16.msra.mxu0 0
    %2421 = vmatprep.subr.bf16.mxu0 0
    %2422 = vmatpush1.bf16.msra.mxu0 0
    %2423 = vmatprep.subr.bf16.mxu0 0
    %2424 = vmatpush1.bf16.msra.mxu0 0
    %2425 = vmatprep.subr.bf16.mxu0 0
    %2426 = vmatpush1.bf16.msra.mxu0 0
    %2427 = vmatprep.subr.bf16.mxu0 0
    %2428 = vmatpush1.bf16.msra.mxu0 0
    %2429 = vmatprep.mubr.bf16.mxu0 0
    %2430 = vmatmul.mubr.bf16.gmra.mrb[0].mxu0 %v2396
    %v2431 = vpop.f32.mrb[0].mxu0
    %v2432 = vadd.f32 0.0, %v2431
    %v2433 = vpop.f32.mrb[0].mxu0
    %v2434 = vadd.f32 0.0, %v2433
    %v2435 = vpop.f32.mrb[0].mxu0
    %v2436 = vpop.f32.mrb[0].mxu0
    %2437 = vdwg.mxu0
    %2438 = vmatprep.subr.bf16.mxu0 0
    %2439 = vmatpush1.bf16.msra.mxu0 %v1893
    %2440 = vmatprep.subr.bf16.mxu0 0
    %2441 = vmatpush1.bf16.msra.mxu0 %v1896
    %2442 = vmatprep.subr.bf16.mxu0 0
    %2443 = vmatpush1.bf16.msra.mxu0 %v1899
    %2444 = vmatprep.subr.bf16.mxu0 0
    %2445 = vmatpush1.bf16.msra.mxu0 %v1902
    %2446 = vmatprep.subr.bf16.mxu0 0
    %2447 = vmatpush1.bf16.msra.mxu0 %v1905
    %2448 = vmatprep.subr.bf16.mxu0 0
    %2449 = vmatpush1.bf16.msra.mxu0 %v1908
    %2450 = vmatprep.subr.bf16.mxu0 0
    %2451 = vmatpush1.bf16.msra.mxu0 %v1911
    %2452 = vmatprep.subr.bf16.mxu0 0
    %2453 = vmatpush1.bf16.msra.mxu0 %v1914
    %2454 = vmatprep.subr.bf16.mxu0 0
    %2455 = vmatpush1.bf16.msra.mxu0 0
    %2456 = vmatprep.subr.bf16.mxu0 0
    %2457 = vmatpush1.bf16.msra.mxu0 0
    %2458 = vmatprep.subr.bf16.mxu0 0
    %2459 = vmatpush1.bf16.msra.mxu0 0
    %2460 = vmatprep.subr.bf16.mxu0 0
    %2461 = vmatpush1.bf16.msra.mxu0 0
    %2462 = vmatprep.subr.bf16.mxu0 0
    %2463 = vmatpush1.bf16.msra.mxu0 0
    %2464 = vmatprep.subr.bf16.mxu0 0
    %2465 = vmatpush1.bf16.msra.mxu0 0
    %2466 = vmatprep.subr.bf16.mxu0 0
    %2467 = vmatpush1.bf16.msra.mxu0 0
    %2468 = vmatprep.subr.bf16.mxu0 0
    %2469 = vmatpush1.bf16.msra.mxu0 0
    %2470 = vmatprep.mubr.bf16.mxu0 0
    %2471 = vmatmul.mubr.bf16.gmra.mrb[0].mxu0 %v2396
    %v2472 = vpop.f32.mrb[0].mxu0
    %v2473 = vadd.f32 0.0, %v2472
    %v2474 = vpop.f32.mrb[0].mxu0
    %v2475 = vpop.f32.mrb[0].mxu0
    %v2476 = vpop.f32.mrb[0].mxu0
    %2477 = vdwg.mxu0
    %v2478 = vadd.f32 %v2393, %v2432
    %v2479 = vadd.f32 %v2394, %v2434
    %v2480 = vxor.u32 %v2478, 2147483648
    %v2481 = vxor.u32 %v2479, 2147483648
    %v2482 = vmul.f32 %v2480, 1.442695
    %v2483 = vpow.pop %v2482
    %v2484 = vmul.f32 %v2481, 1.442695
    %v2485 = vpow.pop %v2484
    %v2486 = vadd.f32 %v2483, 1.0
    %v2487 = vadd.f32 %v2485, 1.0
    %v2488 = vrcp.pop %v2486
    %v2489 = vmul.f32 1.0, %v2488
    %v2490 = vrcp.pop %v2487
    %v2491 = vmul.f32 1.0, %v2490
    %v2492 = vadd.f32 %v2473, %v2038
    %v2493 = vmul.f32 %v2489, %v2492
    %v2494 = vadd.f32 %v2395, %v2493
    %v2495 = vtanh.pop %v2494
    %v2496 = vsub.f32 1.0, %v2491
    %v2497 = vmul.f32 %v2496, %v2495
    %v2498 = vmul.f32 %v2491, %v2386
    %v2499 = vadd.f32 %v2497, %v2498
    %v2500 = vld [vmem:[#allocation2 + $0x78] sm:$0xff]
    %v2501 = vld [vmem:[#allocation2 + $0x80] sm:$0xff]
    %v2502 = vld [vmem:[#allocation2 + $0x88] sm:$0xff]
    %v2503 = vld [vmem:[#allocation2 + $0xf0] sm:$0xff]
    %v2504 = vld [vmem:[#allocation2 + $0xf8] sm:$0xff]
    %v2505 = vld [vmem:[#allocation2 + $0x100] sm:$0xff]
    %v2506 = vsel %vm1799, %v2500, %v2503
    %v2507 = vsel %vm1800, %v2501, %v2504
    %v2508 = vsel %vm1801, %v2502, %v2505
    %v2509 = vpack.c.bf16 %v2499, %v2499
    %2510 = vmatprep.subr.bf16.mxu0 %v1892
    %2511 = vmatpush1.bf16.msra.mxu0 %v1891
    %2512 = vmatprep.subr.bf16.mxu0 %v1895
    %2513 = vmatpush1.bf16.msra.mxu0 %v1894
    %2514 = vmatprep.subr.bf16.mxu0 %v1898
    %2515 = vmatpush1.bf16.msra.mxu0 %v1897
    %2516 = vmatprep.subr.bf16.mxu0 %v1901
    %2517 = vmatpush1.bf16.msra.mxu0 %v1900
    %2518 = vmatprep.subr.bf16.mxu0 %v1904
    %2519 = vmatpush1.bf16.msra.mxu0 %v1903
    %2520 = vmatprep.subr.bf16.mxu0 %v1907
    %2521 = vmatpush1.bf16.msra.mxu0 %v1906
    %2522 = vmatprep.subr.bf16.mxu0 %v1910
    %2523 = vmatpush1.bf16.msra.mxu0 %v1909
    %2524 = vmatprep.subr.bf16.mxu0 %v1913
    %2525 = vmatpush1.bf16.msra.mxu0 %v1912
    %2526 = vmatprep.subr.bf16.mxu0 0
    %2527 = vmatpush1.bf16.msra.mxu0 0
    %2528 = vmatprep.subr.bf16.mxu0 0
    %2529 = vmatpush1.bf16.msra.mxu0 0
    %2530 = vmatprep.subr.bf16.mxu0 0
    %2531 = vmatpush1.bf16.msra.mxu0 0
    %2532 = vmatprep.subr.bf16.mxu0 0
    %2533 = vmatpush1.bf16.msra.mxu0 0
    %2534 = vmatprep.subr.bf16.mxu0 0
    %2535 = vmatpush1.bf16.msra.mxu0 0
    %2536 = vmatprep.subr.bf16.mxu0 0
    %2537 = vmatpush1.bf16.msra.mxu0 0
    %2538 = vmatprep.subr.bf16.mxu0 0
    %2539 = vmatpush1.bf16.msra.mxu0 0
    %2540 = vmatprep.subr.bf16.mxu0 0
    %2541 = vmatpush1.bf16.msra.mxu0 0
    %2542 = vmatprep.mubr.bf16.mxu0 0
    %2543 = vmatmul.mubr.bf16.gmra.mrb[0].mxu0 %v2509
    %v2544 = vpop.f32.mrb[0].mxu0
    %v2545 = vadd.f32 0.0, %v2544
    %v2546 = vpop.f32.mrb[0].mxu0
    %v2547 = vadd.f32 0.0, %v2546
    %v2548 = vpop.f32.mrb[0].mxu0
    %v2549 = vpop.f32.mrb[0].mxu0
    %2550 = vdwg.mxu0
    %2551 = vmatprep.subr.bf16.mxu0 0
    %2552 = vmatpush1.bf16.msra.mxu0 %v1893
    %2553 = vmatprep.subr.bf16.mxu0 0
    %2554 = vmatpush1.bf16.msra.mxu0 %v1896
    %2555 = vmatprep.subr.bf16.mxu0 0
    %2556 = vmatpush1.bf16.msra.mxu0 %v1899
    %2557 = vmatprep.subr.bf16.mxu0 0
    %2558 = vmatpush1.bf16.msra.mxu0 %v1902
    %2559 = vmatprep.subr.bf16.mxu0 0
    %2560 = vmatpush1.bf16.msra.mxu0 %v1905
    %2561 = vmatprep.subr.bf16.mxu0 0
    %2562 = vmatpush1.bf16.msra.mxu0 %v1908
    %2563 = vmatprep.subr.bf16.mxu0 0
    %2564 = vmatpush1.bf16.msra.mxu0 %v1911
    %2565 = vmatprep.subr.bf16.mxu0 0
    %2566 = vmatpush1.bf16.msra.mxu0 %v1914
    %2567 = vmatprep.subr.bf16.mxu0 0
    %2568 = vmatpush1.bf16.msra.mxu0 0
    %2569 = vmatprep.subr.bf16.mxu0 0
    %2570 = vmatpush1.bf16.msra.mxu0 0
    %2571 = vmatprep.subr.bf16.mxu0 0
    %2572 = vmatpush1.bf16.msra.mxu0 0
    %2573 = vmatprep.subr.bf16.mxu0 0
    %2574 = vmatpush1.bf16.msra.mxu0 0
    %2575 = vmatprep.subr.bf16.mxu0 0
    %2576 = vmatpush1.bf16.msra.mxu0 0
    %2577 = vmatprep.subr.bf16.mxu0 0
    %2578 = vmatpush1.bf16.msra.mxu0 0
    %2579 = vmatprep.subr.bf16.mxu0 0
    %2580 = vmatpush1.bf16.msra.mxu0 0
    %2581 = vmatprep.subr.bf16.mxu0 0
    %2582 = vmatpush1.bf16.msra.mxu0 0
    %2583 = vmatprep.mubr.bf16.mxu0 0
    %2584 = vmatmul.mubr.bf16.gmra.mrb[0].mxu0 %v2509
    %v2585 = vpop.f32.mrb[0].mxu0
    %v2586 = vadd.f32 0.0, %v2585
    %v2587 = vpop.f32.mrb[0].mxu0
    %v2588 = vpop.f32.mrb[0].mxu0
    %v2589 = vpop.f32.mrb[0].mxu0
    %2590 = vdwg.mxu0
    %v2591 = vadd.f32 %v2506, %v2545
    %v2592 = vadd.f32 %v2507, %v2547
    %v2593 = vxor.u32 %v2591, 2147483648
    %v2594 = vxor.u32 %v2592, 2147483648
    %v2595 = vmul.f32 %v2593, 1.442695
    %v2596 = vpow.pop %v2595
    %v2597 = vmul.f32 %v2594, 1.442695
    %v2598 = vpow.pop %v2597
    %v2599 = vadd.f32 %v2596, 1.0
    %v2600 = vadd.f32 %v2598, 1.0
    %v2601 = vrcp.pop %v2599
    %v2602 = vmul.f32 1.0, %v2601
    %v2603 = vrcp.pop %v2600
    %v2604 = vmul.f32 1.0, %v2603
    %v2605 = vadd.f32 %v2586, %v2038
    %v2606 = vmul.f32 %v2602, %v2605
    %v2607 = vadd.f32 %v2508, %v2606
    %v2608 = vtanh.pop %v2607
    %v2609 = vsub.f32 1.0, %v2604
    %v2610 = vmul.f32 %v2609, %v2608
    %v2611 = vmul.f32 %v2604, %v2499
    %v2612 = vadd.f32 %v2610, %v2611
    %v2613 = vld [vmem:[#allocation2 + $0x90] sm:$0xff]
    %v2614 = vld [vmem:[#allocation2 + $0x98] sm:$0xff]
    %v2615 = vld [vmem:[#allocation2 + $0xa0] sm:$0xff]
    %v2616 = vld [vmem:[#allocation2 + $0xd8] sm:$0xff]
    %v2617 = vld [vmem:[#allocation2 + $0xe0] sm:$0xff]
    %v2618 = vld [vmem:[#allocation2 + $0xe8] sm:$0xff]
    %v2619 = vsel %vm1799, %v2613, %v2616
    %v2620 = vsel %vm1800, %v2614, %v2617
    %v2621 = vsel %vm1801, %v2615, %v2618
    %v2622 = vpack.c.bf16 %v2612, %v2612
    %2623 = vmatprep.subr.bf16.mxu0 %v1892
    %2624 = vmatpush1.bf16.msra.mxu0 %v1891
    %2625 = vmatprep.subr.bf16.mxu0 %v1895
    %2626 = vmatpush1.bf16.msra.mxu0 %v1894
    %2627 = vmatprep.subr.bf16.mxu0 %v1898
    %2628 = vmatpush1.bf16.msra.mxu0 %v1897
    %2629 = vmatprep.subr.bf16.mxu0 %v1901
    %2630 = vmatpush1.bf16.msra.mxu0 %v1900
    %2631 = vmatprep.subr.bf16.mxu0 %v1904
    %2632 = vmatpush1.bf16.msra.mxu0 %v1903
    %2633 = vmatprep.subr.bf16.mxu0 %v1907
    %2634 = vmatpush1.bf16.msra.mxu0 %v1906
    %2635 = vmatprep.subr.bf16.mxu0 %v1910
    %2636 = vmatpush1.bf16.msra.mxu0 %v1909
    %2637 = vmatprep.subr.bf16.mxu0 %v1913
    %2638 = vmatpush1.bf16.msra.mxu0 %v1912
    %2639 = vmatprep.subr.bf16.mxu0 0
    %2640 = vmatpush1.bf16.msra.mxu0 0
    %2641 = vmatprep.subr.bf16.mxu0 0
    %2642 = vmatpush1.bf16.msra.mxu0 0
    %2643 = vmatprep.subr.bf16.mxu0 0
    %2644 = vmatpush1.bf16.msra.mxu0 0
    %2645 = vmatprep.subr.bf16.mxu0 0
    %2646 = vmatpush1.bf16.msra.mxu0 0
    %2647 = vmatprep.subr.bf16.mxu0 0
    %2648 = vmatpush1.bf16.msra.mxu0 0
    %2649 = vmatprep.subr.bf16.mxu0 0
    %2650 = vmatpush1.bf16.msra.mxu0 0
    %2651 = vmatprep.subr.bf16.mxu0 0
    %2652 = vmatpush1.bf16.msra.mxu0 0
    %2653 = vmatprep.subr.bf16.mxu0 0
    %2654 = vmatpush1.bf16.msra.mxu0 0
    %2655 = vmatprep.mubr.bf16.mxu0 0
    %2656 = vmatmul.mubr.bf16.gmra.mrb[0].mxu0 %v2622
    %v2657 = vpop.f32.mrb[0].mxu0
    %v2658 = vadd.f32 0.0, %v2657
    %v2659 = vpop.f32.mrb[0].mxu0
    %v2660 = vadd.f32 0.0, %v2659
    %v2661 = vpop.f32.mrb[0].mxu0
    %v2662 = vpop.f32.mrb[0].mxu0
    %2663 = vdwg.mxu0
    %2664 = vmatprep.subr.bf16.mxu0 0
    %2665 = vmatpush1.bf16.msra.mxu0 %v1893
    %2666 = vmatprep.subr.bf16.mxu0 0
    %2667 = vmatpush1.bf16.msra.mxu0 %v1896
    %2668 = vmatprep.subr.bf16.mxu0 0
    %2669 = vmatpush1.bf16.msra.mxu0 %v1899
    %2670 = vmatprep.subr.bf16.mxu0 0
    %2671 = vmatpush1.bf16.msra.mxu0 %v1902
    %2672 = vmatprep.subr.bf16.mxu0 0
    %2673 = vmatpush1.bf16.msra.mxu0 %v1905
    %2674 = vmatprep.subr.bf16.mxu0 0
    %2675 = vmatpush1.bf16.msra.mxu0 %v1908
    %2676 = vmatprep.subr.bf16.mxu0 0
    %2677 = vmatpush1.bf16.msra.mxu0 %v1911
    %2678 = vmatprep.subr.bf16.mxu0 0
    %2679 = vmatpush1.bf16.msra.mxu0 %v1914
    %2680 = vmatprep.subr.bf16.mxu0 0
    %2681 = vmatpush1.bf16.msra.mxu0 0
    %2682 = vmatprep.subr.bf16.mxu0 0
    %2683 = vmatpush1.bf16.msra.mxu0 0
    %2684 = vmatprep.subr.bf16.mxu0 0
    %2685 = vmatpush1.bf16.msra.mxu0 0
    %2686 = vmatprep.subr.bf16.mxu0 0
    %2687 = vmatpush1.bf16.msra.mxu0 0
    %2688 = vmatprep.subr.bf16.mxu0 0
    %2689 = vmatpush1.bf16.msra.mxu0 0
    %2690 = vmatprep.subr.bf16.mxu0 0
    %2691 = vmatpush1.bf16.msra.mxu0 0
    %2692 = vmatprep.subr.bf16.mxu0 0
    %2693 = vmatpush1.bf16.msra.mxu0 0
    %2694 = vmatprep.subr.bf16.mxu0 0
    %2695 = vmatpush1.bf16.msra.mxu0 0
    %2696 = vmatprep.mubr.bf16.mxu0 0
    %2697 = vmatmul.mubr.bf16.gmra.mrb[0].mxu0 %v2622
    %v2698 = vpop.f32.mrb[0].mxu0
    %v2699 = vadd.f32 0.0, %v2698
    %v2700 = vpop.f32.mrb[0].mxu0
    %v2701 = vpop.f32.mrb[0].mxu0
    %v2702 = vpop.f32.mrb[0].mxu0
    %2703 = vdwg.mxu0
    %v2704 = vadd.f32 %v2619, %v2658
    %v2705 = vadd.f32 %v2620, %v2660
    %v2706 = vxor.u32 %v2704, 2147483648
    %v2707 = vxor.u32 %v2705, 2147483648
    %v2708 = vmul.f32 %v2706, 1.442695
    %v2709 = vpow.pop %v2708
    %v2710 = vmul.f32 %v2707, 1.442695
    %v2711 = vpow.pop %v2710
    %v2712 = vadd.f32 %v2709, 1.0
    %v2713 = vadd.f32 %v2711, 1.0
    %v2714 = vrcp.pop %v2712
    %v2715 = vmul.f32 1.0, %v2714
    %v2716 = vrcp.pop %v2713
    %v2717 = vmul.f32 1.0, %v2716
    %v2718 = vadd.f32 %v2699, %v2038
    %v2719 = vmul.f32 %v2715, %v2718
    %v2720 = vadd.f32 %v2621, %v2719
    %v2721 = vtanh.pop %v2720
    %v2722 = vsub.f32 1.0, %v2717
    %v2723 = vmul.f32 %v2722, %v2721
    %v2724 = vmul.f32 %v2717, %v2612
    %v2725 = vadd.f32 %v2723, %v2724
    %v2726 = vld [vmem:[#allocation2 + $0xa8] sm:$0xff]
    %v2727 = vld [vmem:[#allocation2 + $0xb0] sm:$0xff]
    %v2728 = vld [vmem:[#allocation2 + $0xb8] sm:$0xff]
    %v2729 = vld [vmem:[#allocation2 + $0xc0] sm:$0xff]
    %v2730 = vld [vmem:[#allocation2 + $0xc8] sm:$0xff]
    %v2731 = vld [vmem:[#allocation2 + $0xd0] sm:$0xff]
    %v2732 = vsel %vm1799, %v2726, %v2729
    %v2733 = vsel %vm1800, %v2727, %v2730
    %v2734 = vsel %vm1801, %v2728, %v2731
    %v2735 = vpack.c.bf16 %v2725, %v2725
    %2736 = vmatprep.subr.bf16.mxu0 %v1892
    %2737 = vmatpush1.bf16.msra.mxu0 %v1891
    %2738 = vmatprep.subr.bf16.mxu0 %v1895
    %2739 = vmatpush1.bf16.msra.mxu0 %v1894
    %2740 = vmatprep.subr.bf16.mxu0 %v1898
    %2741 = vmatpush1.bf16.msra.mxu0 %v1897
    %2742 = vmatprep.subr.bf16.mxu0 %v1901
    %2743 = vmatpush1.bf16.msra.mxu0 %v1900
    %2744 = vmatprep.subr.bf16.mxu0 %v1904
    %2745 = vmatpush1.bf16.msra.mxu0 %v1903
    %2746 = vmatprep.subr.bf16.mxu0 %v1907
    %2747 = vmatpush1.bf16.msra.mxu0 %v1906
    %2748 = vmatprep.subr.bf16.mxu0 %v1910
    %2749 = vmatpush1.bf16.msra.mxu0 %v1909
    %2750 = vmatprep.subr.bf16.mxu0 %v1913
    %2751 = vmatpush1.bf16.msra.mxu0 %v1912
    %2752 = vmatprep.subr.bf16.mxu0 0
    %2753 = vmatpush1.bf16.msra.mxu0 0
    %2754 = vmatprep.subr.bf16.mxu0 0
    %2755 = vmatpush1.bf16.msra.mxu0 0
    %2756 = vmatprep.subr.bf16.mxu0 0
    %2757 = vmatpush1.bf16.msra.mxu0 0
    %2758 = vmatprep.subr.bf16.mxu0 0
    %2759 = vmatpush1.bf16.msra.mxu0 0
    %2760 = vmatprep.subr.bf16.mxu0 0
    %2761 = vmatpush1.bf16.msra.mxu0 0
    %2762 = vmatprep.subr.bf16.mxu0 0
    %2763 = vmatpush1.bf16.msra.mxu0 0
    %2764 = vmatprep.subr.bf16.mxu0 0
    %2765 = vmatpush1.bf16.msra.mxu0 0
    %2766 = vmatprep.subr.bf16.mxu0 0
    %2767 = vmatpush1.bf16.msra.mxu0 0
    %2768 = vmatprep.mubr.bf16.mxu0 0
    %2769 = vmatmul.mubr.bf16.gmra.mrb[0].mxu0 %v2735
    %v2770 = vpop.f32.mrb[0].mxu0
    %v2771 = vadd.f32 0.0, %v2770
    %v2772 = vpop.f32.mrb[0].mxu0
    %v2773 = vadd.f32 0.0, %v2772
    %v2774 = vpop.f32.mrb[0].mxu0
    %v2775 = vpop.f32.mrb[0].mxu0
    %2776 = vdwg.mxu0
    %2777 = vmatprep.subr.bf16.mxu0 0
    %2778 = vmatpush1.bf16.msra.mxu0 %v1893
    %2779 = vmatprep.subr.bf16.mxu0 0
    %2780 = vmatpush1.bf16.msra.mxu0 %v1896
    %2781 = vmatprep.subr.bf16.mxu0 0
    %2782 = vmatpush1.bf16.msra.mxu0 %v1899
    %2783 = vmatprep.subr.bf16.mxu0 0
    %2784 = vmatpush1.bf16.msra.mxu0 %v1902
    %2785 = vmatprep.subr.bf16.mxu0 0
    %2786 = vmatpush1.bf16.msra.mxu0 %v1905
    %2787 = vmatprep.subr.bf16.mxu0 0
    %2788 = vmatpush1.bf16.msra.mxu0 %v1908
    %2789 = vmatprep.subr.bf16.mxu0 0
    %2790 = vmatpush1.bf16.msra.mxu0 %v1911
    %2791 = vmatprep.subr.bf16.mxu0 0
    %2792 = vmatpush1.bf16.msra.mxu0 %v1914
    %2793 = vmatprep.subr.bf16.mxu0 0
    %2794 = vmatpush1.bf16.msra.mxu0 0
    %2795 = vmatprep.subr.bf16.mxu0 0
    %2796 = vmatpush1.bf16.msra.mxu0 0
    %2797 = vmatprep.subr.bf16.mxu0 0
    %2798 = vmatpush1.bf16.msra.mxu0 0
    %2799 = vmatprep.subr.bf16.mxu0 0
    %2800 = vmatpush1.bf16.msra.mxu0 0
    %2801 = vmatprep.subr.bf16.mxu0 0
    %2802 = vmatpush1.bf16.msra.mxu0 0
    %2803 = vmatprep.subr.bf16.mxu0 0
    %2804 = vmatpush1.bf16.msra.mxu0 0
    %2805 = vmatprep.subr.bf16.mxu0 0
    %2806 = vmatpush1.bf16.msra.mxu0 0
    %2807 = vmatprep.subr.bf16.mxu0 0
    %2808 = vmatpush1.bf16.msra.mxu0 0
    %2809 = vmatprep.mubr.bf16.mxu0 0
    %2810 = vmatmul.mubr.bf16.gmra.mrb[0].mxu0 %v2735
    %v2811 = vpop.f32.mrb[0].mxu0
    %v2812 = vadd.f32 0.0, %v2811
    %v2813 = vpop.f32.mrb[0].mxu0
    %v2814 = vpop.f32.mrb[0].mxu0
    %v2815 = vpop.f32.mrb[0].mxu0
    %2816 = vdwg.mxu0
    %v2817 = vadd.f32 %v2732, %v2771
    %v2818 = vadd.f32 %v2733, %v2773
    %v2819 = vxor.u32 %v2817, 2147483648
    %v2820 = vxor.u32 %v2818, 2147483648
    %v2821 = vmul.f32 %v2819, 1.442695
    %v2822 = vpow.pop %v2821
    %v2823 = vmul.f32 %v2820, 1.442695
    %v2824 = vpow.pop %v2823
    %v2825 = vadd.f32 %v2822, 1.0
    %v2826 = vadd.f32 %v2824, 1.0
    %v2827 = vrcp.pop %v2825
    %v2828 = vmul.f32 1.0, %v2827
    %v2829 = vrcp.pop %v2826
    %v2830 = vmul.f32 1.0, %v2829
    %v2831 = vadd.f32 %v2812, %v2038
    %v2832 = vmul.f32 %v2828, %v2831
    %v2833 = vadd.f32 %v2734, %v2832
    %v2834 = vtanh.pop %v2833
    %v2835 = vsub.f32 1.0, %v2830
    %v2836 = vmul.f32 %v2835, %v2834
    %v2837 = vmul.f32 %v2830, %v2725
    %v2838 = vadd.f32 %v2836, %v2837
    %v2839 = vsel %vm1799, %v2729, %v2726
    %v2840 = vsel %vm1800, %v2730, %v2727
    %v2841 = vsel %vm1801, %v2731, %v2728
    %v2842 = vpack.c.bf16 %v2838, %v2838
    %2843 = vmatprep.subr.bf16.mxu0 %v1892
    %2844 = vmatpush1.bf16.msra.mxu0 %v1891
    %2845 = vmatprep.subr.bf16.mxu0 %v1895
    %2846 = vmatpush1.bf16.msra.mxu0 %v1894
    %2847 = vmatprep.subr.bf16.mxu0 %v1898
    %2848 = vmatpush1.bf16.msra.mxu0 %v1897
    %2849 = vmatprep.subr.bf16.mxu0 %v1901
    %2850 = vmatpush1.bf16.msra.mxu0 %v1900
    %2851 = vmatprep.subr.bf16.mxu0 %v1904
    %2852 = vmatpush1.bf16.msra.mxu0 %v1903
    %2853 = vmatprep.subr.bf16.mxu0 %v1907
    %2854 = vmatpush1.bf16.msra.mxu0 %v1906
    %2855 = vmatprep.subr.bf16.mxu0 %v1910
    %2856 = vmatpush1.bf16.msra.mxu0 %v1909
    %2857 = vmatprep.subr.bf16.mxu0 %v1913
    %2858 = vmatpush1.bf16.msra.mxu0 %v1912
    %2859 = vmatprep.subr.bf16.mxu0 0
    %2860 = vmatpush1.bf16.msra.mxu0 0
    %2861 = vmatprep.subr.bf16.mxu0 0
    %2862 = vmatpush1.bf16.msra.mxu0 0
    %2863 = vmatprep.subr.bf16.mxu0 0
    %2864 = vmatpush1.bf16.msra.mxu0 0
    %2865 = vmatprep.subr.bf16.mxu0 0
    %2866 = vmatpush1.bf16.msra.mxu0 0
    %2867 = vmatprep.subr.bf16.mxu0 0
    %2868 = vmatpush1.bf16.msra.mxu0 0
    %2869 = vmatprep.subr.bf16.mxu0 0
    %2870 = vmatpush1.bf16.msra.mxu0 0
    %2871 = vmatprep.subr.bf16.mxu0 0
    %2872 = vmatpush1.bf16.msra.mxu0 0
    %2873 = vmatprep.subr.bf16.mxu0 0
    %2874 = vmatpush1.bf16.msra.mxu0 0
    %2875 = vmatprep.mubr.bf16.mxu0 0
    %2876 = vmatmul.mubr.bf16.gmra.mrb[0].mxu0 %v2842
    %v2877 = vpop.f32.mrb[0].mxu0
    %v2878 = vadd.f32 0.0, %v2877
    %v2879 = vpop.f32.mrb[0].mxu0
    %v2880 = vadd.f32 0.0, %v2879
    %v2881 = vpop.f32.mrb[0].mxu0
    %v2882 = vpop.f32.mrb[0].mxu0
    %2883 = vdwg.mxu0
    %2884 = vmatprep.subr.bf16.mxu0 0
    %2885 = vmatpush1.bf16.msra.mxu0 %v1893
    %2886 = vmatprep.subr.bf16.mxu0 0
    %2887 = vmatpush1.bf16.msra.mxu0 %v1896
    %2888 = vmatprep.subr.bf16.mxu0 0
    %2889 = vmatpush1.bf16.msra.mxu0 %v1899
    %2890 = vmatprep.subr.bf16.mxu0 0
    %2891 = vmatpush1.bf16.msra.mxu0 %v1902
    %2892 = vmatprep.subr.bf16.mxu0 0
    %2893 = vmatpush1.bf16.msra.mxu0 %v1905
    %2894 = vmatprep.subr.bf16.mxu0 0
    %2895 = vmatpush1.bf16.msra.mxu0 %v1908
    %2896 = vmatprep.subr.bf16.mxu0 0
    %2897 = vmatpush1.bf16.msra.mxu0 %v1911
    %2898 = vmatprep.subr.bf16.mxu0 0
    %2899 = vmatpush1.bf16.msra.mxu0 %v1914
    %2900 = vmatprep.subr.bf16.mxu0 0
    %2901 = vmatpush1.bf16.msra.mxu0 0
    %2902 = vmatprep.subr.bf16.mxu0 0
    %2903 = vmatpush1.bf16.msra.mxu0 0
    %2904 = vmatprep.subr.bf16.mxu0 0
    %2905 = vmatpush1.bf16.msra.mxu0 0
    %2906 = vmatprep.subr.bf16.mxu0 0
    %2907 = vmatpush1.bf16.msra.mxu0 0
    %2908 = vmatprep.subr.bf16.mxu0 0
    %2909 = vmatpush1.bf16.msra.mxu0 0
    %2910 = vmatprep.subr.bf16.mxu0 0
    %2911 = vmatpush1.bf16.msra.mxu0 0
    %2912 = vmatprep.subr.bf16.mxu0 0
    %2913 = vmatpush1.bf16.msra.mxu0 0
    %2914 = vmatprep.subr.bf16.mxu0 0
    %2915 = vmatpush1.bf16.msra.mxu0 0
    %2916 = vmatprep.mubr.bf16.mxu0 0
    %2917 = vmatmul.mubr.bf16.gmra.mrb[0].mxu0 %v2842
    %v2918 = vpop.f32.mrb[0].mxu0
    %v2919 = vadd.f32 0.0, %v2918
    %v2920 = vpop.f32.mrb[0].mxu0
    %v2921 = vpop.f32.mrb[0].mxu0
    %v2922 = vpop.f32.mrb[0].mxu0
    %2923 = vdwg.mxu0
    %v2924 = vadd.f32 %v2839, %v2878
    %v2925 = vadd.f32 %v2840, %v2880
    %v2926 = vxor.u32 %v2924, 2147483648
    %v2927 = vxor.u32 %v2925, 2147483648
    %v2928 = vmul.f32 %v2926, 1.442695
    %v2929 = vpow.pop %v2928
    %v2930 = vmul.f32 %v2927, 1.442695
    %v2931 = vpow.pop %v2930
    %v2932 = vadd.f32 %v2929, 1.0
    %v2933 = vadd.f32 %v2931, 1.0
    %v2934 = vrcp.pop %v2932
    %v2935 = vmul.f32 1.0, %v2934
    %v2936 = vrcp.pop %v2933
    %v2937 = vmul.f32 1.0, %v2936
    %v2938 = vadd.f32 %v2919, %v2038
    %v2939 = vmul.f32 %v2935, %v2938
    %v2940 = vadd.f32 %v2841, %v2939
    %v2941 = vtanh.pop %v2940
    %v2942 = vsub.f32 1.0, %v2937
    %v2943 = vmul.f32 %v2942, %v2941
    %v2944 = vmul.f32 %v2937, %v2838
    %v2945 = vadd.f32 %v2943, %v2944
    %v2946 = vsel %vm1799, %v2616, %v2613
    %v2947 = vsel %vm1800, %v2617, %v2614
    %v2948 = vsel %vm1801, %v2618, %v2615
    %v2949 = vpack.c.bf16 %v2945, %v2945
    %2950 = vmatprep.subr.bf16.mxu0 %v1892
    %2951 = vmatpush1.bf16.msra.mxu0 %v1891
    %2952 = vmatprep.subr.bf16.mxu0 %v1895
    %2953 = vmatpush1.bf16.msra.mxu0 %v1894
    %2954 = vmatprep.subr.bf16.mxu0 %v1898
    %2955 = vmatpush1.bf16.msra.mxu0 %v1897
    %2956 = vmatprep.subr.bf16.mxu0 %v1901
    %2957 = vmatpush1.bf16.msra.mxu0 %v1900
    %2958 = vmatprep.subr.bf16.mxu0 %v1904
    %2959 = vmatpush1.bf16.msra.mxu0 %v1903
    %2960 = vmatprep.subr.bf16.mxu0 %v1907
    %2961 = vmatpush1.bf16.msra.mxu0 %v1906
    %2962 = vmatprep.subr.bf16.mxu0 %v1910
    %2963 = vmatpush1.bf16.msra.mxu0 %v1909
    %2964 = vmatprep.subr.bf16.mxu0 %v1913
    %2965 = vmatpush1.bf16.msra.mxu0 %v1912
    %2966 = vmatprep.subr.bf16.mxu0 0
    %2967 = vmatpush1.bf16.msra.mxu0 0
    %2968 = vmatprep.subr.bf16.mxu0 0
    %2969 = vmatpush1.bf16.msra.mxu0 0
    %2970 = vmatprep.subr.bf16.mxu0 0
    %2971 = vmatpush1.bf16.msra.mxu0 0
    %2972 = vmatprep.subr.bf16.mxu0 0
    %2973 = vmatpush1.bf16.msra.mxu0 0
    %2974 = vmatprep.subr.bf16.mxu0 0
    %2975 = vmatpush1.bf16.msra.mxu0 0
    %2976 = vmatprep.subr.bf16.mxu0 0
    %2977 = vmatpush1.bf16.msra.mxu0 0
    %2978 = vmatprep.subr.bf16.mxu0 0
    %2979 = vmatpush1.bf16.msra.mxu0 0
    %2980 = vmatprep.subr.bf16.mxu0 0
    %2981 = vmatpush1.bf16.msra.mxu0 0
    %2982 = vmatprep.mubr.bf16.mxu0 0
    %2983 = vmatmul.mubr.bf16.gmra.mrb[0].mxu0 %v2949
    %v2984 = vpop.f32.mrb[0].mxu0
    %v2985 = vadd.f32 0.0, %v2984
    %v2986 = vpop.f32.mrb[0].mxu0
    %v2987 = vadd.f32 0.0, %v2986
    %v2988 = vpop.f32.mrb[0].mxu0
    %v2989 = vpop.f32.mrb[0].mxu0
    %2990 = vdwg.mxu0
    %2991 = vmatprep.subr.bf16.mxu0 0
    %2992 = vmatpush1.bf16.msra.mxu0 %v1893
    %2993 = vmatprep.subr.bf16.mxu0 0
    %2994 = vmatpush1.bf16.msra.mxu0 %v1896
    %2995 = vmatprep.subr.bf16.mxu0 0
    %2996 = vmatpush1.bf16.msra.mxu0 %v1899
    %2997 = vmatprep.subr.bf16.mxu0 0
    %2998 = vmatpush1.bf16.msra.mxu0 %v1902
    %2999 = vmatprep.subr.bf16.mxu0 0
    %3000 = vmatpush1.bf16.msra.mxu0 %v1905
    %3001 = vmatprep.subr.bf16.mxu0 0
    %3002 = vmatpush1.bf16.msra.mxu0 %v1908
    %3003 = vmatprep.subr.bf16.mxu0 0
    %3004 = vmatpush1.bf16.msra.mxu0 %v1911
    %3005 = vmatprep.subr.bf16.mxu0 0
    %3006 = vmatpush1.bf16.msra.mxu0 %v1914
    %3007 = vmatprep.subr.bf16.mxu0 0
    %3008 = vmatpush1.bf16.msra.mxu0 0
    %3009 = vmatprep.subr.bf16.mxu0 0
    %3010 = vmatpush1.bf16.msra.mxu0 0
    %3011 = vmatprep.subr.bf16.mxu0 0
    %3012 = vmatpush1.bf16.msra.mxu0 0
    %3013 = vmatprep.subr.bf16.mxu0 0
    %3014 = vmatpush1.bf16.msra.mxu0 0
    %3015 = vmatprep.subr.bf16.mxu0 0
    %3016 = vmatpush1.bf16.msra.mxu0 0
    %3017 = vmatprep.subr.bf16.mxu0 0
    %3018 = vmatpush1.bf16.msra.mxu0 0
    %3019 = vmatprep.subr.bf16.mxu0 0
    %3020 = vmatpush1.bf16.msra.mxu0 0
    %3021 = vmatprep.subr.bf16.mxu0 0
    %3022 = vmatpush1.bf16.msra.mxu0 0
    %3023 = vmatprep.mubr.bf16.mxu0 0
    %3024 = vmatmul.mubr.bf16.gmra.mrb[0].mxu0 %v2949
    %v3025 = vpop.f32.mrb[0].mxu0
    %v3026 = vadd.f32 0.0, %v3025
    %v3027 = vpop.f32.mrb[0].mxu0
    %v3028 = vpop.f32.mrb[0].mxu0
    %v3029 = vpop.f32.mrb[0].mxu0
    %3030 = vdwg.mxu0
    %v3031 = vadd.f32 %v2946, %v2985
    %v3032 = vadd.f32 %v2947, %v2987
    %v3033 = vxor.u32 %v3031, 2147483648
    %v3034 = vxor.u32 %v3032, 2147483648
    %v3035 = vmul.f32 %v3033, 1.442695
    %v3036 = vpow.pop %v3035
    %v3037 = vmul.f32 %v3034, 1.442695
    %v3038 = vpow.pop %v3037
    %v3039 = vadd.f32 %v3036, 1.0
    %v3040 = vadd.f32 %v3038, 1.0
    %v3041 = vrcp.pop %v3039
    %v3042 = vmul.f32 1.0, %v3041
    %v3043 = vrcp.pop %v3040
    %v3044 = vmul.f32 1.0, %v3043
    %v3045 = vadd.f32 %v3026, %v2038
    %v3046 = vmul.f32 %v3042, %v3045
    %v3047 = vadd.f32 %v2948, %v3046
    %v3048 = vtanh.pop %v3047
    %v3049 = vsub.f32 1.0, %v3044
    %v3050 = vmul.f32 %v3049, %v3048
    %v3051 = vmul.f32 %v3044, %v2945
    %v3052 = vadd.f32 %v3050, %v3051
    %v3053 = vsel %vm1799, %v2503, %v2500
    %v3054 = vsel %vm1800, %v2504, %v2501
    %v3055 = vsel %vm1801, %v2505, %v2502
    %v3056 = vpack.c.bf16 %v3052, %v3052
    %3057 = vmatprep.subr.bf16.mxu0 %v1892
    %3058 = vmatpush1.bf16.msra.mxu0 %v1891
    %3059 = vmatprep.subr.bf16.mxu0 %v1895
    %3060 = vmatpush1.bf16.msra.mxu0 %v1894
    %3061 = vmatprep.subr.bf16.mxu0 %v1898
    %3062 = vmatpush1.bf16.msra.mxu0 %v1897
    %3063 = vmatprep.subr.bf16.mxu0 %v1901
    %3064 = vmatpush1.bf16.msra.mxu0 %v1900
    %3065 = vmatprep.subr.bf16.mxu0 %v1904
    %3066 = vmatpush1.bf16.msra.mxu0 %v1903
    %3067 = vmatprep.subr.bf16.mxu0 %v1907
    %3068 = vmatpush1.bf16.msra.mxu0 %v1906
    %3069 = vmatprep.subr.bf16.mxu0 %v1910
    %3070 = vmatpush1.bf16.msra.mxu0 %v1909
    %3071 = vmatprep.subr.bf16.mxu0 %v1913
    %3072 = vmatpush1.bf16.msra.mxu0 %v1912
    %3073 = vmatprep.subr.bf16.mxu0 0
    %3074 = vmatpush1.bf16.msra.mxu0 0
    %3075 = vmatprep.subr.bf16.mxu0 0
    %3076 = vmatpush1.bf16.msra.mxu0 0
    %3077 = vmatprep.subr.bf16.mxu0 0
    %3078 = vmatpush1.bf16.msra.mxu0 0
    %3079 = vmatprep.subr.bf16.mxu0 0
    %3080 = vmatpush1.bf16.msra.mxu0 0
    %3081 = vmatprep.subr.bf16.mxu0 0
    %3082 = vmatpush1.bf16.msra.mxu0 0
    %3083 = vmatprep.subr.bf16.mxu0 0
    %3084 = vmatpush1.bf16.msra.mxu0 0
    %3085 = vmatprep.subr.bf16.mxu0 0
    %3086 = vmatpush1.bf16.msra.mxu0 0
    %3087 = vmatprep.subr.bf16.mxu0 0
    %3088 = vmatpush1.bf16.msra.mxu0 0
    %3089 = vmatprep.mubr.bf16.mxu0 0
    %3090 = vmatmul.mubr.bf16.gmra.mrb[0].mxu0 %v3056
    %v3091 = vpop.f32.mrb[0].mxu0
    %v3092 = vadd.f32 0.0, %v3091
    %v3093 = vpop.f32.mrb[0].mxu0
    %v3094 = vadd.f32 0.0, %v3093
    %v3095 = vpop.f32.mrb[0].mxu0
    %v3096 = vpop.f32.mrb[0].mxu0
    %3097 = vdwg.mxu0
    %3098 = vmatprep.subr.bf16.mxu0 0
    %3099 = vmatpush1.bf16.msra.mxu0 %v1893
    %3100 = vmatprep.subr.bf16.mxu0 0
    %3101 = vmatpush1.bf16.msra.mxu0 %v1896
    %3102 = vmatprep.subr.bf16.mxu0 0
    %3103 = vmatpush1.bf16.msra.mxu0 %v1899
    %3104 = vmatprep.subr.bf16.mxu0 0
    %3105 = vmatpush1.bf16.msra.mxu0 %v1902
    %3106 = vmatprep.subr.bf16.mxu0 0
    %3107 = vmatpush1.bf16.msra.mxu0 %v1905
    %3108 = vmatprep.subr.bf16.mxu0 0
    %3109 = vmatpush1.bf16.msra.mxu0 %v1908
    %3110 = vmatprep.subr.bf16.mxu0 0
    %3111 = vmatpush1.bf16.msra.mxu0 %v1911
    %3112 = vmatprep.subr.bf16.mxu0 0
    %3113 = vmatpush1.bf16.msra.mxu0 %v1914
    %3114 = vmatprep.subr.bf16.mxu0 0
    %3115 = vmatpush1.bf16.msra.mxu0 0
    %3116 = vmatprep.subr.bf16.mxu0 0
    %3117 = vmatpush1.bf16.msra.mxu0 0
    %3118 = vmatprep.subr.bf16.mxu0 0
    %3119 = vmatpush1.bf16.msra.mxu0 0
    %3120 = vmatprep.subr.bf16.mxu0 0
    %3121 = vmatpush1.bf16.msra.mxu0 0
    %3122 = vmatprep.subr.bf16.mxu0 0
    %3123 = vmatpush1.bf16.msra.mxu0 0
    %3124 = vmatprep.subr.bf16.mxu0 0
    %3125 = vmatpush1.bf16.msra.mxu0 0
    %3126 = vmatprep.subr.bf16.mxu0 0
    %3127 = vmatpush1.bf16.msra.mxu0 0
    %3128 = vmatprep.subr.bf16.mxu0 0
    %3129 = vmatpush1.bf16.msra.mxu0 0
    %3130 = vmatprep.mubr.bf16.mxu0 0
    %3131 = vmatmul.mubr.bf16.gmra.mrb[0].mxu0 %v3056
    %v3132 = vpop.f32.mrb[0].mxu0
    %v3133 = vadd.f32 0.0, %v3132
    %v3134 = vpop.f32.mrb[0].mxu0
    %v3135 = vpop.f32.mrb[0].mxu0
    %v3136 = vpop.f32.mrb[0].mxu0
    %3137 = vdwg.mxu0
    %v3138 = vadd.f32 %v3053, %v3092
    %v3139 = vadd.f32 %v3054, %v3094
    %v3140 = vxor.u32 %v3138, 2147483648
    %v3141 = vxor.u32 %v3139, 2147483648
    %v3142 = vmul.f32 %v3140, 1.442695
    %v3143 = vpow.pop %v3142
    %v3144 = vmul.f32 %v3141, 1.442695
    %v3145 = vpow.pop %v3144
    %v3146 = vadd.f32 %v3143, 1.0
    %v3147 = vadd.f32 %v3145, 1.0
    %v3148 = vrcp.pop %v3146
    %v3149 = vmul.f32 1.0, %v3148
    %v3150 = vrcp.pop %v3147
    %v3151 = vmul.f32 1.0, %v3150
    %v3152 = vadd.f32 %v3133, %v2038
    %v3153 = vmul.f32 %v3149, %v3152
    %v3154 = vadd.f32 %v3055, %v3153
    %v3155 = vtanh.pop %v3154
    %v3156 = vsub.f32 1.0, %v3151
    %v3157 = vmul.f32 %v3156, %v3155
    %v3158 = vmul.f32 %v3151, %v3052
    %v3159 = vadd.f32 %v3157, %v3158
    %v3160 = vsel %vm1799, %v2390, %v2387
    %v3161 = vsel %vm1800, %v2391, %v2388
    %v3162 = vsel %vm1801, %v2392, %v2389
    %v3163 = vpack.c.bf16 %v3159, %v3159
    %3164 = vmatprep.subr.bf16.mxu0 %v1892
    %3165 = vmatpush1.bf16.msra.mxu0 %v1891
    %3166 = vmatprep.subr.bf16.mxu0 %v1895
    %3167 = vmatpush1.bf16.msra.mxu0 %v1894
    %3168 = vmatprep.subr.bf16.mxu0 %v1898
    %3169 = vmatpush1.bf16.msra.mxu0 %v1897
    %3170 = vmatprep.subr.bf16.mxu0 %v1901
    %3171 = vmatpush1.bf16.msra.mxu0 %v1900
    %3172 = vmatprep.subr.bf16.mxu0 %v1904
    %3173 = vmatpush1.bf16.msra.mxu0 %v1903
    %3174 = vmatprep.subr.bf16.mxu0 %v1907
    %3175 = vmatpush1.bf16.msra.mxu0 %v1906
    %3176 = vmatprep.subr.bf16.mxu0 %v1910
    %3177 = vmatpush1.bf16.msra.mxu0 %v1909
    %3178 = vmatprep.subr.bf16.mxu0 %v1913
    %3179 = vmatpush1.bf16.msra.mxu0 %v1912
    %3180 = vmatprep.subr.bf16.mxu0 0
    %3181 = vmatpush1.bf16.msra.mxu0 0
    %3182 = vmatprep.subr.bf16.mxu0 0
    %3183 = vmatpush1.bf16.msra.mxu0 0
    %3184 = vmatprep.subr.bf16.mxu0 0
    %3185 = vmatpush1.bf16.msra.mxu0 0
    %3186 = vmatprep.subr.bf16.mxu0 0
    %3187 = vmatpush1.bf16.msra.mxu0 0
    %3188 = vmatprep.subr.bf16.mxu0 0
    %3189 = vmatpush1.bf16.msra.mxu0 0
    %3190 = vmatprep.subr.bf16.mxu0 0
    %3191 = vmatpush1.bf16.msra.mxu0 0
    %3192 = vmatprep.subr.bf16.mxu0 0
    %3193 = vmatpush1.bf16.msra.mxu0 0
    %3194 = vmatprep.subr.bf16.mxu0 0
    %3195 = vmatpush1.bf16.msra.mxu0 0
    %3196 = vmatprep.mubr.bf16.mxu0 0
    %3197 = vmatmul.mubr.bf16.gmra.mrb[0].mxu0 %v3163
    %v3198 = vpop.f32.mrb[0].mxu0
    %v3199 = vadd.f32 0.0, %v3198
    %v3200 = vpop.f32.mrb[0].mxu0
    %v3201 = vadd.f32 0.0, %v3200
    %v3202 = vpop.f32.mrb[0].mxu0
    %v3203 = vpop.f32.mrb[0].mxu0
    %3204 = vdwg.mxu0
    %3205 = vmatprep.subr.bf16.mxu0 0
    %3206 = vmatpush1.bf16.msra.mxu0 %v1893
    %3207 = vmatprep.subr.bf16.mxu0 0
    %3208 = vmatpush1.bf16.msra.mxu0 %v1896
    %3209 = vmatprep.subr.bf16.mxu0 0
    %3210 = vmatpush1.bf16.msra.mxu0 %v1899
    %3211 = vmatprep.subr.bf16.mxu0 0
    %3212 = vmatpush1.bf16.msra.mxu0 %v1902
    %3213 = vmatprep.subr.bf16.mxu0 0
    %3214 = vmatpush1.bf16.msra.mxu0 %v1905
    %3215 = vmatprep.subr.bf16.mxu0 0
    %3216 = vmatpush1.bf16.msra.mxu0 %v1908
    %3217 = vmatprep.subr.bf16.mxu0 0
    %3218 = vmatpush1.bf16.msra.mxu0 %v1911
    %3219 = vmatprep.subr.bf16.mxu0 0
    %3220 = vmatpush1.bf16.msra.mxu0 %v1914
    %3221 = vmatprep.subr.bf16.mxu0 0
    %3222 = vmatpush1.bf16.msra.mxu0 0
    %3223 = vmatprep.subr.bf16.mxu0 0
    %3224 = vmatpush1.bf16.msra.mxu0 0
    %3225 = vmatprep.subr.bf16.mxu0 0
    %3226 = vmatpush1.bf16.msra.mxu0 0
    %3227 = vmatprep.subr.bf16.mxu0 0
    %3228 = vmatpush1.bf16.msra.mxu0 0
    %3229 = vmatprep.subr.bf16.mxu0 0
    %3230 = vmatpush1.bf16.msra.mxu0 0
    %3231 = vmatprep.subr.bf16.mxu0 0
    %3232 = vmatpush1.bf16.msra.mxu0 0
    %3233 = vmatprep.subr.bf16.mxu0 0
    %3234 = vmatpush1.bf16.msra.mxu0 0
    %3235 = vmatprep.subr.bf16.mxu0 0
    %3236 = vmatpush1.bf16.msra.mxu0 0
    %3237 = vmatprep.mubr.bf16.mxu0 0
    %3238 = vmatmul.mubr.bf16.gmra.mrb[0].mxu0 %v3163
    %v3239 = vpop.f32.mrb[0].mxu0
    %v3240 = vadd.f32 0.0, %v3239
    %v3241 = vpop.f32.mrb[0].mxu0
    %v3242 = vpop.f32.mrb[0].mxu0
    %v3243 = vpop.f32.mrb[0].mxu0
    %3244 = vdwg.mxu0
    %v3245 = vadd.f32 %v3160, %v3199
    %v3246 = vadd.f32 %v3161, %v3201
    %v3247 = vxor.u32 %v3245, 2147483648
    %v3248 = vxor.u32 %v3246, 2147483648
    %v3249 = vmul.f32 %v3247, 1.442695
    %v3250 = vpow.pop %v3249
    %v3251 = vmul.f32 %v3248, 1.442695
    %v3252 = vpow.pop %v3251
    %v3253 = vadd.f32 %v3250, 1.0
    %v3254 = vadd.f32 %v3252, 1.0
    %v3255 = vrcp.pop %v3253
    %v3256 = vmul.f32 1.0, %v3255
    %v3257 = vrcp.pop %v3254
    %v3258 = vmul.f32 1.0, %v3257
    %v3259 = vadd.f32 %v3240, %v2038
    %v3260 = vmul.f32 %v3256, %v3259
    %v3261 = vadd.f32 %v3162, %v3260
    %v3262 = vtanh.pop %v3261
    %v3263 = vsub.f32 1.0, %v3258
    %v3264 = vmul.f32 %v3263, %v3262
    %v3265 = vmul.f32 %v3258, %v3159
    %v3266 = vadd.f32 %v3264, %v3265
    %v3267 = vsel %vm1799, %v2277, %v2274
    %v3268 = vsel %vm1800, %v2278, %v2275
    %v3269 = vsel %vm1801, %v2279, %v2276
    %v3270 = vpack.c.bf16 %v3266, %v3266
    %3271 = vmatprep.subr.bf16.mxu0 %v1892
    %3272 = vmatpush1.bf16.msra.mxu0 %v1891
    %3273 = vmatprep.subr.bf16.mxu0 %v1895
    %3274 = vmatpush1.bf16.msra.mxu0 %v1894
    %3275 = vmatprep.subr.bf16.mxu0 %v1898
    %3276 = vmatpush1.bf16.msra.mxu0 %v1897
    %3277 = vmatprep.subr.bf16.mxu0 %v1901
    %3278 = vmatpush1.bf16.msra.mxu0 %v1900
    %3279 = vmatprep.subr.bf16.mxu0 %v1904
    %3280 = vmatpush1.bf16.msra.mxu0 %v1903
    %3281 = vmatprep.subr.bf16.mxu0 %v1907
    %3282 = vmatpush1.bf16.msra.mxu0 %v1906
    %3283 = vmatprep.subr.bf16.mxu0 %v1910
    %3284 = vmatpush1.bf16.msra.mxu0 %v1909
    %3285 = vmatprep.subr.bf16.mxu0 %v1913
    %3286 = vmatpush1.bf16.msra.mxu0 %v1912
    %3287 = vmatprep.subr.bf16.mxu0 0
    %3288 = vmatpush1.bf16.msra.mxu0 0
    %3289 = vmatprep.subr.bf16.mxu0 0
    %3290 = vmatpush1.bf16.msra.mxu0 0
    %3291 = vmatprep.subr.bf16.mxu0 0
    %3292 = vmatpush1.bf16.msra.mxu0 0
    %3293 = vmatprep.subr.bf16.mxu0 0
    %3294 = vmatpush1.bf16.msra.mxu0 0
    %3295 = vmatprep.subr.bf16.mxu0 0
    %3296 = vmatpush1.bf16.msra.mxu0 0
    %3297 = vmatprep.subr.bf16.mxu0 0
    %3298 = vmatpush1.bf16.msra.mxu0 0
    %3299 = vmatprep.subr.bf16.mxu0 0
    %3300 = vmatpush1.bf16.msra.mxu0 0
    %3301 = vmatprep.subr.bf16.mxu0 0
    %3302 = vmatpush1.bf16.msra.mxu0 0
    %3303 = vmatprep.mubr.bf16.mxu0 0
    %3304 = vmatmul.mubr.bf16.gmra.mrb[0].mxu0 %v3270
    %v3305 = vpop.f32.mrb[0].mxu0
    %v3306 = vadd.f32 0.0, %v3305
    %v3307 = vpop.f32.mrb[0].mxu0
    %v3308 = vadd.f32 0.0, %v3307
    %v3309 = vpop.f32.mrb[0].mxu0
    %v3310 = vpop.f32.mrb[0].mxu0
    %3311 = vdwg.mxu0
    %3312 = vmatprep.subr.bf16.mxu0 0
    %3313 = vmatpush1.bf16.msra.mxu0 %v1893
    %3314 = vmatprep.subr.bf16.mxu0 0
    %3315 = vmatpush1.bf16.msra.mxu0 %v1896
    %3316 = vmatprep.subr.bf16.mxu0 0
    %3317 = vmatpush1.bf16.msra.mxu0 %v1899
    %3318 = vmatprep.subr.bf16.mxu0 0
    %3319 = vmatpush1.bf16.msra.mxu0 %v1902
    %3320 = vmatprep.subr.bf16.mxu0 0
    %3321 = vmatpush1.bf16.msra.mxu0 %v1905
    %3322 = vmatprep.subr.bf16.mxu0 0
    %3323 = vmatpush1.bf16.msra.mxu0 %v1908
    %3324 = vmatprep.subr.bf16.mxu0 0
    %3325 = vmatpush1.bf16.msra.mxu0 %v1911
    %3326 = vmatprep.subr.bf16.mxu0 0
    %3327 = vmatpush1.bf16.msra.mxu0 %v1914
    %3328 = vmatprep.subr.bf16.mxu0 0
    %3329 = vmatpush1.bf16.msra.mxu0 0
    %3330 = vmatprep.subr.bf16.mxu0 0
    %3331 = vmatpush1.bf16.msra.mxu0 0
    %3332 = vmatprep.subr.bf16.mxu0 0
    %3333 = vmatpush1.bf16.msra.mxu0 0
    %3334 = vmatprep.subr.bf16.mxu0 0
    %3335 = vmatpush1.bf16.msra.mxu0 0
    %3336 = vmatprep.subr.bf16.mxu0 0
    %3337 = vmatpush1.bf16.msra.mxu0 0
    %3338 = vmatprep.subr.bf16.mxu0 0
    %3339 = vmatpush1.bf16.msra.mxu0 0
    %3340 = vmatprep.subr.bf16.mxu0 0
    %3341 = vmatpush1.bf16.msra.mxu0 0
    %3342 = vmatprep.subr.bf16.mxu0 0
    %3343 = vmatpush1.bf16.msra.mxu0 0
    %3344 = vmatprep.mubr.bf16.mxu0 0
    %3345 = vmatmul.mubr.bf16.gmra.mrb[0].mxu0 %v3270
    %v3346 = vpop.f32.mrb[0].mxu0
    %v3347 = vadd.f32 0.0, %v3346
    %v3348 = vpop.f32.mrb[0].mxu0
    %v3349 = vpop.f32.mrb[0].mxu0
    %v3350 = vpop.f32.mrb[0].mxu0
    %3351 = vdwg.mxu0
    %v3352 = vadd.f32 %v3267, %v3306
    %v3353 = vadd.f32 %v3268, %v3308
    %v3354 = vxor.u32 %v3352, 2147483648
    %v3355 = vxor.u32 %v3353, 2147483648
    %v3356 = vmul.f32 %v3354, 1.442695
    %v3357 = vpow.pop %v3356
    %v3358 = vmul.f32 %v3355, 1.442695
    %v3359 = vpow.pop %v3358
    %v3360 = vadd.f32 %v3357, 1.0
    %v3361 = vadd.f32 %v3359, 1.0
    %v3362 = vrcp.pop %v3360
    %v3363 = vmul.f32 1.0, %v3362
    %v3364 = vrcp.pop %v3361
    %v3365 = vmul.f32 1.0, %v3364
    %v3366 = vadd.f32 %v3347, %v2038
    %v3367 = vmul.f32 %v3363, %v3366
    %v3368 = vadd.f32 %v3269, %v3367
    %v3369 = vtanh.pop %v3368
    %v3370 = vsub.f32 1.0, %v3365
    %v3371 = vmul.f32 %v3370, %v3369
    %v3372 = vmul.f32 %v3365, %v3266
    %v3373 = vadd.f32 %v3371, %v3372
    %v3374 = vsel %vm1799, %v2164, %v2161
    %v3375 = vsel %vm1800, %v2165, %v2162
    %v3376 = vsel %vm1801, %v2166, %v2163
    %v3377 = vpack.c.bf16 %v3373, %v3373
    %3378 = vmatprep.subr.bf16.mxu0 %v1892
    %3379 = vmatpush1.bf16.msra.mxu0 %v1891
    %3380 = vmatprep.subr.bf16.mxu0 %v1895
    %3381 = vmatpush1.bf16.msra.mxu0 %v1894
    %3382 = vmatprep.subr.bf16.mxu0 %v1898
    %3383 = vmatpush1.bf16.msra.mxu0 %v1897
    %3384 = vmatprep.subr.bf16.mxu0 %v1901
    %3385 = vmatpush1.bf16.msra.mxu0 %v1900
    %3386 = vmatprep.subr.bf16.mxu0 %v1904
    %3387 = vmatpush1.bf16.msra.mxu0 %v1903
    %3388 = vmatprep.subr.bf16.mxu0 %v1907
    %3389 = vmatpush1.bf16.msra.mxu0 %v1906
    %3390 = vmatprep.subr.bf16.mxu0 %v1910
    %3391 = vmatpush1.bf16.msra.mxu0 %v1909
    %3392 = vmatprep.subr.bf16.mxu0 %v1913
    %3393 = vmatpush1.bf16.msra.mxu0 %v1912
    %3394 = vmatprep.subr.bf16.mxu0 0
    %3395 = vmatpush1.bf16.msra.mxu0 0
    %3396 = vmatprep.subr.bf16.mxu0 0
    %3397 = vmatpush1.bf16.msra.mxu0 0
    %3398 = vmatprep.subr.bf16.mxu0 0
    %3399 = vmatpush1.bf16.msra.mxu0 0
    %3400 = vmatprep.subr.bf16.mxu0 0
    %3401 = vmatpush1.bf16.msra.mxu0 0
    %3402 = vmatprep.subr.bf16.mxu0 0
    %3403 = vmatpush1.bf16.msra.mxu0 0
    %3404 = vmatprep.subr.bf16.mxu0 0
    %3405 = vmatpush1.bf16.msra.mxu0 0
    %3406 = vmatprep.subr.bf16.mxu0 0
    %3407 = vmatpush1.bf16.msra.mxu0 0
    %3408 = vmatprep.subr.bf16.mxu0 0
    %3409 = vmatpush1.bf16.msra.mxu0 0
    %3410 = vmatprep.mubr.bf16.mxu0 0
    %3411 = vmatmul.mubr.bf16.gmra.mrb[0].mxu0 %v3377
    %v3412 = vpop.f32.mrb[0].mxu0
    %v3413 = vadd.f32 0.0, %v3412
    %v3414 = vpop.f32.mrb[0].mxu0
    %v3415 = vadd.f32 0.0, %v3414
    %v3416 = vpop.f32.mrb[0].mxu0
    %v3417 = vpop.f32.mrb[0].mxu0
    %3418 = vdwg.mxu0
    %3419 = vmatprep.subr.bf16.mxu0 0
    %3420 = vmatpush1.bf16.msra.mxu0 %v1893
    %3421 = vmatprep.subr.bf16.mxu0 0
    %3422 = vmatpush1.bf16.msra.mxu0 %v1896
    %3423 = vmatprep.subr.bf16.mxu0 0
    %3424 = vmatpush1.bf16.msra.mxu0 %v1899
    %3425 = vmatprep.subr.bf16.mxu0 0
    %3426 = vmatpush1.bf16.msra.mxu0 %v1902
    %3427 = vmatprep.subr.bf16.mxu0 0
    %3428 = vmatpush1.bf16.msra.mxu0 %v1905
    %3429 = vmatprep.subr.bf16.mxu0 0
    %3430 = vmatpush1.bf16.msra.mxu0 %v1908
    %3431 = vmatprep.subr.bf16.mxu0 0
    %3432 = vmatpush1.bf16.msra.mxu0 %v1911
    %3433 = vmatprep.subr.bf16.mxu0 0
    %3434 = vmatpush1.bf16.msra.mxu0 %v1914
    %3435 = vmatprep.subr.bf16.mxu0 0
    %3436 = vmatpush1.bf16.msra.mxu0 0
    %3437 = vmatprep.subr.bf16.mxu0 0
    %3438 = vmatpush1.bf16.msra.mxu0 0
    %3439 = vmatprep.subr.bf16.mxu0 0
    %3440 = vmatpush1.bf16.msra.mxu0 0
    %3441 = vmatprep.subr.bf16.mxu0 0
    %3442 = vmatpush1.bf16.msra.mxu0 0
    %3443 = vmatprep.subr.bf16.mxu0 0
    %3444 = vmatpush1.bf16.msra.mxu0 0
    %3445 = vmatprep.subr.bf16.mxu0 0
    %3446 = vmatpush1.bf16.msra.mxu0 0
    %3447 = vmatprep.subr.bf16.mxu0 0
    %3448 = vmatpush1.bf16.msra.mxu0 0
    %3449 = vmatprep.subr.bf16.mxu0 0
    %3450 = vmatpush1.bf16.msra.mxu0 0
    %3451 = vmatprep.mubr.bf16.mxu0 0
    %3452 = vmatmul.mubr.bf16.gmra.mrb[0].mxu0 %v3377
    %v3453 = vpop.f32.mrb[0].mxu0
    %v3454 = vadd.f32 0.0, %v3453
    %v3455 = vpop.f32.mrb[0].mxu0
    %v3456 = vpop.f32.mrb[0].mxu0
    %v3457 = vpop.f32.mrb[0].mxu0
    %3458 = vdwg.mxu0
    %v3459 = vadd.f32 %v3374, %v3413
    %v3460 = vadd.f32 %v3375, %v3415
    %v3461 = vxor.u32 %v3459, 2147483648
    %v3462 = vxor.u32 %v3460, 2147483648
    %v3463 = vmul.f32 %v3461, 1.442695
    %v3464 = vpow.pop %v3463
    %v3465 = vmul.f32 %v3462, 1.442695
    %v3466 = vpow.pop %v3465
    %v3467 = vadd.f32 %v3464, 1.0
    %v3468 = vadd.f32 %v3466, 1.0
    %v3469 = vrcp.pop %v3467
    %v3470 = vmul.f32 1.0, %v3469
    %v3471 = vrcp.pop %v3468
    %v3472 = vmul.f32 1.0, %v3471
    %v3473 = vadd.f32 %v3454, %v2038
    %v3474 = vmul.f32 %v3470, %v3473
    %v3475 = vadd.f32 %v3376, %v3474
    %v3476 = vtanh.pop %v3475
    %v3477 = vsub.f32 1.0, %v3472
    %v3478 = vmul.f32 %v3477, %v3476
    %v3479 = vmul.f32 %v3472, %v3373
    %v3480 = vadd.f32 %v3478, %v3479
    %v3481 = vsel %vm1799, %v2051, %v2048
    %v3482 = vsel %vm1800, %v2052, %v2049
    %v3483 = vsel %vm1801, %v2053, %v2050
    %v3484 = vpack.c.bf16 %v3480, %v3480
    %3485 = vmatprep.subr.bf16.mxu0 %v1892
    %3486 = vmatpush1.bf16.msra.mxu0 %v1891
    %3487 = vmatprep.subr.bf16.mxu0 %v1895
    %3488 = vmatpush1.bf16.msra.mxu0 %v1894
    %3489 = vmatprep.subr.bf16.mxu0 %v1898
    %3490 = vmatpush1.bf16.msra.mxu0 %v1897
    %3491 = vmatprep.subr.bf16.mxu0 %v1901
    %3492 = vmatpush1.bf16.msra.mxu0 %v1900
    %3493 = vmatprep.subr.bf16.mxu0 %v1904
    %3494 = vmatpush1.bf16.msra.mxu0 %v1903
    %3495 = vmatprep.subr.bf16.mxu0 %v1907
    %3496 = vmatpush1.bf16.msra.mxu0 %v1906
    %3497 = vmatprep.subr.bf16.mxu0 %v1910
    %3498 = vmatpush1.bf16.msra.mxu0 %v1909
    %3499 = vmatprep.subr.bf16.mxu0 %v1913
    %3500 = vmatpush1.bf16.msra.mxu0 %v1912
    %3501 = vmatprep.subr.bf16.mxu0 0
    %3502 = vmatpush1.bf16.msra.mxu0 0
    %3503 = vmatprep.subr.bf16.mxu0 0
    %3504 = vmatpush1.bf16.msra.mxu0 0
    %3505 = vmatprep.subr.bf16.mxu0 0
    %3506 = vmatpush1.bf16.msra.mxu0 0
    %3507 = vmatprep.subr.bf16.mxu0 0
    %3508 = vmatpush1.bf16.msra.mxu0 0
    %3509 = vmatprep.subr.bf16.mxu0 0
    %3510 = vmatpush1.bf16.msra.mxu0 0
    %3511 = vmatprep.subr.bf16.mxu0 0
    %3512 = vmatpush1.bf16.msra.mxu0 0
    %3513 = vmatprep.subr.bf16.mxu0 0
    %3514 = vmatpush1.bf16.msra.mxu0 0
    %3515 = vmatprep.subr.bf16.mxu0 0
    %3516 = vmatpush1.bf16.msra.mxu0 0
    %3517 = vmatprep.mubr.bf16.mxu0 0
    %3518 = vmatmul.mubr.bf16.gmra.mrb[0].mxu0 %v3484
    %v3519 = vpop.f32.mrb[0].mxu0
    %v3520 = vadd.f32 0.0, %v3519
    %v3521 = vpop.f32.mrb[0].mxu0
    %v3522 = vadd.f32 0.0, %v3521
    %v3523 = vpop.f32.mrb[0].mxu0
    %v3524 = vpop.f32.mrb[0].mxu0
    %3525 = vdwg.mxu0
    %3526 = vmatprep.subr.bf16.mxu0 0
    %3527 = vmatpush1.bf16.msra.mxu0 %v1893
    %3528 = vmatprep.subr.bf16.mxu0 0
    %3529 = vmatpush1.bf16.msra.mxu0 %v1896
    %3530 = vmatprep.subr.bf16.mxu0 0
    %3531 = vmatpush1.bf16.msra.mxu0 %v1899
    %3532 = vmatprep.subr.bf16.mxu0 0
    %3533 = vmatpush1.bf16.msra.mxu0 %v1902
    %3534 = vmatprep.subr.bf16.mxu0 0
    %3535 = vmatpush1.bf16.msra.mxu0 %v1905
    %3536 = vmatprep.subr.bf16.mxu0 0
    %3537 = vmatpush1.bf16.msra.mxu0 %v1908
    %3538 = vmatprep.subr.bf16.mxu0 0
    %3539 = vmatpush1.bf16.msra.mxu0 %v1911
    %3540 = vmatprep.subr.bf16.mxu0 0
    %3541 = vmatpush1.bf16.msra.mxu0 %v1914
    %3542 = vmatprep.subr.bf16.mxu0 0
    %3543 = vmatpush1.bf16.msra.mxu0 0
    %3544 = vmatprep.subr.bf16.mxu0 0
    %3545 = vmatpush1.bf16.msra.mxu0 0
    %3546 = vmatprep.subr.bf16.mxu0 0
    %3547 = vmatpush1.bf16.msra.mxu0 0
    %3548 = vmatprep.subr.bf16.mxu0 0
    %3549 = vmatpush1.bf16.msra.mxu0 0
    %3550 = vmatprep.subr.bf16.mxu0 0
    %3551 = vmatpush1.bf16.msra.mxu0 0
    %3552 = vmatprep.subr.bf16.mxu0 0
    %3553 = vmatpush1.bf16.msra.mxu0 0
    %3554 = vmatprep.subr.bf16.mxu0 0
    %3555 = vmatpush1.bf16.msra.mxu0 0
    %3556 = vmatprep.subr.bf16.mxu0 0
    %3557 = vmatpush1.bf16.msra.mxu0 0
    %3558 = vmatprep.mubr.bf16.mxu0 0
    %3559 = vmatmul.mubr.bf16.gmra.mrb[0].mxu0 %v3484
    %v3560 = vpop.f32.mrb[0].mxu0
    %v3561 = vadd.f32 0.0, %v3560
    %v3562 = vpop.f32.mrb[0].mxu0
    %v3563 = vpop.f32.mrb[0].mxu0
    %v3564 = vpop.f32.mrb[0].mxu0
    %3565 = vdwg.mxu0
    %v3566 = vadd.f32 %v3481, %v3520
    %v3567 = vadd.f32 %v3482, %v3522
    %v3568 = vxor.u32 %v3566, 2147483648
    %v3569 = vxor.u32 %v3567, 2147483648
    %v3570 = vmul.f32 %v3568, 1.442695
    %v3571 = vpow.pop %v3570
    %v3572 = vmul.f32 %v3569, 1.442695
    %v3573 = vpow.pop %v3572
    %v3574 = vadd.f32 %v3571, 1.0
    %v3575 = vadd.f32 %v3573, 1.0
    %v3576 = vrcp.pop %v3574
    %v3577 = vmul.f32 1.0, %v3576
    %v3578 = vrcp.pop %v3575
    %v3579 = vmul.f32 1.0, %v3578
    %v3580 = vadd.f32 %v3561, %v2038
    %v3581 = vmul.f32 %v3577, %v3580
    %v3582 = vadd.f32 %v3483, %v3581
    %v3583 = vtanh.pop %v3582
    %v3584 = vsub.f32 1.0, %v3579
    %v3585 = vmul.f32 %v3584, %v3583
    %v3586 = vmul.f32 %v3579, %v3480
    %v3587 = vadd.f32 %v3585, %v3586
    %v3588 = vsel %vm1799, %v1805, %v1802
    %v3589 = vsel %vm1800, %v1806, %v1803
    %v3590 = vsel %vm1801, %v1807, %v1804
    %v3591 = vpack.c.bf16 %v3587, %v3587
    %3592 = vmatprep.subr.bf16.mxu0 %v1892
    %3593 = vmatpush1.bf16.msra.mxu0 %v1891
    %3594 = vmatprep.subr.bf16.mxu0 %v1895
    %3595 = vmatpush1.bf16.msra.mxu0 %v1894
    %3596 = vmatprep.subr.bf16.mxu0 %v1898
    %3597 = vmatpush1.bf16.msra.mxu0 %v1897
    %3598 = vmatprep.subr.bf16.mxu0 %v1901
    %3599 = vmatpush1.bf16.msra.mxu0 %v1900
    %3600 = vmatprep.subr.bf16.mxu0 %v1904
    %3601 = vmatpush1.bf16.msra.mxu0 %v1903
    %3602 = vmatprep.subr.bf16.mxu0 %v1907
    %3603 = vmatpush1.bf16.msra.mxu0 %v1906
    %3604 = vmatprep.subr.bf16.mxu0 %v1910
    %3605 = vmatpush1.bf16.msra.mxu0 %v1909
    %3606 = vmatprep.subr.bf16.mxu0 %v1913
    %3607 = vmatpush1.bf16.msra.mxu0 %v1912
    %3608 = vmatprep.subr.bf16.mxu0 0
    %3609 = vmatpush1.bf16.msra.mxu0 0
    %3610 = vmatprep.subr.bf16.mxu0 0
    %3611 = vmatpush1.bf16.msra.mxu0 0
    %3612 = vmatprep.subr.bf16.mxu0 0
    %3613 = vmatpush1.bf16.msra.mxu0 0
    %3614 = vmatprep.subr.bf16.mxu0 0
    %3615 = vmatpush1.bf16.msra.mxu0 0
    %3616 = vmatprep.subr.bf16.mxu0 0
    %3617 = vmatpush1.bf16.msra.mxu0 0
    %3618 = vmatprep.subr.bf16.mxu0 0
    %3619 = vmatpush1.bf16.msra.mxu0 0
    %3620 = vmatprep.subr.bf16.mxu0 0
    %3621 = vmatpush1.bf16.msra.mxu0 0
    %3622 = vmatprep.subr.bf16.mxu0 0
    %3623 = vmatpush1.bf16.msra.mxu0 0
    %3624 = vmatprep.mubr.bf16.mxu0 0
    %3625 = vmatmul.mubr.bf16.gmra.mrb[0].mxu0 %v3591
    %v3626 = vpop.f32.mrb[0].mxu0
    %v3627 = vadd.f32 0.0, %v3626
    %v3628 = vpop.f32.mrb[0].mxu0
    %v3629 = vadd.f32 0.0, %v3628
    %v3630 = vpop.f32.mrb[0].mxu0
    %v3631 = vpop.f32.mrb[0].mxu0
    %3632 = vdwg.mxu0
    %3633 = vmatprep.subr.bf16.mxu0 0
    %3634 = vmatpush1.bf16.msra.mxu0 %v1893
    %3635 = vmatprep.subr.bf16.mxu0 0
    %3636 = vmatpush1.bf16.msra.mxu0 %v1896
    %3637 = vmatprep.subr.bf16.mxu0 0
    %3638 = vmatpush1.bf16.msra.mxu0 %v1899
    %3639 = vmatprep.subr.bf16.mxu0 0
    %3640 = vmatpush1.bf16.msra.mxu0 %v1902
    %3641 = vmatprep.subr.bf16.mxu0 0
    %3642 = vmatpush1.bf16.msra.mxu0 %v1905
    %3643 = vmatprep.subr.bf16.mxu0 0
    %3644 = vmatpush1.bf16.msra.mxu0 %v1908
    %3645 = vmatprep.subr.bf16.mxu0 0
    %3646 = vmatpush1.bf16.msra.mxu0 %v1911
    %3647 = vmatprep.subr.bf16.mxu0 0
    %3648 = vmatpush1.bf16.msra.mxu0 %v1914
    %3649 = vmatprep.subr.bf16.mxu0 0
    %3650 = vmatpush1.bf16.msra.mxu0 0
    %3651 = vmatprep.subr.bf16.mxu0 0
    %3652 = vmatpush1.bf16.msra.mxu0 0
    %3653 = vmatprep.subr.bf16.mxu0 0
    %3654 = vmatpush1.bf16.msra.mxu0 0
    %3655 = vmatprep.subr.bf16.mxu0 0
    %3656 = vmatpush1.bf16.msra.mxu0 0
    %3657 = vmatprep.subr.bf16.mxu0 0
    %3658 = vmatpush1.bf16.msra.mxu0 0
    %3659 = vmatprep.subr.bf16.mxu0 0
    %3660 = vmatpush1.bf16.msra.mxu0 0
    %3661 = vmatprep.subr.bf16.mxu0 0
    %3662 = vmatpush1.bf16.msra.mxu0 0
    %3663 = vmatprep.subr.bf16.mxu0 0
    %3664 = vmatpush1.bf16.msra.mxu0 0
    %3665 = vmatprep.mubr.bf16.mxu0 0
    %3666 = vmatmul.mubr.bf16.gmra.mrb[0].mxu0 %v3591
    %v3667 = vpop.f32.mrb[0].mxu0
    %v3668 = vadd.f32 0.0, %v3667
    %v3669 = vpop.f32.mrb[0].mxu0
    %v3670 = vpop.f32.mrb[0].mxu0
    %v3671 = vpop.f32.mrb[0].mxu0
    %3672 = vdwg.mxu0
    %v3673 = vadd.f32 %v3588, %v3627
    %v3674 = vadd.f32 %v3589, %v3629
    %v3675 = vxor.u32 %v3673, 2147483648
    %v3676 = vxor.u32 %v3674, 2147483648
    %v3677 = vmul.f32 %v3675, 1.442695
    %v3678 = vpow.pop %v3677
    %v3679 = vmul.f32 %v3676, 1.442695
    %v3680 = vpow.pop %v3679
    %v3681 = vadd.f32 %v3678, 1.0
    %v3682 = vadd.f32 %v3680, 1.0
    %v3683 = vrcp.pop %v3681
    %v3684 = vmul.f32 1.0, %v3683
    %v3685 = vrcp.pop %v3682
    %v3686 = vmul.f32 1.0, %v3685
    %v3687 = vadd.f32 %v3668, %v2038
    %v3688 = vmul.f32 %v3684, %v3687
    %v3689 = vadd.f32 %v3590, %v3688
    %v3690 = vtanh.pop %v3689
    %v3691 = vsub.f32 1.0, %v3686
    %v3692 = vmul.f32 %v3691, %v3690
    %v3693 = vmul.f32 %v3686, %v3587
    %v3694 = vadd.f32 %v3692, %v3693
    %3695 = vst [vmem:[#allocation9] sm:$0x3] %v3694
    %v3696 = vpack.c.bf16 %v3694, %v3694
    %v3697 = vld [vmem:[#allocation8] sm:$0xf]
    %v3698 = vld [vmem:[#allocation8 + $0x4] sm:$0xf]
    %v3699 = vld [vmem:[#allocation8 + $0x8] sm:$0xf]
    %v3700 = vld [vmem:[#allocation8 + $0xc] sm:$0xf]
    %v3701 = vld [vmem:[#allocation8 + $0x10] sm:$0xf]
    %v3702 = vld [vmem:[#allocation8 + $0x14] sm:$0xf]
    %v3703 = vld [vmem:[#allocation8 + $0x18] sm:$0xf]
    %v3704 = vld [vmem:[#allocation8 + $0x1c] sm:$0xf]
    %v3705 = vld [vmem:[#allocation8 + $0x20] sm:$0xf]
    %v3706 = vld [vmem:[#allocation8 + $0x24] sm:$0xf]
    %v3707 = vld [vmem:[#allocation8 + $0x28] sm:$0xf]
    %v3708 = vld [vmem:[#allocation8 + $0x2c] sm:$0xf]
    %v3709 = vld [vmem:[#allocation8 + $0x30] sm:$0xf]
    %v3710 = vld [vmem:[#allocation8 + $0x34] sm:$0xf]
    %v3711 = vld [vmem:[#allocation8 + $0x38] sm:$0xf]
    %v3712 = vld [vmem:[#allocation8 + $0x3c] sm:$0xf]
    %v3713 = vld [vmem:[%s10] sm:$0x1]
    %v3715 = vlaneseq
    %v3716 = vshrl.u32 %v3715, 7
    %v3717 = vsub.s32 0, %v3716
    %v3718 = vrot.slane %v3713, %v3717
    %v3736 = vunpack.c.l.b16 %v3697
    %v3737 = vunpack.c.l.b16 %v3698
    %v3738 = vunpack.c.l.b16 %v3699
    %v3739 = vunpack.c.l.b16 %v3700
    %v3740 = vunpack.c.l.b16 %v3701
    %v3741 = vunpack.c.l.b16 %v3702
    %v3742 = vunpack.c.l.b16 %v3703
    %v3743 = vunpack.c.l.b16 %v3704
    %v3744 = vunpack.c.l.b16 %v3705
    %v3745 = vunpack.c.l.b16 %v3706
    %v3746 = vunpack.c.l.b16 %v3707
    %v3747 = vunpack.c.l.b16 %v3708
    %v3748 = vunpack.c.l.b16 %v3709
    %v3749 = vunpack.c.l.b16 %v3710
    %v3750 = vunpack.c.l.b16 %v3711
    %v3751 = vunpack.c.l.b16 %v3712
    %v3752 = vpack.c.b16 %v3737, %v3736
    %v3753 = vpack.c.b16 %v3739, %v3738
    %v3754 = vpack.c.b16 %v3741, %v3740
    %v3755 = vpack.c.b16 %v3743, %v3742
    %v3756 = vpack.c.b16 %v3745, %v3744
    %v3757 = vpack.c.b16 %v3747, %v3746
    %v3758 = vpack.c.b16 %v3749, %v3748
    %v3759 = vpack.c.b16 %v3751, %v3750
    %3768 = vmatprep.subr.bf16.mxu0 0
    %3769 = vmatpush1.bf16.msra.mxu0 %v3752
    %3770 = vmatprep.subr.bf16.mxu0 0
    %3771 = vmatpush1.bf16.msra.mxu0 %v3753
    %3772 = vmatprep.subr.bf16.mxu0 0
    %3773 = vmatpush1.bf16.msra.mxu0 %v3754
    %3774 = vmatprep.subr.bf16.mxu0 0
    %3775 = vmatpush1.bf16.msra.mxu0 %v3755
    %3776 = vmatprep.subr.bf16.mxu0 0
    %3777 = vmatpush1.bf16.msra.mxu0 %v3756
    %3778 = vmatprep.subr.bf16.mxu0 0
    %3779 = vmatpush1.bf16.msra.mxu0 %v3757
    %3780 = vmatprep.subr.bf16.mxu0 0
    %3781 = vmatpush1.bf16.msra.mxu0 %v3758
    %3782 = vmatprep.subr.bf16.mxu0 0
    %3783 = vmatpush1.bf16.msra.mxu0 %v3759
    %3784 = vmatprep.subr.bf16.mxu0 0
    %3785 = vmatpush1.bf16.msra.mxu0 0
    %3786 = vmatprep.subr.bf16.mxu0 0
    %3787 = vmatpush1.bf16.msra.mxu0 0
    %3788 = vmatprep.subr.bf16.mxu0 0
    %3789 = vmatpush1.bf16.msra.mxu0 0
    %3790 = vmatprep.subr.bf16.mxu0 0
    %3791 = vmatpush1.bf16.msra.mxu0 0
    %3792 = vmatprep.subr.bf16.mxu0 0
    %3793 = vmatpush1.bf16.msra.mxu0 0
    %3794 = vmatprep.subr.bf16.mxu0 0
    %3795 = vmatpush1.bf16.msra.mxu0 0
    %3796 = vmatprep.subr.bf16.mxu0 0
    %3797 = vmatpush1.bf16.msra.mxu0 0
    %3798 = vmatprep.subr.bf16.mxu0 0
    %3799 = vmatpush1.bf16.msra.mxu0 0
    %3800 = vmatprep.mubr.bf16.mxu0 0
    %3801 = vmatmul.mubr.bf16.gmra.mrb[0].mxu0 %v3696
    %v3802 = vpop.f32.mrb[0].mxu0
    %v3803 = vadd.f32 %v3718, %v3802
    %v3804 = vpop.f32.mrb[0].mxu0
    %v3805 = vpop.f32.mrb[0].mxu0
    %v3806 = vpop.f32.mrb[0].mxu0
    %3807 = vdwg.mxu0
    %3808 = vst [vmem:[#allocation10] sm:$0x3] %v3803
    // Predicated region
    $region58: #{imu_encoder_forward.1} parent=1 // pred_check
      _
    $region59: #{imu_encoder_forward.1} parent=1 // pred_check_branch
      %3810 = sbr.rel (0) target = $region61
    $region60: #{imu_encoder_forward.1} parent=1 // pred_region
      %s3812 = ssub.s32 32, 32
      %3813 = vsyncadd [#allocation5], %s3812
      %s3815 = sshll.u32 [#allocation9], 4
      %s3816 = int_to_ptr.vmem [resolvable:$true] %s3815
      %3818 = dma.vmem_to_hbm [thread:$0]  %s3816, 32, %s11, [#allocation5]
    $region61: #{imu_encoder_forward.1} parent=1 // pred_fallthru
      _
    // Predicated region
    $region62: #{imu_encoder_forward.1} parent=1 // pred_check
      _
    $region63: #{imu_encoder_forward.1} parent=1 // pred_check_branch
      %3820 = sbr.rel (0) target = $region65
    $region64: #{imu_encoder_forward.1} parent=1 // pred_region
      %s3822 = ssub.s32 32, 32
      %3823 = vsyncadd [#allocation11], %s3822
      %s3825 = sshll.u32 [#allocation10], 4
      %s3826 = int_to_ptr.vmem [resolvable:$true] %s3825
      %3828 = dma.vmem_to_hbm [thread:$0]  %s3826, 32, %s12, [#allocation11]
    $region65: #{imu_encoder_forward.1} parent=1 // pred_fallthru
      _
    // Predicated region
    $region66: #{imu_encoder_forward.1} parent=1 // pred_check
      _
    $region67: #{imu_encoder_forward.1} parent=1 // pred_check_branch
      %3830 = sbr.rel (0) target = $region69
    $region68: #{imu_encoder_forward.1} parent=1 // pred_region
      %3831 = dma.done [#allocation5], 32
    $region69: #{imu_encoder_forward.1} parent=1 // pred_fallthru
      _
    // Predicated region
    $region70: #{imu_encoder_forward.1} parent=1 // pred_check
      _
    $region71: #{imu_encoder_forward.1} parent=1 // pred_check_branch
      %3833 = sbr.rel (0) target = $region73
    $region72: #{imu_encoder_forward.1} parent=1 // pred_region
      %3834 = dma.done [#allocation11], 32
    $region73: #{imu_encoder_forward.1} parent=1 // pred_fallthru
      _
    %3835 = vsyncpa [#allocation4], 1
    %3836 = vsyncpa [#allocation7], 1
    %3837 = vsyncpa [#allocation5], 1
    %3838 = vsyncpa [#allocation11], 1

</llo_original>
